<compile_context>
chip_gen: v5e
topology: v5e:2x2
jax: 0.10.0
libtpu: 0.0.40
codegen_flags: <defaults>
</compile_context>

<pallas_src>
import functools

import jax
import jax.numpy as jnp
from jax.experimental import pallas as pl
from jax.experimental.pallas import tpu as pltpu


# 3x3 tap offsets, tap index t = kh*3 + kw.
_TAP_OFFSETS = tuple((kh - 1, kw - 1) for kh in range(3) for kw in range(3))


# --------------------------------------------------------------------------
# Fused kernel: Bblk images per grid step, everything resident in VMEM.
# --------------------------------------------------------------------------
def _fused_inpaint_kernel(imm_ref, img_ref, msk_ref, tmask_ref,
                          w1_ref, b1_ref, w2_ref, b2_ref, out_ref, *, W):
    imm = imm_ref[0]                                   # (3, N) images_masked
    img = img_ref[0]                                   # (3, N) images
    msk = msk_ref[0]                                   # (1, N) masks
    tm = tmask_ref[...]                                # (9, N) bf16 tap masks

    # im2col patch matrix (27, N): 9 taps x 3 channels, built directly in bf16
    # (mask values are 0/1 so the bf16 multiply is exact).  Static jnp.roll
    # lowers to lane slices + concat; the per-tap mask zeroes positions whose
    # 3x3 neighbour lies outside the image ('SAME' zero padding), which also
    # makes the lane-axis wrap across concatenated images / spatial pad safe.
    imm_bf = imm.astype(jnp.bfloat16)
    taps = []
    for t, (dh, dw) in enumerate(_TAP_OFFSETS):
        d = dh * W + dw
        shifted = jnp.roll(imm_bf, -d, axis=1) if d else imm_bf
        taps.append(shifted * tm[t:t + 1, :])
    patches = jnp.concatenate(taps, axis=0)            # (27, N) bf16

    # conv1 / feat_generator: single K=27 MXU matmul, f32 accumulate; bias,
    # ReLU and bf16 cast fused so the f32 feat copy is never bound.
    feat_bf = jnp.maximum(
        jnp.dot(w1_ref[...], patches, preferred_element_type=jnp.float32)
        + b1_ref[...], 0.0).astype(jnp.bfloat16)       # (FC, N) bf16, VMEM only

    # conv2 / inp_generator: ONE dot over K = FC + 4.  RHS stacks the feat
    # channels with the 4 extra input channels (images*masks, masks); the tap
    # weights are stacked on the M axis (row = tap*3 + out_channel).
    xcat = jnp.concatenate(
        [feat_bf, (img * msk).astype(jnp.bfloat16), msk.astype(jnp.bfloat16)],
        axis=0)                                        # (FC+4, N) bf16
    z = jnp.dot(w2_ref[...], xcat,
                preferred_element_type=jnp.float32)    # (27, N) f32

    # Per-tap 3x3 spatial shift + zero-pad mask on the tiny (3, N) slices.
    acc = None
    for t, (dh, dw) in enumerate(_TAP_OFFSETS):
        d = dh * W + dw
        zt = z[3 * t:3 * (t + 1), :]
        if d:
            zt = jnp.roll(zt, -d, axis=1)
        contrib = zt * tm[t:t + 1, :]
        acc = contrib if acc is None else acc + contrib

    out = jnp.tanh(acc + b2_ref[...])                  # (3, N) f32
    out_ref[0] = out.astype(out_ref.dtype)


# --------------------------------------------------------------------------
# Host-side helpers
# --------------------------------------------------------------------------
def _tap_masks(H, W, HWp):
    """(9, HWp) bf16 validity mask per 3x3 tap (zero-pad 'SAME' behaviour)."""
    p = jnp.arange(H * W)
    hh, ww = p // W, p % W
    rows = []
    for dh, dw in _TAP_OFFSETS:
        rows.append((hh + dh >= 0) & (hh + dh < H) &
                    (ww + dw >= 0) & (ww + dw < W))
    m = jnp.stack(rows, axis=0).astype(jnp.bfloat16)
    if HWp != H * W:
        m = jnp.pad(m, ((0, 0), (0, HWp - H * W)))     # pad lanes fully masked
    return m


def _pack_weights(params):
    """Repack HWIO conv weights into the transposed / stacked / bf16 layout."""
    w1 = params["feat_w"]                        # (3, 3, 3, FC)   HWIO
    w2 = params["inp_w"]                         # (3, 3, FC+4, 3) HWIO
    FC = w1.shape[-1]
    # conv1: (FC, 27), column = tap*3 + cin  (matches patch-row order).
    w1t = jnp.transpose(w1, (3, 0, 1, 2)).reshape(FC, 27)
    # conv2: (27, FC+4), row = tap*3 + cout, column = cin in
    # [feat | images*masks | masks] order (= the reference concat order).
    w2s = jnp.transpose(w2, (0, 1, 3, 2)).reshape(27, FC + 4)
    b1 = params["feat_b"].reshape(FC, 1).astype(jnp.float32)
    b2 = params["inp_b"].reshape(3, 1).astype(jnp.float32)
    return (w1t.astype(jnp.bfloat16), b1, w2s.astype(jnp.bfloat16), b2)


def init_params(key, r1=2, r2=2, img_ch=3):
    feat_ch = 64 * r1 * r2                  # FeatureGenerator output channels
    inp_in_ch = feat_ch + img_ch + 1        # InpaintGenerator input_ch
    k1, k2, k3, k4 = jax.random.split(key, 4)
    return {
        "feat_w": jax.random.normal(k1, (3, 3, img_ch, feat_ch), jnp.float32)
                  * (1.0 / jnp.sqrt(9.0 * img_ch)),
        "feat_b": jax.random.normal(k3, (feat_ch,), jnp.float32) * 0.05,
        "inp_w": jax.random.normal(k2, (3, 3, inp_in_ch, img_ch), jnp.float32)
                 * (1.0 / jnp.sqrt(9.0 * inp_in_ch)),
        "inp_b": jax.random.normal(k4, (img_ch,), jnp.float32) * 0.05,
    }


def inpainting_model_forward(params, images, images_masked, masks,
                             *, bblk_target=8):
    """images, images_masked: (B,3,H,W); masks: (B,1,H,W).  Returns (B,3,H,W)."""
    B, C, H, W = images.shape
    assert C == 3 and masks.shape[1] == 1
    FC = params["feat_w"].shape[-1]
    HW = H * W
    HWp = ((HW + 127) // 128) * 128          # lane-multiple spatial axis

    # Batch blocking: Bblk images per grid step (fat lane axis), but keep the
    # grid length >= 2 so both v7x TensorCores get work.
    if B <= 1:
        G, Bblk = 1, 1
    else:
        G = max(2, -(-B // bblk_target))
        Bblk = -(-B // G)
        G = -(-B // Bblk)
    Bp = G * Bblk
    N = Bblk * HWp

    def prep(x, ch):
        x = x.reshape(B, ch, HW).astype(jnp.float32)
        if HWp != HW:
            x = jnp.pad(x, ((0, 0), (0, 0), (0, HWp - HW)))
        if Bp != B:
            x = jnp.pad(x, ((0, Bp - B), (0, 0), (0, 0)))
        # (G, Bblk, ch, HWp) -> (G, ch, Bblk*HWp): lane axis = images x spatial.
        return (x.reshape(G, Bblk, ch, HWp)
                 .transpose(0, 2, 1, 3)
                 .reshape(G, ch, N))

    imm = prep(images_masked, 3)
    img = prep(images, 3)
    msk = prep(masks, 1)

    w1t, b1, w2s, b2 = _pack_weights(params)
    tmask = jnp.tile(_tap_masks(H, W, HWp), (1, Bblk))   # (9, N) bf16

    kernel = functools.partial(_fused_inpaint_kernel, W=W)
    full = lambda g: (0, 0)
    out_flat = pl.pallas_call(
        kernel,
        out_shape=jax.ShapeDtypeStruct((G, 3, N), jnp.float32),
        grid_spec=pltpu.PrefetchScalarGridSpec(
            num_scalar_prefetch=0,
            grid=(G,),
            in_specs=[
                pl.BlockSpec((1, 3, N), lambda g: (g, 0, 0)),   # images_masked
                pl.BlockSpec((1, 3, N), lambda g: (g, 0, 0)),   # images
                pl.BlockSpec((1, 1, N), lambda g: (g, 0, 0)),   # masks
                pl.BlockSpec((9, N), full),                     # tap masks
                pl.BlockSpec((FC, 27), full),                   # conv1 weight
                pl.BlockSpec((FC, 1), full),                    # conv1 bias
                pl.BlockSpec((27, FC + 4), full),               # conv2 weight
                pl.BlockSpec((3, 1), full),                     # conv2 bias
            ],
            out_specs=pl.BlockSpec((1, 3, N), lambda g: (g, 0, 0)),
        ),
        compiler_params=pltpu.CompilerParams(
            dimension_semantics=("parallel",)),   # v7x: both TCs split the grid
    )(imm, img, msk, tmask, w1t, b1, w2s, b2)

    out = (out_flat.reshape(G, 3, Bblk, HWp)
                   .transpose(0, 2, 1, 3)
                   .reshape(Bp, 3, HWp))
    return out[:B, :, :HW].reshape(B, 3, H, W)


# --------------------------------------------------------------------------
# Pure-JAX reference (correctness check only).  Mirrors the kernel's bf16
# operand rounding (weights and activations) with f32 accumulation.
# --------------------------------------------------------------------------
def _ref_conv3x3(x_nhwc, w, b):
    y = jax.lax.conv_general_dilated(
        x_nhwc, w, window_strides=(1, 1), padding="SAME",
        dimension_numbers=("NHWC", "HWIO", "NHWC"))
    return y + b[None, None, None, :]


def _ref_forward(params, images, images_masked, masks):
    rt = lambda x: x.astype(jnp.bfloat16).astype(jnp.float32)
    xm = jnp.transpose(images_masked, (0, 2, 3, 1))
    feat = _ref_conv3x3(rt(xm), rt(params["feat_w"]), params["feat_b"])
    feat = jnp.maximum(feat, 0.0)
    img_known = jnp.transpose(images * masks, (0, 2, 3, 1))
    m_nhwc = jnp.transpose(masks, (0, 2, 3, 1))
    inp_in = jnp.concatenate([rt(feat), rt(img_known), rt(m_nhwc)], axis=-1)
    out = jnp.tanh(_ref_conv3x3(inp_in, rt(params["inp_w"]), params["inp_b"]))
    return jnp.transpose(out, (0, 3, 1, 2))


if __name__ == "__main__":
    key = jax.random.PRNGKey(0)
    k_img, k_mask, k_par = jax.random.split(key, 3)

    B, C, H, W = 8, 3, 16, 16
    r1 = r2 = 2

    images = jax.random.uniform(k_img, (B, C, H, W), jnp.float32)
    masks = (jax.random.uniform(k_mask, (B, 1, H, W)) > 0.5).astype(jnp.float32)
    images_masked = images * masks

    params = init_params(k_par, r1=r1, r2=r2, img_ch=C)

    fwd = jax.jit(inpainting_model_forward)
    out = jax.block_until_ready(fwd(params, images, images_masked, masks))

    ref = _ref_forward(params, images, images_masked, masks)
    assert out.shape == (B, C, H, W)
    max_err = float(jnp.max(jnp.abs(out - ref)))
    assert max_err < 1e-2, f"mismatch vs reference: max abs err {max_err}"

    print("KERNEL_OK")
</pallas_src>

<mosaic_0001>
module attributes {stable_mosaic.version = 11 : i64} {
  func.func @_fused_inpaint_kernel(%arg0: i32, %arg1: memref<1x3x1024xf32, #tpu.memory_space<vmem>>, %arg2: memref<1x3x1024xf32, #tpu.memory_space<vmem>>, %arg3: memref<1x1x1024xf32, #tpu.memory_space<vmem>>, %arg4: memref<9x1024xbf16, #tpu.memory_space<vmem>>, %arg5: memref<256x27xbf16, #tpu.memory_space<vmem>>, %arg6: memref<256x1xf32, #tpu.memory_space<vmem>>, %arg7: memref<27x260xbf16, #tpu.memory_space<vmem>>, %arg8: memref<3x1xf32, #tpu.memory_space<vmem>>, %arg9: memref<1x3x1024xf32, #tpu.memory_space<vmem>>) attributes {dimension_semantics = [#tpu.dimension_semantics<parallel>], iteration_bounds = array<i64: 2>, scalar_prefetch = 0 : i64, scratch_operands = 0 : i64, tpu.core_type = #tpu.core_type<tc>, window_params = [{transform_indices = @transform_0, window_bounds = array<i64: 1, 3, 1024>}, {transform_indices = @transform_1, window_bounds = array<i64: 1, 3, 1024>}, {transform_indices = @transform_2, window_bounds = array<i64: 1, 1, 1024>}, {pipeline_mode = #tpu.pipeline_mode<synchronous>, transform_indices = @transform_3, window_bounds = array<i64: 9, 1024>}, {pipeline_mode = #tpu.pipeline_mode<synchronous>, transform_indices = @transform_4, window_bounds = array<i64: 256, 27>}, {pipeline_mode = #tpu.pipeline_mode<synchronous>, transform_indices = @transform_5, window_bounds = array<i64: 256, 1>}, {pipeline_mode = #tpu.pipeline_mode<synchronous>, transform_indices = @transform_6, window_bounds = array<i64: 27, 260>}, {pipeline_mode = #tpu.pipeline_mode<synchronous>, transform_indices = @transform_7, window_bounds = array<i64: 3, 1>}, {transform_indices = @transform_8, window_bounds = array<i64: 1, 3, 1024>}]} {
    %c0 = arith.constant 0 : index
    %c0_0 = arith.constant 0 : index
    %c0_1 = arith.constant 0 : index
    %0 = vector.load %arg1[%c0, %c0_0, %c0_1] : memref<1x3x1024xf32, #tpu.memory_space<vmem>>, vector<1x3x1024xf32>
    %1 = vector.shape_cast %0 : vector<1x3x1024xf32> to vector<3x1024xf32>
    %c0_2 = arith.constant 0 : index
    %c0_3 = arith.constant 0 : index
    %c0_4 = arith.constant 0 : index
    %2 = vector.load %arg2[%c0_2, %c0_3, %c0_4] : memref<1x3x1024xf32, #tpu.memory_space<vmem>>, vector<1x3x1024xf32>
    %3 = vector.shape_cast %2 : vector<1x3x1024xf32> to vector<3x1024xf32>
    %c0_5 = arith.constant 0 : index
    %c0_6 = arith.constant 0 : index
    %c0_7 = arith.constant 0 : index
    %4 = vector.load %arg3[%c0_5, %c0_6, %c0_7] : memref<1x1x1024xf32, #tpu.memory_space<vmem>>, vector<1x1x1024xf32>
    %5 = vector.shape_cast %4 : vector<1x1x1024xf32> to vector<1x1024xf32>
    %c0_8 = arith.constant 0 : index
    %c0_9 = arith.constant 0 : index
    %6 = vector.load %arg4[%c0_8, %c0_9] : memref<9x1024xbf16, #tpu.memory_space<vmem>>, vector<9x1024xbf16>
    %7 = arith.truncf %1 : vector<3x1024xf32> to vector<3x1024xbf16>
    %8 = vector.extract_strided_slice %7 {offsets = [0, 1007], sizes = [3, 17], strides = [1, 1]} : vector<3x1024xbf16> to vector<3x17xbf16>
    %9 = vector.extract_strided_slice %7 {offsets = [0, 0], sizes = [3, 1007], strides = [1, 1]} : vector<3x1024xbf16> to vector<3x1007xbf16>
    %10 = tpu.concatenate %8, %9 in 1 : vector<3x17xbf16>, vector<3x1007xbf16> -> vector<3x1024xbf16>
    %11 = vector.extract_strided_slice %6 {offsets = [0, 0], sizes = [1, 1024], strides = [1, 1]} : vector<9x1024xbf16> to vector<1x1024xbf16>
    %12 = vector.broadcast %11 : vector<1x1024xbf16> to vector<3x1024xbf16>
    %13 = arith.mulf %10, %12 : vector<3x1024xbf16>
    %14 = vector.extract_strided_slice %7 {offsets = [0, 1008], sizes = [3, 16], strides = [1, 1]} : vector<3x1024xbf16> to vector<3x16xbf16>
    %15 = vector.extract_strided_slice %7 {offsets = [0, 0], sizes = [3, 1008], strides = [1, 1]} : vector<3x1024xbf16> to vector<3x1008xbf16>
    %16 = tpu.concatenate %14, %15 in 1 : vector<3x16xbf16>, vector<3x1008xbf16> -> vector<3x1024xbf16>
    %17 = vector.extract_strided_slice %6 {offsets = [1, 0], sizes = [1, 1024], strides = [1, 1]} : vector<9x1024xbf16> to vector<1x1024xbf16>
    %18 = vector.broadcast %17 : vector<1x1024xbf16> to vector<3x1024xbf16>
    %19 = arith.mulf %16, %18 : vector<3x1024xbf16>
    %20 = vector.extract_strided_slice %7 {offsets = [0, 1009], sizes = [3, 15], strides = [1, 1]} : vector<3x1024xbf16> to vector<3x15xbf16>
    %21 = vector.extract_strided_slice %7 {offsets = [0, 0], sizes = [3, 1009], strides = [1, 1]} : vector<3x1024xbf16> to vector<3x1009xbf16>
    %22 = tpu.concatenate %20, %21 in 1 : vector<3x15xbf16>, vector<3x1009xbf16> -> vector<3x1024xbf16>
    %23 = vector.extract_strided_slice %6 {offsets = [2, 0], sizes = [1, 1024], strides = [1, 1]} : vector<9x1024xbf16> to vector<1x1024xbf16>
    %24 = vector.broadcast %23 : vector<1x1024xbf16> to vector<3x1024xbf16>
    %25 = arith.mulf %22, %24 : vector<3x1024xbf16>
    %26 = vector.extract_strided_slice %7 {offsets = [0, 1023], sizes = [3, 1], strides = [1, 1]} : vector<3x1024xbf16> to vector<3x1xbf16>
    %27 = vector.extract_strided_slice %7 {offsets = [0, 0], sizes = [3, 1023], strides = [1, 1]} : vector<3x1024xbf16> to vector<3x1023xbf16>
    %28 = tpu.concatenate %26, %27 in 1 : vector<3x1xbf16>, vector<3x1023xbf16> -> vector<3x1024xbf16>
    %29 = vector.extract_strided_slice %6 {offsets = [3, 0], sizes = [1, 1024], strides = [1, 1]} : vector<9x1024xbf16> to vector<1x1024xbf16>
    %30 = vector.broadcast %29 : vector<1x1024xbf16> to vector<3x1024xbf16>
    %31 = arith.mulf %28, %30 : vector<3x1024xbf16>
    %32 = vector.extract_strided_slice %6 {offsets = [4, 0], sizes = [1, 1024], strides = [1, 1]} : vector<9x1024xbf16> to vector<1x1024xbf16>
    %33 = vector.broadcast %32 : vector<1x1024xbf16> to vector<3x1024xbf16>
    %34 = arith.mulf %7, %33 : vector<3x1024xbf16>
    %35 = vector.extract_strided_slice %7 {offsets = [0, 1], sizes = [3, 1023], strides = [1, 1]} : vector<3x1024xbf16> to vector<3x1023xbf16>
    %36 = vector.extract_strided_slice %7 {offsets = [0, 0], sizes = [3, 1], strides = [1, 1]} : vector<3x1024xbf16> to vector<3x1xbf16>
    %37 = tpu.concatenate %35, %36 in 1 : vector<3x1023xbf16>, vector<3x1xbf16> -> vector<3x1024xbf16>
    %38 = vector.extract_strided_slice %6 {offsets = [5, 0], sizes = [1, 1024], strides = [1, 1]} : vector<9x1024xbf16> to vector<1x1024xbf16>
    %39 = vector.broadcast %38 : vector<1x1024xbf16> to vector<3x1024xbf16>
    %40 = arith.mulf %37, %39 : vector<3x1024xbf16>
    %41 = vector.extract_strided_slice %7 {offsets = [0, 15], sizes = [3, 1009], strides = [1, 1]} : vector<3x1024xbf16> to vector<3x1009xbf16>
    %42 = vector.extract_strided_slice %7 {offsets = [0, 0], sizes = [3, 15], strides = [1, 1]} : vector<3x1024xbf16> to vector<3x15xbf16>
    %43 = tpu.concatenate %41, %42 in 1 : vector<3x1009xbf16>, vector<3x15xbf16> -> vector<3x1024xbf16>
    %44 = vector.extract_strided_slice %6 {offsets = [6, 0], sizes = [1, 1024], strides = [1, 1]} : vector<9x1024xbf16> to vector<1x1024xbf16>
    %45 = vector.broadcast %44 : vector<1x1024xbf16> to vector<3x1024xbf16>
    %46 = arith.mulf %43, %45 : vector<3x1024xbf16>
    %47 = vector.extract_strided_slice %7 {offsets = [0, 16], sizes = [3, 1008], strides = [1, 1]} : vector<3x1024xbf16> to vector<3x1008xbf16>
    %48 = vector.extract_strided_slice %7 {offsets = [0, 0], sizes = [3, 16], strides = [1, 1]} : vector<3x1024xbf16> to vector<3x16xbf16>
    %49 = tpu.concatenate %47, %48 in 1 : vector<3x1008xbf16>, vector<3x16xbf16> -> vector<3x1024xbf16>
    %50 = vector.extract_strided_slice %6 {offsets = [7, 0], sizes = [1, 1024], strides = [1, 1]} : vector<9x1024xbf16> to vector<1x1024xbf16>
    %51 = vector.broadcast %50 : vector<1x1024xbf16> to vector<3x1024xbf16>
    %52 = arith.mulf %49, %51 : vector<3x1024xbf16>
    %53 = vector.extract_strided_slice %7 {offsets = [0, 17], sizes = [3, 1007], strides = [1, 1]} : vector<3x1024xbf16> to vector<3x1007xbf16>
    %54 = vector.extract_strided_slice %7 {offsets = [0, 0], sizes = [3, 17], strides = [1, 1]} : vector<3x1024xbf16> to vector<3x17xbf16>
    %55 = tpu.concatenate %53, %54 in 1 : vector<3x1007xbf16>, vector<3x17xbf16> -> vector<3x1024xbf16>
    %56 = vector.extract_strided_slice %6 {offsets = [8, 0], sizes = [1, 1024], strides = [1, 1]} : vector<9x1024xbf16> to vector<1x1024xbf16>
    %57 = vector.broadcast %56 : vector<1x1024xbf16> to vector<3x1024xbf16>
    %58 = arith.mulf %55, %57 : vector<3x1024xbf16>
    %59 = tpu.concatenate %13, %19, %25, %31, %34, %40, %46, %52, %58 in 0 : vector<3x1024xbf16>, vector<3x1024xbf16>, vector<3x1024xbf16>, vector<3x1024xbf16>, vector<3x1024xbf16>, vector<3x1024xbf16>, vector<3x1024xbf16>, vector<3x1024xbf16>, vector<3x1024xbf16> -> vector<27x1024xbf16>
    %c0_10 = arith.constant 0 : index
    %c0_11 = arith.constant 0 : index
    %60 = vector.load %arg5[%c0_10, %c0_11] : memref<256x27xbf16, #tpu.memory_space<vmem>>, vector<256x27xbf16>
    %cst = arith.constant dense<0.000000e+00> : vector<256x1024xf32>
    %61 = tpu.matmul %60, %59, %cst {dimension_numbers = #tpu.dot_dimension_numbers<[1], [0], [0], [1], [0, 0, 1, 1], [], []>} : vector<256x27xbf16>, vector<27x1024xbf16>, vector<256x1024xf32> -> vector<256x1024xf32>
    %c0_12 = arith.constant 0 : index
    %c0_13 = arith.constant 0 : index
    %62 = vector.load %arg6[%c0_12, %c0_13] : memref<256x1xf32, #tpu.memory_space<vmem>>, vector<256x1xf32>
    %63 = vector.broadcast %62 : vector<256x1xf32> to vector<256x1024xf32>
    %64 = arith.addf %61, %63 : vector<256x1024xf32>
    %cst_14 = arith.constant 0.000000e+00 : f32
    %65 = vector.broadcast %cst_14 : f32 to vector<256x1024xf32>
    %66 = arith.maximumf %64, %65 : vector<256x1024xf32>
    %67 = arith.truncf %66 : vector<256x1024xf32> to vector<256x1024xbf16>
    %68 = vector.broadcast %5 : vector<1x1024xf32> to vector<3x1024xf32>
    %69 = arith.mulf %3, %68 : vector<3x1024xf32>
    %70 = arith.truncf %69 : vector<3x1024xf32> to vector<3x1024xbf16>
    %71 = arith.truncf %5 : vector<1x1024xf32> to vector<1x1024xbf16>
    %72 = tpu.concatenate %67, %70, %71 in 0 : vector<256x1024xbf16>, vector<3x1024xbf16>, vector<1x1024xbf16> -> vector<260x1024xbf16>
    %c0_15 = arith.constant 0 : index
    %c0_16 = arith.constant 0 : index
    %73 = vector.load %arg7[%c0_15, %c0_16] : memref<27x260xbf16, #tpu.memory_space<vmem>>, vector<27x260xbf16>
    %cst_17 = arith.constant dense<0.000000e+00> : vector<27x1024xf32>
    %74 = tpu.matmul %73, %72, %cst_17 {dimension_numbers = #tpu.dot_dimension_numbers<[1], [0], [0], [1], [0, 0, 1, 1], [], []>} : vector<27x260xbf16>, vector<260x1024xbf16>, vector<27x1024xf32> -> vector<27x1024xf32>
    %75 = vector.extract_strided_slice %74 {offsets = [0, 0], sizes = [3, 1024], strides = [1, 1]} : vector<27x1024xf32> to vector<3x1024xf32>
    %76 = vector.extract_strided_slice %75 {offsets = [0, 1007], sizes = [3, 17], strides = [1, 1]} : vector<3x1024xf32> to vector<3x17xf32>
    %77 = vector.extract_strided_slice %75 {offsets = [0, 0], sizes = [3, 1007], strides = [1, 1]} : vector<3x1024xf32> to vector<3x1007xf32>
    %78 = tpu.concatenate %76, %77 in 1 : vector<3x17xf32>, vector<3x1007xf32> -> vector<3x1024xf32>
    %79 = vector.extract_strided_slice %6 {offsets = [0, 0], sizes = [1, 1024], strides = [1, 1]} : vector<9x1024xbf16> to vector<1x1024xbf16>
    %80 = arith.extf %79 : vector<1x1024xbf16> to vector<1x1024xf32>
    %81 = vector.broadcast %80 : vector<1x1024xf32> to vector<3x1024xf32>
    %82 = arith.mulf %78, %81 : vector<3x1024xf32>
    %83 = vector.extract_strided_slice %74 {offsets = [3, 0], sizes = [3, 1024], strides = [1, 1]} : vector<27x1024xf32> to vector<3x1024xf32>
    %84 = vector.extract_strided_slice %83 {offsets = [0, 1008], sizes = [3, 16], strides = [1, 1]} : vector<3x1024xf32> to vector<3x16xf32>
    %85 = vector.extract_strided_slice %83 {offsets = [0, 0], sizes = [3, 1008], strides = [1, 1]} : vector<3x1024xf32> to vector<3x1008xf32>
    %86 = tpu.concatenate %84, %85 in 1 : vector<3x16xf32>, vector<3x1008xf32> -> vector<3x1024xf32>
    %87 = vector.extract_strided_slice %6 {offsets = [1, 0], sizes = [1, 1024], strides = [1, 1]} : vector<9x1024xbf16> to vector<1x1024xbf16>
    %88 = arith.extf %87 : vector<1x1024xbf16> to vector<1x1024xf32>
    %89 = vector.broadcast %88 : vector<1x1024xf32> to vector<3x1024xf32>
    %90 = arith.mulf %86, %89 : vector<3x1024xf32>
    %91 = arith.addf %82, %90 : vector<3x1024xf32>
    %92 = vector.extract_strided_slice %74 {offsets = [6, 0], sizes = [3, 1024], strides = [1, 1]} : vector<27x1024xf32> to vector<3x1024xf32>
    %93 = vector.extract_strided_slice %92 {offsets = [0, 1009], sizes = [3, 15], strides = [1, 1]} : vector<3x1024xf32> to vector<3x15xf32>
    %94 = vector.extract_strided_slice %92 {offsets = [0, 0], sizes = [3, 1009], strides = [1, 1]} : vector<3x1024xf32> to vector<3x1009xf32>
    %95 = tpu.concatenate %93, %94 in 1 : vector<3x15xf32>, vector<3x1009xf32> -> vector<3x1024xf32>
    %96 = vector.extract_strided_slice %6 {offsets = [2, 0], sizes = [1, 1024], strides = [1, 1]} : vector<9x1024xbf16> to vector<1x1024xbf16>
    %97 = arith.extf %96 : vector<1x1024xbf16> to vector<1x1024xf32>
    %98 = vector.broadcast %97 : vector<1x1024xf32> to vector<3x1024xf32>
    %99 = arith.mulf %95, %98 : vector<3x1024xf32>
    %100 = arith.addf %91, %99 : vector<3x1024xf32>
    %101 = vector.extract_strided_slice %74 {offsets = [9, 0], sizes = [3, 1024], strides = [1, 1]} : vector<27x1024xf32> to vector<3x1024xf32>
    %102 = vector.extract_strided_slice %101 {offsets = [0, 1023], sizes = [3, 1], strides = [1, 1]} : vector<3x1024xf32> to vector<3x1xf32>
    %103 = vector.extract_strided_slice %101 {offsets = [0, 0], sizes = [3, 1023], strides = [1, 1]} : vector<3x1024xf32> to vector<3x1023xf32>
    %104 = tpu.concatenate %102, %103 in 1 : vector<3x1xf32>, vector<3x1023xf32> -> vector<3x1024xf32>
    %105 = vector.extract_strided_slice %6 {offsets = [3, 0], sizes = [1, 1024], strides = [1, 1]} : vector<9x1024xbf16> to vector<1x1024xbf16>
    %106 = arith.extf %105 : vector<1x1024xbf16> to vector<1x1024xf32>
    %107 = vector.broadcast %106 : vector<1x1024xf32> to vector<3x1024xf32>
    %108 = arith.mulf %104, %107 : vector<3x1024xf32>
    %109 = arith.addf %100, %108 : vector<3x1024xf32>
    %110 = vector.extract_strided_slice %74 {offsets = [12, 0], sizes = [3, 1024], strides = [1, 1]} : vector<27x1024xf32> to vector<3x1024xf32>
    %111 = vector.extract_strided_slice %6 {offsets = [4, 0], sizes = [1, 1024], strides = [1, 1]} : vector<9x1024xbf16> to vector<1x1024xbf16>
    %112 = arith.extf %111 : vector<1x1024xbf16> to vector<1x1024xf32>
    %113 = vector.broadcast %112 : vector<1x1024xf32> to vector<3x1024xf32>
    %114 = arith.mulf %110, %113 : vector<3x1024xf32>
    %115 = arith.addf %109, %114 : vector<3x1024xf32>
    %116 = vector.extract_strided_slice %74 {offsets = [15, 0], sizes = [3, 1024], strides = [1, 1]} : vector<27x1024xf32> to vector<3x1024xf32>
    %117 = vector.extract_strided_slice %116 {offsets = [0, 1], sizes = [3, 1023], strides = [1, 1]} : vector<3x1024xf32> to vector<3x1023xf32>
    %118 = vector.extract_strided_slice %116 {offsets = [0, 0], sizes = [3, 1], strides = [1, 1]} : vector<3x1024xf32> to vector<3x1xf32>
    %119 = tpu.concatenate %117, %118 in 1 : vector<3x1023xf32>, vector<3x1xf32> -> vector<3x1024xf32>
    %120 = vector.extract_strided_slice %6 {offsets = [5, 0], sizes = [1, 1024], strides = [1, 1]} : vector<9x1024xbf16> to vector<1x1024xbf16>
    %121 = arith.extf %120 : vector<1x1024xbf16> to vector<1x1024xf32>
    %122 = vector.broadcast %121 : vector<1x1024xf32> to vector<3x1024xf32>
    %123 = arith.mulf %119, %122 : vector<3x1024xf32>
    %124 = arith.addf %115, %123 : vector<3x1024xf32>
    %125 = vector.extract_strided_slice %74 {offsets = [18, 0], sizes = [3, 1024], strides = [1, 1]} : vector<27x1024xf32> to vector<3x1024xf32>
    %126 = vector.extract_strided_slice %125 {offsets = [0, 15], sizes = [3, 1009], strides = [1, 1]} : vector<3x1024xf32> to vector<3x1009xf32>
    %127 = vector.extract_strided_slice %125 {offsets = [0, 0], sizes = [3, 15], strides = [1, 1]} : vector<3x1024xf32> to vector<3x15xf32>
    %128 = tpu.concatenate %126, %127 in 1 : vector<3x1009xf32>, vector<3x15xf32> -> vector<3x1024xf32>
    %129 = vector.extract_strided_slice %6 {offsets = [6, 0], sizes = [1, 1024], strides = [1, 1]} : vector<9x1024xbf16> to vector<1x1024xbf16>
    %130 = arith.extf %129 : vector<1x1024xbf16> to vector<1x1024xf32>
    %131 = vector.broadcast %130 : vector<1x1024xf32> to vector<3x1024xf32>
    %132 = arith.mulf %128, %131 : vector<3x1024xf32>
    %133 = arith.addf %124, %132 : vector<3x1024xf32>
    %134 = vector.extract_strided_slice %74 {offsets = [21, 0], sizes = [3, 1024], strides = [1, 1]} : vector<27x1024xf32> to vector<3x1024xf32>
    %135 = vector.extract_strided_slice %134 {offsets = [0, 16], sizes = [3, 1008], strides = [1, 1]} : vector<3x1024xf32> to vector<3x1008xf32>
    %136 = vector.extract_strided_slice %134 {offsets = [0, 0], sizes = [3, 16], strides = [1, 1]} : vector<3x1024xf32> to vector<3x16xf32>
    %137 = tpu.concatenate %135, %136 in 1 : vector<3x1008xf32>, vector<3x16xf32> -> vector<3x1024xf32>
    %138 = vector.extract_strided_slice %6 {offsets = [7, 0], sizes = [1, 1024], strides = [1, 1]} : vector<9x1024xbf16> to vector<1x1024xbf16>
    %139 = arith.extf %138 : vector<1x1024xbf16> to vector<1x1024xf32>
    %140 = vector.broadcast %139 : vector<1x1024xf32> to vector<3x1024xf32>
    %141 = arith.mulf %137, %140 : vector<3x1024xf32>
    %142 = arith.addf %133, %141 : vector<3x1024xf32>
    %143 = vector.extract_strided_slice %74 {offsets = [24, 0], sizes = [3, 1024], strides = [1, 1]} : vector<27x1024xf32> to vector<3x1024xf32>
    %144 = vector.extract_strided_slice %143 {offsets = [0, 17], sizes = [3, 1007], strides = [1, 1]} : vector<3x1024xf32> to vector<3x1007xf32>
    %145 = vector.extract_strided_slice %143 {offsets = [0, 0], sizes = [3, 17], strides = [1, 1]} : vector<3x1024xf32> to vector<3x17xf32>
    %146 = tpu.concatenate %144, %145 in 1 : vector<3x1007xf32>, vector<3x17xf32> -> vector<3x1024xf32>
    %147 = vector.extract_strided_slice %6 {offsets = [8, 0], sizes = [1, 1024], strides = [1, 1]} : vector<9x1024xbf16> to vector<1x1024xbf16>
    %148 = arith.extf %147 : vector<1x1024xbf16> to vector<1x1024xf32>
    %149 = vector.broadcast %148 : vector<1x1024xf32> to vector<3x1024xf32>
    %150 = arith.mulf %146, %149 : vector<3x1024xf32>
    %151 = arith.addf %142, %150 : vector<3x1024xf32>
    %c0_18 = arith.constant 0 : index
    %c0_19 = arith.constant 0 : index
    %152 = vector.load %arg8[%c0_18, %c0_19] : memref<3x1xf32, #tpu.memory_space<vmem>>, vector<3x1xf32>
    %153 = vector.broadcast %152 : vector<3x1xf32> to vector<3x1024xf32>
    %154 = arith.addf %151, %153 : vector<3x1024xf32>
    %155 = math.tanh %154 : vector<3x1024xf32>
    %c0_20 = arith.constant 0 : index
    %c0_21 = arith.constant 0 : index
    %c0_22 = arith.constant 0 : index
    %156 = vector.load %arg9[%c0_20, %c0_21, %c0_22] : memref<1x3x1024xf32, #tpu.memory_space<vmem>>, vector<1x3x1024xf32>
    %157 = vector.shape_cast %156 : vector<1x3x1024xf32> to vector<3x1024xf32>
    %158 = vector.shape_cast %155 : vector<3x1024xf32> to vector<1x3x1024xf32>
    tpu.vector_store %arg9[%c0_20, %c0_21, %c0_22], %158 {strides = array<i32>} : memref<1x3x1024xf32, #tpu.memory_space<vmem>>, vector<1x3x1024xf32>,
    return
  }
  func.func @transform_0(%arg0: i32) -> (i32, i32, i32) {
    %c0_i32 = arith.constant 0 : i32
    %c0_i32_0 = arith.constant 0 : i32
    %c0_i32_1 = arith.constant 0 : i32
    return %arg0, %c0_i32, %c0_i32_0 : i32, i32, i32
  }
  func.func @transform_1(%arg0: i32) -> (i32, i32, i32) {
    %c0_i32 = arith.constant 0 : i32
    %c0_i32_0 = arith.constant 0 : i32
    %c0_i32_1 = arith.constant 0 : i32
    return %arg0, %c0_i32, %c0_i32_0 : i32, i32, i32
  }
  func.func @transform_2(%arg0: i32) -> (i32, i32, i32) {
    %c0_i32 = arith.constant 0 : i32
    %c0_i32_0 = arith.constant 0 : i32
    %c0_i32_1 = arith.constant 0 : i32
    return %arg0, %c0_i32, %c0_i32_0 : i32, i32, i32
  }
  func.func @transform_3(%arg0: i32) -> (i32, i32) {
    %c0_i32 = arith.constant 0 : i32
    %c0_i32_0 = arith.constant 0 : i32
    %c0_i32_1 = arith.constant 0 : i32
    return %c0_i32, %c0_i32_0 : i32, i32
  }
  func.func @transform_4(%arg0: i32) -> (i32, i32) {
    %c0_i32 = arith.constant 0 : i32
    %c0_i32_0 = arith.constant 0 : i32
    %c0_i32_1 = arith.constant 0 : i32
    return %c0_i32, %c0_i32_0 : i32, i32
  }
  func.func @transform_5(%arg0: i32) -> (i32, i32) {
    %c0_i32 = arith.constant 0 : i32
    %c0_i32_0 = arith.constant 0 : i32
    %c0_i32_1 = arith.constant 0 : i32
    return %c0_i32, %c0_i32_0 : i32, i32
  }
  func.func @transform_6(%arg0: i32) -> (i32, i32) {
    %c0_i32 = arith.constant 0 : i32
    %c0_i32_0 = arith.constant 0 : i32
    %c0_i32_1 = arith.constant 0 : i32
    return %c0_i32, %c0_i32_0 : i32, i32
  }
  func.func @transform_7(%arg0: i32) -> (i32, i32) {
    %c0_i32 = arith.constant 0 : i32
    %c0_i32_0 = arith.constant 0 : i32
    %c0_i32_1 = arith.constant 0 : i32
    return %c0_i32, %c0_i32_0 : i32, i32
  }
  func.func @transform_8(%arg0: i32) -> (i32, i32, i32) {
    %c0_i32 = arith.constant 0 : i32
    %c0_i32_0 = arith.constant 0 : i32
    %c0_i32_1 = arith.constant 0 : i32
    return %arg0, %c0_i32, %c0_i32_0 : i32, i32, i32
  }
}

</mosaic_0001>

<llo_original>
// kernel: inpainting_model_forward.1
$region0: #{inpainting_model_forward.1}
  #allocation0 [shape = 'u32[]', space=smem, size = 0x4, offset = 0x4, fixed_abs, tag = 'smem constant byte address 0x4 - core index']
  #allocation1 [shape = 'u32[72,128]{1,0:T(1,128)}', space=vmem, size = 0x9000, scoped, tag = 'internal scratch']
  %s0 = inlined_call_operand.vmem [shape: f32[2,3,1024], index: 0, kind: input, shape index: {}]
  %s1 = inlined_call_operand.vmem [shape: f32[2,3,1024], index: 1, kind: input, shape index: {}]
  %s2 = inlined_call_operand.vmem [shape: f32[2,1,1024], index: 2, kind: input, shape index: {}]
  %s3 = inlined_call_operand.vmem [shape: bf16[9,1024], index: 3, kind: input, shape index: {}]
  %s4 = inlined_call_operand.vmem [shape: bf16[256,27], index: 4, kind: input, shape index: {}]
  %s5 = inlined_call_operand.vmem [shape: f32[256,1], index: 5, kind: input, shape index: {}]
  %s6 = inlined_call_operand.vmem [shape: bf16[27,260], index: 6, kind: input, shape index: {}]
  %s7 = inlined_call_operand.vmem [shape: f32[3,1], index: 7, kind: input, shape index: {}]
  %s8 = inlined_call_operand.vmem [shape: f32[2,3,1024], index: 8, kind: output, shape index: {}]
  %s9 = sld [smem:[#allocation0]]
  $region65: #{inpainting_model_forward.1} parent=0
    _
  %s11 = ssub.s32 1, %s9
  %s12 = scalar_select 0, %s11, %s9
  loop: start=0, step=1, limit=4
  $region2: #{inpainting_model_forward.1} parent=0 // loop_pre_header
    _
  $region3: #{inpainting_model_forward.1} parent=0 // loop_header
    %s14 = sphi 0, %s18
    %p15 = scmp.ge.s32.totalorder %s14, 4
    %s24 = sphi 0, %s26
    %s27 = sphi 0, %s24
    %s28 = sphi 0, %s27
    %s44 = sphi 0, %s28
    %s50 = sphi 0, %s52
    %s53 = sphi 0, %s50
    %s54 = sphi 0, %s53
    %s70 = sphi 0, %s54
    %s76 = sphi 0, %s78
    %s79 = sphi 0, %s76
    %s80 = sphi 0, %s79
    %s96 = sphi 0, %s80
    %s100 = sphi 0, %s100
    %s102 = sphi 0, %s100
    %s103 = sphi 0, %s102
    %s117 = sphi 0, %s103
    %s121 = sphi 0, %s121
    %s123 = sphi 0, %s121
    %s124 = sphi 0, %s123
    %s138 = sphi 0, %s124
    %s142 = sphi 0, %s142
    %s144 = sphi 0, %s142
    %s145 = sphi 0, %s144
    %s159 = sphi 0, %s145
    %s163 = sphi 0, %s163
    %s165 = sphi 0, %s163
    %s166 = sphi 0, %s165
    %s180 = sphi 0, %s166
    %s184 = sphi 0, %s184
    %s186 = sphi 0, %s184
    %s187 = sphi 0, %s186
    %s201 = sphi 0, %s187
    %s207 = sphi 0, %s209
    %s210 = sphi 0, %s207
    %s211 = sphi 0, %s210
    %s227 = sphi 0, %s211
  $region4: #{inpainting_model_forward.1} parent=0 // loop_header_branch
    %17 = sbr.rel (%p15) target = $region8
  $region5: #{inpainting_model_forward.1} parent=0 // loop_body
    %s19 = ssub.s32 %s14, 1
    %s20 = ssub.s32 %s14, 2
    %s21 = sadd.s32 %s14, 1
    %s22 = ssub.s32 %s14, %s21
    %p23 = scmp.eq.s32.totalorder %s22, 0
    %s25 = sadd.s32 %s24, 1
    %s26 = scalar_select %p23, %s24, %s25
    %p29 = pneg %p23
    %p30 = scmp.eq.s32.totalorder %s14, 1
    %p31 = por %p29, %p30
    %p32 = scmp.ne.s32.totalorder %s24, %s27
    %p33 = scmp.eq.s32.totalorder %s14, 0
    %p34 = por %p32, %p33
    %p35 = scmp.ne.s32.totalorder %s24, %s27
    %p36 = scmp.eq.s32.totalorder %s19, 1
    %p37 = por %p35, %p36
    %p38 = scmp.ne.s32.totalorder %s27, %s28
    %p39 = scmp.eq.s32.totalorder %s19, 0
    %p40 = por %p38, %p39
    %p41 = scmp.ne.s32.totalorder %s27, %s28
    %p42 = scmp.eq.s32.totalorder %s20, 1
    %p43 = por %p41, %p42
    %p45 = scmp.ne.s32.totalorder %s28, %s44
    %p46 = scmp.eq.s32.totalorder %s20, 0
    %p47 = por %p45, %p46
    %s48 = ssub.s32 %s14, %s21
    %p49 = scmp.eq.s32.totalorder %s48, 0
    %s51 = sadd.s32 %s50, 1
    %s52 = scalar_select %p49, %s50, %s51
    %p55 = pneg %p49
    %p56 = scmp.eq.s32.totalorder %s14, 1
    %p57 = por %p55, %p56
    %p58 = scmp.ne.s32.totalorder %s50, %s53
    %p59 = scmp.eq.s32.totalorder %s14, 0
    %p60 = por %p58, %p59
    %p61 = scmp.ne.s32.totalorder %s50, %s53
    %p62 = scmp.eq.s32.totalorder %s19, 1
    %p63 = por %p61, %p62
    %p64 = scmp.ne.s32.totalorder %s53, %s54
    %p65 = scmp.eq.s32.totalorder %s19, 0
    %p66 = por %p64, %p65
    %p67 = scmp.ne.s32.totalorder %s53, %s54
    %p68 = scmp.eq.s32.totalorder %s20, 1
    %p69 = por %p67, %p68
    %p71 = scmp.ne.s32.totalorder %s54, %s70
    %p72 = scmp.eq.s32.totalorder %s20, 0
    %p73 = por %p71, %p72
    %s74 = ssub.s32 %s14, %s21
    %p75 = scmp.eq.s32.totalorder %s74, 0
    %s77 = sadd.s32 %s76, 1
    %s78 = scalar_select %p75, %s76, %s77
    %p81 = pneg %p75
    %p82 = scmp.eq.s32.totalorder %s14, 1
    %p83 = por %p81, %p82
    %p84 = scmp.ne.s32.totalorder %s76, %s79
    %p85 = scmp.eq.s32.totalorder %s14, 0
    %p86 = por %p84, %p85
    %p87 = scmp.ne.s32.totalorder %s76, %s79
    %p88 = scmp.eq.s32.totalorder %s19, 1
    %p89 = por %p87, %p88
    %p90 = scmp.ne.s32.totalorder %s79, %s80
    %p91 = scmp.eq.s32.totalorder %s19, 0
    %p92 = por %p90, %p91
    %p93 = scmp.ne.s32.totalorder %s79, %s80
    %p94 = scmp.eq.s32.totalorder %s20, 1
    %p95 = por %p93, %p94
    %p97 = scmp.ne.s32.totalorder %s80, %s96
    %p98 = scmp.eq.s32.totalorder %s20, 0
    %p99 = por %p97, %p98
    %s101 = sadd.s32 %s100, 1
    %p104 = scmp.eq.s32.totalorder %s14, 1
    %p105 = scmp.ne.s32.totalorder %s100, %s102
    %p106 = scmp.eq.s32.totalorder %s14, 0
    %p107 = por %p105, %p106
    %p108 = scmp.ne.s32.totalorder %s100, %s102
    %p109 = scmp.eq.s32.totalorder %s19, 1
    %p110 = por %p108, %p109
    %p111 = scmp.ne.s32.totalorder %s102, %s103
    %p112 = scmp.eq.s32.totalorder %s19, 0
    %p113 = por %p111, %p112
    %p114 = scmp.ne.s32.totalorder %s102, %s103
    %p115 = scmp.eq.s32.totalorder %s20, 1
    %p116 = por %p114, %p115
    %p118 = scmp.ne.s32.totalorder %s103, %s117
    %p119 = scmp.eq.s32.totalorder %s20, 0
    %p120 = por %p118, %p119
    %s122 = sadd.s32 %s121, 1
    %p125 = scmp.eq.s32.totalorder %s14, 1
    %p126 = scmp.ne.s32.totalorder %s121, %s123
    %p127 = scmp.eq.s32.totalorder %s14, 0
    %p128 = por %p126, %p127
    %p129 = scmp.ne.s32.totalorder %s121, %s123
    %p130 = scmp.eq.s32.totalorder %s19, 1
    %p131 = por %p129, %p130
    %p132 = scmp.ne.s32.totalorder %s123, %s124
    %p133 = scmp.eq.s32.totalorder %s19, 0
    %p134 = por %p132, %p133
    %p135 = scmp.ne.s32.totalorder %s123, %s124
    %p136 = scmp.eq.s32.totalorder %s20, 1
    %p137 = por %p135, %p136
    %p139 = scmp.ne.s32.totalorder %s124, %s138
    %p140 = scmp.eq.s32.totalorder %s20, 0
    %p141 = por %p139, %p140
    %s143 = sadd.s32 %s142, 1
    %p146 = scmp.eq.s32.totalorder %s14, 1
    %p147 = scmp.ne.s32.totalorder %s142, %s144
    %p148 = scmp.eq.s32.totalorder %s14, 0
    %p149 = por %p147, %p148
    %p150 = scmp.ne.s32.totalorder %s142, %s144
    %p151 = scmp.eq.s32.totalorder %s19, 1
    %p152 = por %p150, %p151
    %p153 = scmp.ne.s32.totalorder %s144, %s145
    %p154 = scmp.eq.s32.totalorder %s19, 0
    %p155 = por %p153, %p154
    %p156 = scmp.ne.s32.totalorder %s144, %s145
    %p157 = scmp.eq.s32.totalorder %s20, 1
    %p158 = por %p156, %p157
    %p160 = scmp.ne.s32.totalorder %s145, %s159
    %p161 = scmp.eq.s32.totalorder %s20, 0
    %p162 = por %p160, %p161
    %s164 = sadd.s32 %s163, 1
    %p167 = scmp.eq.s32.totalorder %s14, 1
    %p168 = scmp.ne.s32.totalorder %s163, %s165
    %p169 = scmp.eq.s32.totalorder %s14, 0
    %p170 = por %p168, %p169
    %p171 = scmp.ne.s32.totalorder %s163, %s165
    %p172 = scmp.eq.s32.totalorder %s19, 1
    %p173 = por %p171, %p172
    %p174 = scmp.ne.s32.totalorder %s165, %s166
    %p175 = scmp.eq.s32.totalorder %s19, 0
    %p176 = por %p174, %p175
    %p177 = scmp.ne.s32.totalorder %s165, %s166
    %p178 = scmp.eq.s32.totalorder %s20, 1
    %p179 = por %p177, %p178
    %p181 = scmp.ne.s32.totalorder %s166, %s180
    %p182 = scmp.eq.s32.totalorder %s20, 0
    %p183 = por %p181, %p182
    %s185 = sadd.s32 %s184, 1
    %p188 = scmp.eq.s32.totalorder %s14, 1
    %p189 = scmp.ne.s32.totalorder %s184, %s186
    %p190 = scmp.eq.s32.totalorder %s14, 0
    %p191 = por %p189, %p190
    %p192 = scmp.ne.s32.totalorder %s184, %s186
    %p193 = scmp.eq.s32.totalorder %s19, 1
    %p194 = por %p192, %p193
    %p195 = scmp.ne.s32.totalorder %s186, %s187
    %p196 = scmp.eq.s32.totalorder %s19, 0
    %p197 = por %p195, %p196
    %p198 = scmp.ne.s32.totalorder %s186, %s187
    %p199 = scmp.eq.s32.totalorder %s20, 1
    %p200 = por %p198, %p199
    %p202 = scmp.ne.s32.totalorder %s187, %s201
    %p203 = scmp.eq.s32.totalorder %s20, 0
    %p204 = por %p202, %p203
    %s205 = ssub.s32 %s14, %s21
    %p206 = scmp.eq.s32.totalorder %s205, 0
    %s208 = sadd.s32 %s207, 1
    %s209 = scalar_select %p206, %s207, %s208
    %p212 = pneg %p206
    %p213 = scmp.eq.s32.totalorder %s14, 1
    %p214 = por %p212, %p213
    %p215 = scmp.ne.s32.totalorder %s207, %s210
    %p216 = scmp.eq.s32.totalorder %s14, 0
    %p217 = por %p215, %p216
    %p218 = scmp.ne.s32.totalorder %s207, %s210
    %p219 = scmp.eq.s32.totalorder %s19, 1
    %p220 = por %p218, %p219
    %p221 = scmp.ne.s32.totalorder %s210, %s211
    %p222 = scmp.eq.s32.totalorder %s19, 0
    %p223 = por %p221, %p222
    %p224 = scmp.ne.s32.totalorder %s210, %s211
    %p225 = scmp.eq.s32.totalorder %s20, 1
    %p226 = por %p224, %p225
    %p228 = scmp.ne.s32.totalorder %s211, %s227
    %p229 = scmp.eq.s32.totalorder %s20, 0
    %p230 = por %p228, %p229
    %p231 = scmp.le.s32.totalorder 1, %s14
    %p232 = scmp.lt.s32.totalorder %s14, 3
    %p233 = pnand %p231, %p232
    %p234 = pneg %p233
    // Predicated region
    $region9: #{inpainting_model_forward.1} parent=5 // pred_check
      _
    $region10: #{inpainting_model_forward.1} parent=5 // pred_check_branch
      %236 = sbr.rel (%p233) target = $region12
    $region11: #{inpainting_model_forward.1} parent=5 // pred_region
      %s237 = ssub.s32 %s14, 1
      // Predicated region
      $region13: #{inpainting_model_forward.1} parent=11 // pred_check
        %p238 = pneg %p113
      $region14: #{inpainting_model_forward.1} parent=11 // pred_check_branch
        %240 = sbr.rel (%p238) target = $region16
      $region15: #{inpainting_model_forward.1} parent=11 // pred_region
        _
      $region16: #{inpainting_model_forward.1} parent=11 // pred_fallthru
        _
      // Predicated region
      $region17: #{inpainting_model_forward.1} parent=11 // pred_check
        %p241 = pneg %p134
      $region18: #{inpainting_model_forward.1} parent=11 // pred_check_branch
        %243 = sbr.rel (%p241) target = $region20
      $region19: #{inpainting_model_forward.1} parent=11 // pred_region
        _
      $region20: #{inpainting_model_forward.1} parent=11 // pred_fallthru
        _
      // Predicated region
      $region21: #{inpainting_model_forward.1} parent=11 // pred_check
        %p244 = pneg %p155
      $region22: #{inpainting_model_forward.1} parent=11 // pred_check_branch
        %246 = sbr.rel (%p244) target = $region24
      $region23: #{inpainting_model_forward.1} parent=11 // pred_region
        _
      $region24: #{inpainting_model_forward.1} parent=11 // pred_fallthru
        _
      // Predicated region
      $region25: #{inpainting_model_forward.1} parent=11 // pred_check
        %p247 = pneg %p176
      $region26: #{inpainting_model_forward.1} parent=11 // pred_check_branch
        %249 = sbr.rel (%p247) target = $region28
      $region27: #{inpainting_model_forward.1} parent=11 // pred_region
        _
      $region28: #{inpainting_model_forward.1} parent=11 // pred_fallthru
        _
      // Predicated region
      $region29: #{inpainting_model_forward.1} parent=11 // pred_check
        %p250 = pneg %p197
      $region30: #{inpainting_model_forward.1} parent=11 // pred_check_branch
        %252 = sbr.rel (%p250) target = $region32
      $region31: #{inpainting_model_forward.1} parent=11 // pred_region
        _
      $region32: #{inpainting_model_forward.1} parent=11 // pred_fallthru
        _
    $region12: #{inpainting_model_forward.1} parent=5 // pred_fallthru
      _
    %p253 = scmp.lt.s32.totalorder %s14, 2
    // Predicated region
    $region33: #{inpainting_model_forward.1} parent=5 // pred_check
      %p254 = pneg %p253
    $region34: #{inpainting_model_forward.1} parent=5 // pred_check_branch
      %256 = sbr.rel (%p254) target = $region36
    $region35: #{inpainting_model_forward.1} parent=5 // pred_region
      // Predicated region
      $region37: #{inpainting_model_forward.1} parent=35 // pred_check
        %p257 = pneg %p34
      $region38: #{inpainting_model_forward.1} parent=35 // pred_check_branch
        %259 = sbr.rel (%p257) target = $region40
      $region39: #{inpainting_model_forward.1} parent=35 // pred_region
        %p260 = scmp.lt.s32.totalorder %s14, 1
        %s261 = scalar_select %p260, %s14, 1
        %s262 = smul.addr %s261, 8
        %s263 = smul.addr %s262, 4
        %s264 = scalar_lea.vmem %s0, %s263
      $region40: #{inpainting_model_forward.1} parent=35 // pred_fallthru
        _
      // Predicated region
      $region41: #{inpainting_model_forward.1} parent=35 // pred_check
        %p265 = pneg %p60
      $region42: #{inpainting_model_forward.1} parent=35 // pred_check_branch
        %267 = sbr.rel (%p265) target = $region44
      $region43: #{inpainting_model_forward.1} parent=35 // pred_region
        %p268 = scmp.lt.s32.totalorder %s14, 1
        %s269 = scalar_select %p268, %s14, 1
        %s270 = smul.addr %s269, 8
        %s271 = smul.addr %s270, 4
        %s272 = scalar_lea.vmem %s1, %s271
      $region44: #{inpainting_model_forward.1} parent=35 // pred_fallthru
        _
      // Predicated region
      $region45: #{inpainting_model_forward.1} parent=35 // pred_check
        %p273 = pneg %p86
      $region46: #{inpainting_model_forward.1} parent=35 // pred_check_branch
        %275 = sbr.rel (%p273) target = $region48
      $region47: #{inpainting_model_forward.1} parent=35 // pred_region
        %p276 = scmp.lt.s32.totalorder %s14, 1
        %s277 = scalar_select %p276, %s14, 1
        %s278 = smul.addr %s277, 8
        %s279 = scalar_lea.vmem %s2, %s278
      $region48: #{inpainting_model_forward.1} parent=35 // pred_fallthru
        _
    $region36: #{inpainting_model_forward.1} parent=5 // pred_fallthru
      _
    %p280 = scmp.le.s32.totalorder 1, %s14
    %p281 = scmp.lt.s32.totalorder %s14, 3
    %p282 = pnand %p280, %p281
    %p283 = pneg %p282
    // Predicated region
    $region49: #{inpainting_model_forward.1} parent=5 // pred_check
      _
    $region50: #{inpainting_model_forward.1} parent=5 // pred_check_branch
      %285 = sbr.rel (%p282) target = $region52
    $region51: #{inpainting_model_forward.1} parent=5 // pred_region
      %s286 = ssub.s32 %s14, 1
      %p287 = scmp.lt.s32.totalorder %s19, 1
      %s288 = scalar_select %p287, %s19, 1
      %s289 = smul.addr %s288, 8
      %s290 = smul.addr %s289, 4
      %s291 = scalar_lea.vmem %s0, %s290
      %p292 = pneg %p40
      %p293 = pneg %p37
      %p294 = scmp.lt.s32.totalorder %s19, 1
      %s295 = scalar_select %p294, %s19, 1
      %s296 = smul.addr %s295, 8
      %s297 = smul.addr %s296, 4
      %s298 = scalar_lea.vmem %s1, %s297
      %p299 = pneg %p66
      %p300 = pneg %p63
      %p301 = scmp.lt.s32.totalorder %s19, 1
      %s302 = scalar_select %p301, %s19, 1
      %s303 = smul.addr %s302, 8
      %s304 = scalar_lea.vmem %s2, %s303
      %p305 = pneg %p92
      %p306 = pneg %p89
      %p307 = pneg %p113
      %p308 = pneg %p110
      %p309 = pneg %p134
      %p310 = pneg %p131
      %p311 = pneg %p155
      %p312 = pneg %p152
      %p313 = pneg %p176
      %p314 = pneg %p173
      %p315 = pneg %p197
      %p316 = pneg %p194
      %p317 = pneg %p223
      %p318 = pneg %p220
      %p319 = scmp.lt.s32.totalorder %s19, 1
      %s320 = scalar_select %p319, %s19, 1
      %s321 = smul.addr %s320, 8
      %s322 = smul.addr %s321, 4
      %s323 = scalar_lea.vmem %s8, %s322
      %p324 = scmp.lt.s32.totalorder %s19, 1
      %s325 = scalar_select %p324, %s19, 1
      %s326 = smul.addr %s325, 8
      %s327 = smul.addr %s326, 4
      %s328 = scalar_lea.vmem %s0, %s327
      %p329 = scmp.lt.s32.totalorder %s19, 1
      %s330 = scalar_select %p329, %s19, 1
      %s331 = smul.addr %s330, 8
      %s332 = smul.addr %s331, 4
      %s333 = scalar_lea.vmem %s1, %s332
      %p334 = scmp.lt.s32.totalorder %s19, 1
      %s335 = scalar_select %p334, %s19, 1
      %s336 = smul.addr %s335, 8
      %s337 = scalar_lea.vmem %s2, %s336
      %p338 = scmp.lt.s32.totalorder %s19, 1
      %s339 = scalar_select %p338, %s19, 1
      %s340 = smul.addr %s339, 8
      %s341 = smul.addr %s340, 4
      %s342 = scalar_lea.vmem %s8, %s341
      %v344 = vld [vmem:[%s328] sm:$0x77]
      %v345 = vld [vmem:[%s328 + $0x8] sm:$0x77]
      %v346 = vld [vmem:[%s328 + $0x10] sm:$0x77]
      %v347 = vld [vmem:[%s328 + $0x18] sm:$0x77]
      %v348 = vld [vmem:[%s333] sm:$0x77]
      %v349 = vld [vmem:[%s333 + $0x8] sm:$0x77]
      %v350 = vld [vmem:[%s333 + $0x10] sm:$0x77]
      %v351 = vld [vmem:[%s333 + $0x18] sm:$0x77]
      %v352 = vld [vmem:[%s337] sm:$0xff]
      %v353 = vld [vmem:[%s3] sm:$0xff]
      %v354 = vld [vmem:[%s3 + $0x8] sm:$0xff]
      %v355 = vld [vmem:[%s3 + $0x10] sm:$0xff]
      %v356 = vld [vmem:[%s3 + $0x18] sm:$0xff]
      %v357 = vld [vmem:[%s3 + $0x20] sm:$0x11]
      %v358 = vld [vmem:[%s3 + $0x28] sm:$0x11]
      %v359 = vld [vmem:[%s3 + $0x30] sm:$0x11]
      %v360 = vld [vmem:[%s3 + $0x38] sm:$0x11]
      %365 = vst [vmem:[#allocation1] ss:$2 sm:$0xff] %v344
      %s366 = scalar_lea.vmem [#allocation1], 16
      %367 = vst [vmem:[%s366] ss:$2 sm:$0xff] %v345
      %s368 = scalar_lea.vmem [#allocation1], 32
      %369 = vst [vmem:[%s368] ss:$2 sm:$0xff] %v346
      %s370 = scalar_lea.vmem [#allocation1], 48
      %371 = vst [vmem:[%s370] ss:$2 sm:$0xff] %v347
      %v372 = vld.sshfl [vmem:[#allocation1] sm:$0xff pattern:$0x75316420]
      %v373 = vld.sshfl [vmem:[#allocation1 + $0x8] sm:$0xff pattern:$0x75316420]
      %v374 = vld.sshfl [vmem:[#allocation1 + $0x10] sm:$0xff pattern:$0x75316420]
      %v375 = vld.sshfl [vmem:[#allocation1 + $0x18] sm:$0xff pattern:$0x75316420]
      %v376 = vld.sshfl [vmem:[#allocation1 + $0x20] sm:$0xff pattern:$0x75316420]
      %v377 = vld.sshfl [vmem:[#allocation1 + $0x28] sm:$0xff pattern:$0x75316420]
      %v378 = vld.sshfl [vmem:[#allocation1 + $0x30] sm:$0xff pattern:$0x75316420]
      %v379 = vld.sshfl [vmem:[#allocation1 + $0x38] sm:$0xff pattern:$0x75316420]
      %v388 = vpack.c.bf16 %v373, %v372
      %v389 = vpack.c.bf16 %v375, %v374
      %v390 = vpack.c.bf16 %v377, %v376
      %v391 = vpack.c.bf16 %v379, %v378
      %v393 = vunpack.c.h.b16 %v391
      %v394 = vpack.c.b16 %v393, %v393
      %395 = vrot.lane.b32.xlu0 %v394, 17
      %v396 = vpop.permute.xlu0 %395
      %v400 = vunpack.c.l.b16 %v388
      %v401 = vunpack.c.h.b16 %v388
      %v402 = vunpack.c.l.b16 %v389
      %v403 = vunpack.c.h.b16 %v389
      %v404 = vunpack.c.l.b16 %v390
      %v405 = vunpack.c.h.b16 %v390
      %v406 = vunpack.c.l.b16 %v391
      %v407 = vpack.c.b16 %v400, %v400
      %v408 = vpack.c.b16 %v401, %v401
      %v409 = vpack.c.b16 %v402, %v402
      %v410 = vpack.c.b16 %v403, %v403
      %v411 = vpack.c.b16 %v404, %v404
      %v412 = vpack.c.b16 %v405, %v405
      %v413 = vpack.c.b16 %v406, %v406
      %414 = vrot.lane.b32.xlu0 %v407, 17
      %v415 = vpop.permute.xlu0 %414
      %416 = vrot.lane.b32.xlu0 %v408, 17
      %v417 = vpop.permute.xlu0 %416
      %418 = vrot.lane.b32.xlu0 %v409, 17
      %v419 = vpop.permute.xlu0 %418
      %420 = vrot.lane.b32.xlu0 %v410, 17
      %v421 = vpop.permute.xlu0 %420
      %422 = vrot.lane.b32.xlu0 %v411, 17
      %v423 = vpop.permute.xlu0 %422
      %424 = vrot.lane.b32.xlu0 %v412, 17
      %v425 = vpop.permute.xlu0 %424
      %426 = vrot.lane.b32.xlu0 %v413, 17
      %v427 = vpop.permute.xlu0 %426
      %vm428 = vcmask 138240
      %v429 = vsel %vm428, %v415, %v417
      %v430 = vsel %vm428, %v417, %v419
      %v431 = vsel %vm428, %v419, %v421
      %v432 = vsel %vm428, %v421, %v423
      %v433 = vsel %vm428, %v423, %v425
      %v434 = vsel %vm428, %v425, %v427
      %v435 = vsel %vm428, %v427, %v396
      %vm443 = vcmask 138240
      %v446 = vsel %vm443, %v396, %v415
      %v452 = vunpack.c.l.b16 %v353
      %v453 = vunpack.c.h.b16 %v353
      %v454 = vunpack.c.l.b16 %v354
      %v455 = vunpack.c.h.b16 %v354
      %v456 = vunpack.c.l.b16 %v355
      %v457 = vunpack.c.h.b16 %v355
      %v458 = vunpack.c.l.b16 %v356
      %v459 = vunpack.c.h.b16 %v356
      %v460 = vpack.c.b16 %v452, %v452
      %v461 = vpack.c.b16 %v453, %v453
      %v462 = vpack.c.b16 %v454, %v454
      %v463 = vpack.c.b16 %v455, %v455
      %v464 = vpack.c.b16 %v456, %v456
      %v465 = vpack.c.b16 %v457, %v457
      %v466 = vpack.c.b16 %v458, %v458
      %v467 = vpack.c.b16 %v459, %v459
      %v469 = vpack.i.b16 %v460, %v460
      %v471 = vperm.slane %v469, 0
      %v473 = vpack.i.b16 %v461, %v461
      %v475 = vperm.slane %v473, 0
      %v477 = vpack.i.b16 %v462, %v462
      %v479 = vperm.slane %v477, 0
      %v481 = vpack.i.b16 %v463, %v463
      %v483 = vperm.slane %v481, 0
      %v485 = vpack.i.b16 %v464, %v464
      %v487 = vperm.slane %v485, 0
      %v489 = vpack.i.b16 %v465, %v465
      %v491 = vperm.slane %v489, 0
      %v493 = vpack.i.b16 %v466, %v466
      %v495 = vperm.slane %v493, 0
      %v497 = vpack.i.b16 %v467, %v467
      %v499 = vperm.slane %v497, 0
      %v500 = vunpack.c.l.bf16 %v446
      %v501 = vunpack.c.l.bf16 %v429
      %v502 = vunpack.c.l.bf16 %v430
      %v503 = vunpack.c.l.bf16 %v431
      %v504 = vunpack.c.l.bf16 %v432
      %v505 = vunpack.c.l.bf16 %v433
      %v506 = vunpack.c.l.bf16 %v434
      %v507 = vunpack.c.l.bf16 %v435
      %v508 = vunpack.c.l.bf16 %v471
      %v509 = vunpack.c.l.bf16 %v475
      %v510 = vunpack.c.l.bf16 %v479
      %v511 = vunpack.c.l.bf16 %v483
      %v512 = vunpack.c.l.bf16 %v487
      %v513 = vunpack.c.l.bf16 %v491
      %v514 = vunpack.c.l.bf16 %v495
      %v515 = vunpack.c.l.bf16 %v499
      %v516 = vmul.f32 %v500, %v508
      %v517 = vmul.f32 %v501, %v509
      %v518 = vmul.f32 %v502, %v510
      %v519 = vmul.f32 %v503, %v511
      %v520 = vmul.f32 %v504, %v512
      %v521 = vmul.f32 %v505, %v513
      %v522 = vmul.f32 %v506, %v514
      %v523 = vmul.f32 %v507, %v515
      %v524 = vpack.c.bf16 %v517, %v516
      %v525 = vpack.c.bf16 %v519, %v518
      %v526 = vpack.c.bf16 %v521, %v520
      %v527 = vpack.c.bf16 %v523, %v522
      %528 = vrot.lane.b32.xlu0 %v394, 16
      %v529 = vpop.permute.xlu0 %528
      %530 = vrot.lane.b32.xlu0 %v407, 16
      %v531 = vpop.permute.xlu0 %530
      %532 = vrot.lane.b32.xlu0 %v408, 16
      %v533 = vpop.permute.xlu0 %532
      %534 = vrot.lane.b32.xlu0 %v409, 16
      %v535 = vpop.permute.xlu0 %534
      %536 = vrot.lane.b32.xlu0 %v410, 16
      %v537 = vpop.permute.xlu0 %536
      %538 = vrot.lane.b32.xlu0 %v411, 16
      %v539 = vpop.permute.xlu0 %538
      %540 = vrot.lane.b32.xlu0 %v412, 16
      %v541 = vpop.permute.xlu0 %540
      %542 = vrot.lane.b32.xlu0 %v413, 16
      %v543 = vpop.permute.xlu0 %542
      %vm544 = vcmask 130048
      %v545 = vsel %vm544, %v531, %v533
      %v546 = vsel %vm544, %v533, %v535
      %v547 = vsel %vm544, %v535, %v537
      %v548 = vsel %vm544, %v537, %v539
      %v549 = vsel %vm544, %v539, %v541
      %v550 = vsel %vm544, %v541, %v543
      %v551 = vsel %vm544, %v543, %v529
      %vm559 = vcmask 130048
      %v562 = vsel %vm559, %v529, %v531
      %v564 = vshrl.u32 %v460, 16
      %v565 = vpack.i.b16 %v564, %v564
      %v567 = vperm.slane %v565, 0
      %v568 = vshrl.u32 %v461, 16
      %v569 = vpack.i.b16 %v568, %v568
      %v571 = vperm.slane %v569, 0
      %v572 = vshrl.u32 %v462, 16
      %v573 = vpack.i.b16 %v572, %v572
      %v575 = vperm.slane %v573, 0
      %v576 = vshrl.u32 %v463, 16
      %v577 = vpack.i.b16 %v576, %v576
      %v579 = vperm.slane %v577, 0
      %v580 = vshrl.u32 %v464, 16
      %v581 = vpack.i.b16 %v580, %v580
      %v583 = vperm.slane %v581, 0
      %v584 = vshrl.u32 %v465, 16
      %v585 = vpack.i.b16 %v584, %v584
      %v587 = vperm.slane %v585, 0
      %v588 = vshrl.u32 %v466, 16
      %v589 = vpack.i.b16 %v588, %v588
      %v591 = vperm.slane %v589, 0
      %v592 = vshrl.u32 %v467, 16
      %v593 = vpack.i.b16 %v592, %v592
      %v595 = vperm.slane %v593, 0
      %v596 = vunpack.c.l.bf16 %v562
      %v597 = vunpack.c.l.bf16 %v545
      %v598 = vunpack.c.l.bf16 %v546
      %v599 = vunpack.c.l.bf16 %v547
      %v600 = vunpack.c.l.bf16 %v548
      %v601 = vunpack.c.l.bf16 %v549
      %v602 = vunpack.c.l.bf16 %v550
      %v603 = vunpack.c.l.bf16 %v551
      %v604 = vunpack.c.l.bf16 %v567
      %v605 = vunpack.c.l.bf16 %v571
      %v606 = vunpack.c.l.bf16 %v575
      %v607 = vunpack.c.l.bf16 %v579
      %v608 = vunpack.c.l.bf16 %v583
      %v609 = vunpack.c.l.bf16 %v587
      %v610 = vunpack.c.l.bf16 %v591
      %v611 = vunpack.c.l.bf16 %v595
      %v612 = vmul.f32 %v596, %v604
      %v613 = vmul.f32 %v597, %v605
      %v614 = vmul.f32 %v598, %v606
      %v615 = vmul.f32 %v599, %v607
      %v616 = vmul.f32 %v600, %v608
      %v617 = vmul.f32 %v601, %v609
      %v618 = vmul.f32 %v602, %v610
      %v619 = vmul.f32 %v603, %v611
      %v620 = vpack.c.bf16 %v613, %v612
      %v621 = vpack.c.bf16 %v615, %v614
      %v622 = vpack.c.bf16 %v617, %v616
      %v623 = vpack.c.bf16 %v619, %v618
      %624 = vrot.lane.b32.xlu0 %v394, 15
      %v625 = vpop.permute.xlu0 %624
      %626 = vrot.lane.b32.xlu0 %v407, 15
      %v627 = vpop.permute.xlu0 %626
      %628 = vrot.lane.b32.xlu0 %v408, 15
      %v629 = vpop.permute.xlu0 %628
      %630 = vrot.lane.b32.xlu0 %v409, 15
      %v631 = vpop.permute.xlu0 %630
      %632 = vrot.lane.b32.xlu0 %v410, 15
      %v633 = vpop.permute.xlu0 %632
      %634 = vrot.lane.b32.xlu0 %v411, 15
      %v635 = vpop.permute.xlu0 %634
      %636 = vrot.lane.b32.xlu0 %v412, 15
      %v637 = vpop.permute.xlu0 %636
      %638 = vrot.lane.b32.xlu0 %v413, 15
      %v639 = vpop.permute.xlu0 %638
      %vm640 = vcmask 121856
      %v641 = vsel %vm640, %v627, %v629
      %v642 = vsel %vm640, %v629, %v631
      %v643 = vsel %vm640, %v631, %v633
      %v644 = vsel %vm640, %v633, %v635
      %v645 = vsel %vm640, %v635, %v637
      %v646 = vsel %vm640, %v637, %v639
      %v647 = vsel %vm640, %v639, %v625
      %vm655 = vcmask 121856
      %v658 = vsel %vm655, %v625, %v627
      %v660 = vperm.slane %v469, 1
      %v661 = vperm.slane %v473, 1
      %v662 = vperm.slane %v477, 1
      %v663 = vperm.slane %v481, 1
      %v664 = vperm.slane %v485, 1
      %v665 = vperm.slane %v489, 1
      %v666 = vperm.slane %v493, 1
      %v667 = vperm.slane %v497, 1
      %v668 = vunpack.c.l.bf16 %v658
      %v669 = vunpack.c.l.bf16 %v641
      %v670 = vunpack.c.l.bf16 %v642
      %v671 = vunpack.c.l.bf16 %v643
      %v672 = vunpack.c.l.bf16 %v644
      %v673 = vunpack.c.l.bf16 %v645
      %v674 = vunpack.c.l.bf16 %v646
      %v675 = vunpack.c.l.bf16 %v647
      %v676 = vunpack.c.l.bf16 %v660
      %v677 = vunpack.c.l.bf16 %v661
      %v678 = vunpack.c.l.bf16 %v662
      %v679 = vunpack.c.l.bf16 %v663
      %v680 = vunpack.c.l.bf16 %v664
      %v681 = vunpack.c.l.bf16 %v665
      %v682 = vunpack.c.l.bf16 %v666
      %v683 = vunpack.c.l.bf16 %v667
      %v684 = vmul.f32 %v668, %v676
      %v685 = vmul.f32 %v669, %v677
      %v686 = vmul.f32 %v670, %v678
      %v687 = vmul.f32 %v671, %v679
      %v688 = vmul.f32 %v672, %v680
      %v689 = vmul.f32 %v673, %v681
      %v690 = vmul.f32 %v674, %v682
      %v691 = vmul.f32 %v675, %v683
      %v692 = vpack.c.bf16 %v685, %v684
      %v693 = vpack.c.bf16 %v687, %v686
      %v694 = vpack.c.bf16 %v689, %v688
      %v695 = vpack.c.bf16 %v691, %v690
      %696 = vrot.lane.b32.xlu0 %v394, 1
      %v697 = vpop.permute.xlu0 %696
      %698 = vrot.lane.b32.xlu0 %v407, 1
      %v699 = vpop.permute.xlu0 %698
      %700 = vrot.lane.b32.xlu0 %v408, 1
      %v701 = vpop.permute.xlu0 %700
      %702 = vrot.lane.b32.xlu0 %v409, 1
      %v703 = vpop.permute.xlu0 %702
      %704 = vrot.lane.b32.xlu0 %v410, 1
      %v705 = vpop.permute.xlu0 %704
      %706 = vrot.lane.b32.xlu0 %v411, 1
      %v707 = vpop.permute.xlu0 %706
      %708 = vrot.lane.b32.xlu0 %v412, 1
      %v709 = vpop.permute.xlu0 %708
      %710 = vrot.lane.b32.xlu0 %v413, 1
      %v711 = vpop.permute.xlu0 %710
      %vm712 = vcmask 7168
      %v713 = vsel %vm712, %v699, %v701
      %v714 = vsel %vm712, %v701, %v703
      %v715 = vsel %vm712, %v703, %v705
      %v716 = vsel %vm712, %v705, %v707
      %v717 = vsel %vm712, %v707, %v709
      %v718 = vsel %vm712, %v709, %v711
      %v719 = vsel %vm712, %v711, %v697
      %vm727 = vcmask 7168
      %v730 = vsel %vm727, %v697, %v699
      %v732 = vperm.slane %v565, 1
      %v733 = vperm.slane %v569, 1
      %v734 = vperm.slane %v573, 1
      %v735 = vperm.slane %v577, 1
      %v736 = vperm.slane %v581, 1
      %v737 = vperm.slane %v585, 1
      %v738 = vperm.slane %v589, 1
      %v739 = vperm.slane %v593, 1
      %v740 = vunpack.c.l.bf16 %v730
      %v741 = vunpack.c.l.bf16 %v713
      %v742 = vunpack.c.l.bf16 %v714
      %v743 = vunpack.c.l.bf16 %v715
      %v744 = vunpack.c.l.bf16 %v716
      %v745 = vunpack.c.l.bf16 %v717
      %v746 = vunpack.c.l.bf16 %v718
      %v747 = vunpack.c.l.bf16 %v719
      %v748 = vunpack.c.l.bf16 %v732
      %v749 = vunpack.c.l.bf16 %v733
      %v750 = vunpack.c.l.bf16 %v734
      %v751 = vunpack.c.l.bf16 %v735
      %v752 = vunpack.c.l.bf16 %v736
      %v753 = vunpack.c.l.bf16 %v737
      %v754 = vunpack.c.l.bf16 %v738
      %v755 = vunpack.c.l.bf16 %v739
      %v756 = vmul.f32 %v740, %v748
      %v757 = vmul.f32 %v741, %v749
      %v758 = vmul.f32 %v742, %v750
      %v759 = vmul.f32 %v743, %v751
      %v760 = vmul.f32 %v744, %v752
      %v761 = vmul.f32 %v745, %v753
      %v762 = vmul.f32 %v746, %v754
      %v763 = vmul.f32 %v747, %v755
      %v764 = vpack.c.bf16 %v757, %v756
      %v765 = vpack.c.bf16 %v759, %v758
      %v766 = vpack.c.bf16 %v761, %v760
      %v767 = vpack.c.bf16 %v763, %v762
      %v768 = vperm.slane %v469, 2
      %v769 = vperm.slane %v473, 2
      %v770 = vperm.slane %v477, 2
      %v771 = vperm.slane %v481, 2
      %v772 = vperm.slane %v485, 2
      %v773 = vperm.slane %v489, 2
      %v774 = vperm.slane %v493, 2
      %v775 = vperm.slane %v497, 2
      %v776 = vunpack.c.l.bf16 %v388
      %v777 = vunpack.c.h.bf16 %v388
      %v778 = vunpack.c.l.bf16 %v389
      %v779 = vunpack.c.h.bf16 %v389
      %v780 = vunpack.c.l.bf16 %v390
      %v781 = vunpack.c.h.bf16 %v390
      %v782 = vunpack.c.l.bf16 %v391
      %v783 = vunpack.c.h.bf16 %v391
      %v784 = vunpack.c.l.bf16 %v768
      %v785 = vunpack.c.l.bf16 %v769
      %v786 = vunpack.c.l.bf16 %v770
      %v787 = vunpack.c.l.bf16 %v771
      %v788 = vunpack.c.l.bf16 %v772
      %v789 = vunpack.c.l.bf16 %v773
      %v790 = vunpack.c.l.bf16 %v774
      %v791 = vunpack.c.l.bf16 %v775
      %v792 = vmul.f32 %v776, %v784
      %v793 = vmul.f32 %v777, %v785
      %v794 = vmul.f32 %v778, %v786
      %v795 = vmul.f32 %v779, %v787
      %v796 = vmul.f32 %v780, %v788
      %v797 = vmul.f32 %v781, %v789
      %v798 = vmul.f32 %v782, %v790
      %v799 = vmul.f32 %v783, %v791
      %v800 = vpack.c.bf16 %v793, %v792
      %v801 = vpack.c.bf16 %v795, %v794
      %v802 = vpack.c.bf16 %v797, %v796
      %v803 = vpack.c.bf16 %v799, %v798
      %804 = vrot.lane.b32.xlu0 %v407, 127
      %v805 = vpop.permute.xlu0 %804
      %806 = vrot.lane.b32.xlu0 %v408, 127
      %v807 = vpop.permute.xlu0 %806
      %808 = vrot.lane.b32.xlu0 %v409, 127
      %v809 = vpop.permute.xlu0 %808
      %810 = vrot.lane.b32.xlu0 %v410, 127
      %v811 = vpop.permute.xlu0 %810
      %812 = vrot.lane.b32.xlu0 %v411, 127
      %v813 = vpop.permute.xlu0 %812
      %814 = vrot.lane.b32.xlu0 %v412, 127
      %v815 = vpop.permute.xlu0 %814
      %816 = vrot.lane.b32.xlu0 %v413, 127
      %v817 = vpop.permute.xlu0 %816
      %818 = vrot.lane.b32.xlu0 %v394, 127
      %v819 = vpop.permute.xlu0 %818
      %vm820 = vcmask 1039360
      %v821 = vsel %vm820, %v805, %v807
      %v822 = vsel %vm820, %v807, %v809
      %v823 = vsel %vm820, %v809, %v811
      %v824 = vsel %vm820, %v811, %v813
      %v825 = vsel %vm820, %v813, %v815
      %v826 = vsel %vm820, %v815, %v817
      %v827 = vsel %vm820, %v817, %v819
      %vm835 = vcmask 1039360
      %v838 = vsel %vm835, %v819, %v805
      %v840 = vperm.slane %v565, 2
      %v841 = vperm.slane %v569, 2
      %v842 = vperm.slane %v573, 2
      %v843 = vperm.slane %v577, 2
      %v844 = vperm.slane %v581, 2
      %v845 = vperm.slane %v585, 2
      %v846 = vperm.slane %v589, 2
      %v847 = vperm.slane %v593, 2
      %v848 = vunpack.c.l.bf16 %v821
      %v849 = vunpack.c.l.bf16 %v822
      %v850 = vunpack.c.l.bf16 %v823
      %v851 = vunpack.c.l.bf16 %v824
      %v852 = vunpack.c.l.bf16 %v825
      %v853 = vunpack.c.l.bf16 %v826
      %v854 = vunpack.c.l.bf16 %v827
      %v855 = vunpack.c.l.bf16 %v838
      %v856 = vunpack.c.l.bf16 %v840
      %v857 = vunpack.c.l.bf16 %v841
      %v858 = vunpack.c.l.bf16 %v842
      %v859 = vunpack.c.l.bf16 %v843
      %v860 = vunpack.c.l.bf16 %v844
      %v861 = vunpack.c.l.bf16 %v845
      %v862 = vunpack.c.l.bf16 %v846
      %v863 = vunpack.c.l.bf16 %v847
      %v864 = vmul.f32 %v848, %v856
      %v865 = vmul.f32 %v849, %v857
      %v866 = vmul.f32 %v850, %v858
      %v867 = vmul.f32 %v851, %v859
      %v868 = vmul.f32 %v852, %v860
      %v869 = vmul.f32 %v853, %v861
      %v870 = vmul.f32 %v854, %v862
      %v871 = vmul.f32 %v855, %v863
      %v872 = vpack.c.bf16 %v865, %v864
      %v873 = vpack.c.bf16 %v867, %v866
      %v874 = vpack.c.bf16 %v869, %v868
      %v875 = vpack.c.bf16 %v871, %v870
      %876 = vrot.lane.b32.xlu0 %v407, 113
      %v877 = vpop.permute.xlu0 %876
      %878 = vrot.lane.b32.xlu0 %v408, 113
      %v879 = vpop.permute.xlu0 %878
      %880 = vrot.lane.b32.xlu0 %v409, 113
      %v881 = vpop.permute.xlu0 %880
      %882 = vrot.lane.b32.xlu0 %v410, 113
      %v883 = vpop.permute.xlu0 %882
      %884 = vrot.lane.b32.xlu0 %v411, 113
      %v885 = vpop.permute.xlu0 %884
      %886 = vrot.lane.b32.xlu0 %v412, 113
      %v887 = vpop.permute.xlu0 %886
      %888 = vrot.lane.b32.xlu0 %v413, 113
      %v889 = vpop.permute.xlu0 %888
      %890 = vrot.lane.b32.xlu0 %v394, 113
      %v891 = vpop.permute.xlu0 %890
      %vm892 = vcmask 924672
      %v893 = vsel %vm892, %v877, %v879
      %v894 = vsel %vm892, %v879, %v881
      %v895 = vsel %vm892, %v881, %v883
      %v896 = vsel %vm892, %v883, %v885
      %v897 = vsel %vm892, %v885, %v887
      %v898 = vsel %vm892, %v887, %v889
      %v899 = vsel %vm892, %v889, %v891
      %vm907 = vcmask 924672
      %v910 = vsel %vm907, %v891, %v877
      %v912 = vperm.slane %v469, 3
      %v913 = vperm.slane %v473, 3
      %v914 = vperm.slane %v477, 3
      %v915 = vperm.slane %v481, 3
      %v916 = vperm.slane %v485, 3
      %v917 = vperm.slane %v489, 3
      %v918 = vperm.slane %v493, 3
      %v919 = vperm.slane %v497, 3
      %v920 = vunpack.c.l.bf16 %v893
      %v921 = vunpack.c.l.bf16 %v894
      %v922 = vunpack.c.l.bf16 %v895
      %v923 = vunpack.c.l.bf16 %v896
      %v924 = vunpack.c.l.bf16 %v897
      %v925 = vunpack.c.l.bf16 %v898
      %v926 = vunpack.c.l.bf16 %v899
      %v927 = vunpack.c.l.bf16 %v910
      %v928 = vunpack.c.l.bf16 %v912
      %v929 = vunpack.c.l.bf16 %v913
      %v930 = vunpack.c.l.bf16 %v914
      %v931 = vunpack.c.l.bf16 %v915
      %v932 = vunpack.c.l.bf16 %v916
      %v933 = vunpack.c.l.bf16 %v917
      %v934 = vunpack.c.l.bf16 %v918
      %v935 = vunpack.c.l.bf16 %v919
      %v936 = vmul.f32 %v920, %v928
      %v937 = vmul.f32 %v921, %v929
      %v938 = vmul.f32 %v922, %v930
      %v939 = vmul.f32 %v923, %v931
      %v940 = vmul.f32 %v924, %v932
      %v941 = vmul.f32 %v925, %v933
      %v942 = vmul.f32 %v926, %v934
      %v943 = vmul.f32 %v927, %v935
      %v944 = vpack.c.bf16 %v937, %v936
      %v945 = vpack.c.bf16 %v939, %v938
      %v946 = vpack.c.bf16 %v941, %v940
      %v947 = vpack.c.bf16 %v943, %v942
      %948 = vrot.lane.b32.xlu0 %v407, 112
      %v949 = vpop.permute.xlu0 %948
      %950 = vrot.lane.b32.xlu0 %v408, 112
      %v951 = vpop.permute.xlu0 %950
      %952 = vrot.lane.b32.xlu0 %v409, 112
      %v953 = vpop.permute.xlu0 %952
      %954 = vrot.lane.b32.xlu0 %v410, 112
      %v955 = vpop.permute.xlu0 %954
      %956 = vrot.lane.b32.xlu0 %v411, 112
      %v957 = vpop.permute.xlu0 %956
      %958 = vrot.lane.b32.xlu0 %v412, 112
      %v959 = vpop.permute.xlu0 %958
      %960 = vrot.lane.b32.xlu0 %v413, 112
      %v961 = vpop.permute.xlu0 %960
      %962 = vrot.lane.b32.xlu0 %v394, 112
      %v963 = vpop.permute.xlu0 %962
      %vm964 = vcmask 916480
      %v965 = vsel %vm964, %v949, %v951
      %v966 = vsel %vm964, %v951, %v953
      %v967 = vsel %vm964, %v953, %v955
      %v968 = vsel %vm964, %v955, %v957
      %v969 = vsel %vm964, %v957, %v959
      %v970 = vsel %vm964, %v959, %v961
      %v971 = vsel %vm964, %v961, %v963
      %vm979 = vcmask 916480
      %v982 = vsel %vm979, %v963, %v949
      %v984 = vperm.slane %v565, 3
      %v985 = vperm.slane %v569, 3
      %v986 = vperm.slane %v573, 3
      %v987 = vperm.slane %v577, 3
      %v988 = vperm.slane %v581, 3
      %v989 = vperm.slane %v585, 3
      %v990 = vperm.slane %v589, 3
      %v991 = vperm.slane %v593, 3
      %v992 = vunpack.c.l.bf16 %v965
      %v993 = vunpack.c.l.bf16 %v966
      %v994 = vunpack.c.l.bf16 %v967
      %v995 = vunpack.c.l.bf16 %v968
      %v996 = vunpack.c.l.bf16 %v969
      %v997 = vunpack.c.l.bf16 %v970
      %v998 = vunpack.c.l.bf16 %v971
      %v999 = vunpack.c.l.bf16 %v982
      %v1000 = vunpack.c.l.bf16 %v984
      %v1001 = vunpack.c.l.bf16 %v985
      %v1002 = vunpack.c.l.bf16 %v986
      %v1003 = vunpack.c.l.bf16 %v987
      %v1004 = vunpack.c.l.bf16 %v988
      %v1005 = vunpack.c.l.bf16 %v989
      %v1006 = vunpack.c.l.bf16 %v990
      %v1007 = vunpack.c.l.bf16 %v991
      %v1008 = vmul.f32 %v992, %v1000
      %v1009 = vmul.f32 %v993, %v1001
      %v1010 = vmul.f32 %v994, %v1002
      %v1011 = vmul.f32 %v995, %v1003
      %v1012 = vmul.f32 %v996, %v1004
      %v1013 = vmul.f32 %v997, %v1005
      %v1014 = vmul.f32 %v998, %v1006
      %v1015 = vmul.f32 %v999, %v1007
      %v1016 = vpack.c.bf16 %v1009, %v1008
      %v1017 = vpack.c.bf16 %v1011, %v1010
      %v1018 = vpack.c.bf16 %v1013, %v1012
      %v1019 = vpack.c.bf16 %v1015, %v1014
      %1020 = vrot.lane.b32.xlu0 %v407, 111
      %v1021 = vpop.permute.xlu0 %1020
      %1022 = vrot.lane.b32.xlu0 %v408, 111
      %v1023 = vpop.permute.xlu0 %1022
      %1024 = vrot.lane.b32.xlu0 %v409, 111
      %v1025 = vpop.permute.xlu0 %1024
      %1026 = vrot.lane.b32.xlu0 %v410, 111
      %v1027 = vpop.permute.xlu0 %1026
      %1028 = vrot.lane.b32.xlu0 %v411, 111
      %v1029 = vpop.permute.xlu0 %1028
      %1030 = vrot.lane.b32.xlu0 %v412, 111
      %v1031 = vpop.permute.xlu0 %1030
      %1032 = vrot.lane.b32.xlu0 %v413, 111
      %v1033 = vpop.permute.xlu0 %1032
      %1034 = vrot.lane.b32.xlu0 %v394, 111
      %v1035 = vpop.permute.xlu0 %1034
      %vm1036 = vcmask 908288
      %v1037 = vsel %vm1036, %v1021, %v1023
      %v1038 = vsel %vm1036, %v1023, %v1025
      %v1039 = vsel %vm1036, %v1025, %v1027
      %v1040 = vsel %vm1036, %v1027, %v1029
      %v1041 = vsel %vm1036, %v1029, %v1031
      %v1042 = vsel %vm1036, %v1031, %v1033
      %v1043 = vsel %vm1036, %v1033, %v1035
      %vm1051 = vcmask 908288
      %v1054 = vsel %vm1051, %v1035, %v1021
      %v1060 = vunpack.c.l.b16 %v357
      %v1061 = vunpack.c.h.b16 %v357
      %v1062 = vunpack.c.l.b16 %v358
      %v1063 = vunpack.c.h.b16 %v358
      %v1064 = vunpack.c.l.b16 %v359
      %v1065 = vunpack.c.h.b16 %v359
      %v1066 = vunpack.c.l.b16 %v360
      %v1067 = vunpack.c.h.b16 %v360
      %v1068 = vpack.c.b16 %v1060, %v1060
      %v1069 = vpack.c.b16 %v1061, %v1061
      %v1070 = vpack.c.b16 %v1062, %v1062
      %v1071 = vpack.c.b16 %v1063, %v1063
      %v1072 = vpack.c.b16 %v1064, %v1064
      %v1073 = vpack.c.b16 %v1065, %v1065
      %v1074 = vpack.c.b16 %v1066, %v1066
      %v1075 = vpack.c.b16 %v1067, %v1067
      %v1077 = vpack.i.b16 %v1068, %v1068
      %v1079 = vperm.slane %v1077, 0
      %v1081 = vpack.i.b16 %v1069, %v1069
      %v1083 = vperm.slane %v1081, 0
      %v1085 = vpack.i.b16 %v1070, %v1070
      %v1087 = vperm.slane %v1085, 0
      %v1089 = vpack.i.b16 %v1071, %v1071
      %v1091 = vperm.slane %v1089, 0
      %v1093 = vpack.i.b16 %v1072, %v1072
      %v1095 = vperm.slane %v1093, 0
      %v1097 = vpack.i.b16 %v1073, %v1073
      %v1099 = vperm.slane %v1097, 0
      %v1101 = vpack.i.b16 %v1074, %v1074
      %v1103 = vperm.slane %v1101, 0
      %v1105 = vpack.i.b16 %v1075, %v1075
      %v1107 = vperm.slane %v1105, 0
      %v1108 = vunpack.c.l.bf16 %v1037
      %v1109 = vunpack.c.l.bf16 %v1038
      %v1110 = vunpack.c.l.bf16 %v1039
      %v1111 = vunpack.c.l.bf16 %v1040
      %v1112 = vunpack.c.l.bf16 %v1041
      %v1113 = vunpack.c.l.bf16 %v1042
      %v1114 = vunpack.c.l.bf16 %v1043
      %v1115 = vunpack.c.l.bf16 %v1054
      %v1116 = vunpack.c.l.bf16 %v1079
      %v1117 = vunpack.c.l.bf16 %v1083
      %v1118 = vunpack.c.l.bf16 %v1087
      %v1119 = vunpack.c.l.bf16 %v1091
      %v1120 = vunpack.c.l.bf16 %v1095
      %v1121 = vunpack.c.l.bf16 %v1099
      %v1122 = vunpack.c.l.bf16 %v1103
      %v1123 = vunpack.c.l.bf16 %v1107
      %v1124 = vmul.f32 %v1108, %v1116
      %v1125 = vmul.f32 %v1109, %v1117
      %v1126 = vmul.f32 %v1110, %v1118
      %v1127 = vmul.f32 %v1111, %v1119
      %v1128 = vmul.f32 %v1112, %v1120
      %v1129 = vmul.f32 %v1113, %v1121
      %v1130 = vmul.f32 %v1114, %v1122
      %v1131 = vmul.f32 %v1115, %v1123
      %v1132 = vpack.c.bf16 %v1125, %v1124
      %v1133 = vpack.c.bf16 %v1127, %v1126
      %v1134 = vpack.c.bf16 %v1129, %v1128
      %v1135 = vpack.c.bf16 %v1131, %v1130
      %v1140 = vunpack.c.l.b16 %v524
      %v1141 = vunpack.c.h.b16 %v524
      %v1142 = vunpack.c.l.b16 %v525
      %v1143 = vunpack.c.h.b16 %v525
      %v1144 = vunpack.c.l.b16 %v526
      %v1145 = vunpack.c.h.b16 %v526
      %v1146 = vunpack.c.l.b16 %v527
      %v1147 = vunpack.c.h.b16 %v527
      %v1148 = vpack.c.b16 %v1140, %v1140
      %v1149 = vpack.c.b16 %v1141, %v1141
      %v1150 = vpack.c.b16 %v1142, %v1142
      %v1151 = vpack.c.b16 %v1143, %v1143
      %v1152 = vpack.c.b16 %v1144, %v1144
      %v1153 = vpack.c.b16 %v1145, %v1145
      %v1154 = vpack.c.b16 %v1146, %v1146
      %v1155 = vpack.c.b16 %v1147, %v1147
      %v1168 = vunpack.c.l.b16 %v620
      %v1169 = vunpack.c.h.b16 %v620
      %v1170 = vunpack.c.l.b16 %v621
      %v1171 = vunpack.c.h.b16 %v621
      %v1172 = vunpack.c.l.b16 %v622
      %v1173 = vunpack.c.h.b16 %v622
      %v1174 = vunpack.c.l.b16 %v623
      %v1175 = vunpack.c.h.b16 %v623
      %v1176 = vpack.c.b16 %v1168, %v1168
      %v1177 = vpack.c.b16 %v1169, %v1169
      %v1178 = vpack.c.b16 %v1170, %v1170
      %v1179 = vpack.c.b16 %v1171, %v1171
      %v1180 = vpack.c.b16 %v1172, %v1172
      %v1181 = vpack.c.b16 %v1173, %v1173
      %v1182 = vpack.c.b16 %v1174, %v1174
      %v1183 = vpack.c.b16 %v1175, %v1175
      %v1185 = vshrl.u32 %v1176, 16
      %v1187 = vrot.slane %v1185, 6
      %v1188 = vshll.u32 %v1176, 16
      %v1190 = vrot.slane %v1188, 7
      %v1191 = vor.u32 %v1187, %v1190
      %v1193 = vshrl.u32 %v1177, 16
      %v1195 = vrot.slane %v1193, 6
      %v1196 = vshll.u32 %v1177, 16
      %v1198 = vrot.slane %v1196, 7
      %v1199 = vor.u32 %v1195, %v1198
      %v1201 = vshrl.u32 %v1178, 16
      %v1203 = vrot.slane %v1201, 6
      %v1204 = vshll.u32 %v1178, 16
      %v1206 = vrot.slane %v1204, 7
      %v1207 = vor.u32 %v1203, %v1206
      %v1209 = vshrl.u32 %v1179, 16
      %v1211 = vrot.slane %v1209, 6
      %v1212 = vshll.u32 %v1179, 16
      %v1214 = vrot.slane %v1212, 7
      %v1215 = vor.u32 %v1211, %v1214
      %v1217 = vshrl.u32 %v1180, 16
      %v1219 = vrot.slane %v1217, 6
      %v1220 = vshll.u32 %v1180, 16
      %v1222 = vrot.slane %v1220, 7
      %v1223 = vor.u32 %v1219, %v1222
      %v1225 = vshrl.u32 %v1181, 16
      %v1227 = vrot.slane %v1225, 6
      %v1228 = vshll.u32 %v1181, 16
      %v1230 = vrot.slane %v1228, 7
      %v1231 = vor.u32 %v1227, %v1230
      %v1233 = vshrl.u32 %v1182, 16
      %v1235 = vrot.slane %v1233, 6
      %v1236 = vshll.u32 %v1182, 16
      %v1238 = vrot.slane %v1236, 7
      %v1239 = vor.u32 %v1235, %v1238
      %v1241 = vshrl.u32 %v1183, 16
      %v1243 = vrot.slane %v1241, 6
      %v1244 = vshll.u32 %v1183, 16
      %v1246 = vrot.slane %v1244, 7
      %v1247 = vor.u32 %v1243, %v1246
      %v1260 = vunpack.c.l.b16 %v692
      %v1261 = vunpack.c.h.b16 %v692
      %v1262 = vunpack.c.l.b16 %v693
      %v1263 = vunpack.c.h.b16 %v693
      %v1264 = vunpack.c.l.b16 %v694
      %v1265 = vunpack.c.h.b16 %v694
      %v1266 = vunpack.c.l.b16 %v695
      %v1267 = vunpack.c.h.b16 %v695
      %v1268 = vpack.c.b16 %v1260, %v1260
      %v1269 = vpack.c.b16 %v1261, %v1261
      %v1270 = vpack.c.b16 %v1262, %v1262
      %v1271 = vpack.c.b16 %v1263, %v1263
      %v1272 = vpack.c.b16 %v1264, %v1264
      %v1273 = vpack.c.b16 %v1265, %v1265
      %v1274 = vpack.c.b16 %v1266, %v1266
      %v1275 = vpack.c.b16 %v1267, %v1267
      %v1276 = vrot.slane %v1268, 5
      %v1277 = vrot.slane %v1269, 5
      %v1278 = vrot.slane %v1270, 5
      %v1279 = vrot.slane %v1271, 5
      %v1280 = vrot.slane %v1272, 5
      %v1281 = vrot.slane %v1273, 5
      %v1282 = vrot.slane %v1274, 5
      %v1283 = vrot.slane %v1275, 5
      %v1288 = vunpack.c.l.b16 %v764
      %v1289 = vunpack.c.h.b16 %v764
      %v1290 = vunpack.c.l.b16 %v765
      %v1291 = vunpack.c.h.b16 %v765
      %v1292 = vunpack.c.l.b16 %v766
      %v1293 = vunpack.c.h.b16 %v766
      %v1294 = vunpack.c.l.b16 %v767
      %v1295 = vunpack.c.h.b16 %v767
      %v1296 = vpack.c.b16 %v1288, %v1288
      %v1297 = vpack.c.b16 %v1289, %v1289
      %v1298 = vpack.c.b16 %v1290, %v1290
      %v1299 = vpack.c.b16 %v1291, %v1291
      %v1300 = vpack.c.b16 %v1292, %v1292
      %v1301 = vpack.c.b16 %v1293, %v1293
      %v1302 = vpack.c.b16 %v1294, %v1294
      %v1303 = vpack.c.b16 %v1295, %v1295
      %v1305 = vshrl.u32 %v1296, 16
      %v1307 = vrot.slane %v1305, 3
      %v1308 = vshll.u32 %v1296, 16
      %v1310 = vrot.slane %v1308, 4
      %v1311 = vor.u32 %v1307, %v1310
      %v1313 = vshrl.u32 %v1297, 16
      %v1315 = vrot.slane %v1313, 3
      %v1316 = vshll.u32 %v1297, 16
      %v1318 = vrot.slane %v1316, 4
      %v1319 = vor.u32 %v1315, %v1318
      %v1321 = vshrl.u32 %v1298, 16
      %v1323 = vrot.slane %v1321, 3
      %v1324 = vshll.u32 %v1298, 16
      %v1326 = vrot.slane %v1324, 4
      %v1327 = vor.u32 %v1323, %v1326
      %v1329 = vshrl.u32 %v1299, 16
      %v1331 = vrot.slane %v1329, 3
      %v1332 = vshll.u32 %v1299, 16
      %v1334 = vrot.slane %v1332, 4
      %v1335 = vor.u32 %v1331, %v1334
      %v1337 = vshrl.u32 %v1300, 16
      %v1339 = vrot.slane %v1337, 3
      %v1340 = vshll.u32 %v1300, 16
      %v1342 = vrot.slane %v1340, 4
      %v1343 = vor.u32 %v1339, %v1342
      %v1345 = vshrl.u32 %v1301, 16
      %v1347 = vrot.slane %v1345, 3
      %v1348 = vshll.u32 %v1301, 16
      %v1350 = vrot.slane %v1348, 4
      %v1351 = vor.u32 %v1347, %v1350
      %v1353 = vshrl.u32 %v1302, 16
      %v1355 = vrot.slane %v1353, 3
      %v1356 = vshll.u32 %v1302, 16
      %v1358 = vrot.slane %v1356, 4
      %v1359 = vor.u32 %v1355, %v1358
      %v1361 = vshrl.u32 %v1303, 16
      %v1363 = vrot.slane %v1361, 3
      %v1364 = vshll.u32 %v1303, 16
      %v1366 = vrot.slane %v1364, 4
      %v1367 = vor.u32 %v1363, %v1366
      %v1380 = vunpack.c.l.b16 %v800
      %v1381 = vunpack.c.h.b16 %v800
      %v1382 = vunpack.c.l.b16 %v801
      %v1383 = vunpack.c.h.b16 %v801
      %v1384 = vunpack.c.l.b16 %v802
      %v1385 = vunpack.c.h.b16 %v802
      %v1386 = vunpack.c.l.b16 %v803
      %v1387 = vunpack.c.h.b16 %v803
      %v1388 = vpack.c.b16 %v1380, %v1380
      %v1389 = vpack.c.b16 %v1381, %v1381
      %v1390 = vpack.c.b16 %v1382, %v1382
      %v1391 = vpack.c.b16 %v1383, %v1383
      %v1392 = vpack.c.b16 %v1384, %v1384
      %v1393 = vpack.c.b16 %v1385, %v1385
      %v1394 = vpack.c.b16 %v1386, %v1386
      %v1395 = vpack.c.b16 %v1387, %v1387
      %v1396 = vrot.slane %v1388, 2
      %v1397 = vrot.slane %v1389, 2
      %v1398 = vrot.slane %v1390, 2
      %v1399 = vrot.slane %v1391, 2
      %v1400 = vrot.slane %v1392, 2
      %v1401 = vrot.slane %v1393, 2
      %v1402 = vrot.slane %v1394, 2
      %v1403 = vrot.slane %v1395, 2
      %v1408 = vunpack.c.l.b16 %v872
      %v1409 = vunpack.c.h.b16 %v872
      %v1410 = vunpack.c.l.b16 %v873
      %v1411 = vunpack.c.h.b16 %v873
      %v1412 = vunpack.c.l.b16 %v874
      %v1413 = vunpack.c.h.b16 %v874
      %v1414 = vunpack.c.l.b16 %v875
      %v1415 = vunpack.c.h.b16 %v875
      %v1416 = vpack.c.b16 %v1408, %v1408
      %v1417 = vpack.c.b16 %v1409, %v1409
      %v1418 = vpack.c.b16 %v1410, %v1410
      %v1419 = vpack.c.b16 %v1411, %v1411
      %v1420 = vpack.c.b16 %v1412, %v1412
      %v1421 = vpack.c.b16 %v1413, %v1413
      %v1422 = vpack.c.b16 %v1414, %v1414
      %v1423 = vpack.c.b16 %v1415, %v1415
      %v1425 = vshll.u32 %v1416, 16
      %v1427 = vrot.slane %v1425, 1
      %v1429 = vshll.u32 %v1417, 16
      %v1431 = vrot.slane %v1429, 1
      %v1433 = vshll.u32 %v1418, 16
      %v1435 = vrot.slane %v1433, 1
      %v1437 = vshll.u32 %v1419, 16
      %v1439 = vrot.slane %v1437, 1
      %v1441 = vshll.u32 %v1420, 16
      %v1443 = vrot.slane %v1441, 1
      %v1445 = vshll.u32 %v1421, 16
      %v1447 = vrot.slane %v1445, 1
      %v1449 = vshll.u32 %v1422, 16
      %v1451 = vrot.slane %v1449, 1
      %v1453 = vshll.u32 %v1423, 16
      %v1455 = vrot.slane %v1453, 1
      %v1456 = vshrl.u32 %v1416, 16
      %v1458 = vor.u32 %v1456, %v1427
      %v1459 = vshrl.u32 %v1417, 16
      %v1461 = vor.u32 %v1459, %v1431
      %v1462 = vshrl.u32 %v1418, 16
      %v1464 = vor.u32 %v1462, %v1435
      %v1465 = vshrl.u32 %v1419, 16
      %v1467 = vor.u32 %v1465, %v1439
      %v1468 = vshrl.u32 %v1420, 16
      %v1470 = vor.u32 %v1468, %v1443
      %v1471 = vshrl.u32 %v1421, 16
      %v1473 = vor.u32 %v1471, %v1447
      %v1474 = vshrl.u32 %v1422, 16
      %v1476 = vor.u32 %v1474, %v1451
      %v1477 = vshrl.u32 %v1423, 16
      %v1479 = vor.u32 %v1477, %v1455
      %v1492 = vunpack.c.l.b16 %v944
      %v1493 = vunpack.c.h.b16 %v944
      %v1494 = vunpack.c.l.b16 %v945
      %v1495 = vunpack.c.h.b16 %v945
      %v1496 = vunpack.c.l.b16 %v946
      %v1497 = vunpack.c.h.b16 %v946
      %v1498 = vunpack.c.l.b16 %v947
      %v1499 = vunpack.c.h.b16 %v947
      %v1500 = vpack.c.b16 %v1492, %v1492
      %v1501 = vpack.c.b16 %v1493, %v1493
      %v1502 = vpack.c.b16 %v1494, %v1494
      %v1503 = vpack.c.b16 %v1495, %v1495
      %v1504 = vpack.c.b16 %v1496, %v1496
      %v1505 = vpack.c.b16 %v1497, %v1497
      %v1506 = vpack.c.b16 %v1498, %v1498
      %v1507 = vpack.c.b16 %v1499, %v1499
      %v1508 = vrot.slane %v1500, 7
      %v1509 = vrot.slane %v1501, 7
      %v1510 = vrot.slane %v1502, 7
      %v1511 = vrot.slane %v1503, 7
      %v1512 = vrot.slane %v1504, 7
      %v1513 = vrot.slane %v1505, 7
      %v1514 = vrot.slane %v1506, 7
      %v1515 = vrot.slane %v1507, 7
      %v1520 = vunpack.c.l.b16 %v1016
      %v1521 = vunpack.c.h.b16 %v1016
      %v1522 = vunpack.c.l.b16 %v1017
      %v1523 = vunpack.c.h.b16 %v1017
      %v1524 = vunpack.c.l.b16 %v1018
      %v1525 = vunpack.c.h.b16 %v1018
      %v1526 = vunpack.c.l.b16 %v1019
      %v1527 = vunpack.c.h.b16 %v1019
      %v1528 = vpack.c.b16 %v1520, %v1520
      %v1529 = vpack.c.b16 %v1521, %v1521
      %v1530 = vpack.c.b16 %v1522, %v1522
      %v1531 = vpack.c.b16 %v1523, %v1523
      %v1532 = vpack.c.b16 %v1524, %v1524
      %v1533 = vpack.c.b16 %v1525, %v1525
      %v1534 = vpack.c.b16 %v1526, %v1526
      %v1535 = vpack.c.b16 %v1527, %v1527
      %v1537 = vshrl.u32 %v1528, 16
      %v1539 = vrot.slane %v1537, 5
      %v1540 = vshll.u32 %v1528, 16
      %v1542 = vrot.slane %v1540, 6
      %v1543 = vor.u32 %v1539, %v1542
      %v1545 = vshrl.u32 %v1529, 16
      %v1547 = vrot.slane %v1545, 5
      %v1548 = vshll.u32 %v1529, 16
      %v1550 = vrot.slane %v1548, 6
      %v1551 = vor.u32 %v1547, %v1550
      %v1553 = vshrl.u32 %v1530, 16
      %v1555 = vrot.slane %v1553, 5
      %v1556 = vshll.u32 %v1530, 16
      %v1558 = vrot.slane %v1556, 6
      %v1559 = vor.u32 %v1555, %v1558
      %v1561 = vshrl.u32 %v1531, 16
      %v1563 = vrot.slane %v1561, 5
      %v1564 = vshll.u32 %v1531, 16
      %v1566 = vrot.slane %v1564, 6
      %v1567 = vor.u32 %v1563, %v1566
      %v1569 = vshrl.u32 %v1532, 16
      %v1571 = vrot.slane %v1569, 5
      %v1572 = vshll.u32 %v1532, 16
      %v1574 = vrot.slane %v1572, 6
      %v1575 = vor.u32 %v1571, %v1574
      %v1577 = vshrl.u32 %v1533, 16
      %v1579 = vrot.slane %v1577, 5
      %v1580 = vshll.u32 %v1533, 16
      %v1582 = vrot.slane %v1580, 6
      %v1583 = vor.u32 %v1579, %v1582
      %v1585 = vshrl.u32 %v1534, 16
      %v1587 = vrot.slane %v1585, 5
      %v1588 = vshll.u32 %v1534, 16
      %v1590 = vrot.slane %v1588, 6
      %v1591 = vor.u32 %v1587, %v1590
      %v1593 = vshrl.u32 %v1535, 16
      %v1595 = vrot.slane %v1593, 5
      %v1596 = vshll.u32 %v1535, 16
      %v1598 = vrot.slane %v1596, 6
      %v1599 = vor.u32 %v1595, %v1598
      %v1612 = vunpack.c.l.b16 %v1132
      %v1613 = vunpack.c.h.b16 %v1132
      %v1614 = vunpack.c.l.b16 %v1133
      %v1615 = vunpack.c.h.b16 %v1133
      %v1616 = vunpack.c.l.b16 %v1134
      %v1617 = vunpack.c.h.b16 %v1134
      %v1618 = vunpack.c.l.b16 %v1135
      %v1619 = vunpack.c.h.b16 %v1135
      %v1620 = vpack.c.b16 %v1612, %v1612
      %v1621 = vpack.c.b16 %v1613, %v1613
      %v1622 = vpack.c.b16 %v1614, %v1614
      %v1623 = vpack.c.b16 %v1615, %v1615
      %v1624 = vpack.c.b16 %v1616, %v1616
      %v1625 = vpack.c.b16 %v1617, %v1617
      %v1626 = vpack.c.b16 %v1618, %v1618
      %v1627 = vpack.c.b16 %v1619, %v1619
      %vm1628 = vcmask 1041408
      %vm1629 = vsmask.f32 1280
      %vm1630 = vmand %vm1628, %vm1629
      %v1631 = vsel %vm1630, %v1148, %v1191
      %v1632 = vsel %vm1630, %v1149, %v1199
      %v1633 = vsel %vm1630, %v1150, %v1207
      %v1634 = vsel %vm1630, %v1151, %v1215
      %v1635 = vsel %vm1630, %v1152, %v1223
      %v1636 = vsel %vm1630, %v1153, %v1231
      %v1637 = vsel %vm1630, %v1154, %v1239
      %v1638 = vsel %vm1630, %v1155, %v1247
      %vm1639 = vcmask 1042432
      %v1642 = vsel %vm1639, %v1631, %v1276
      %v1646 = vsel %vm1639, %v1632, %v1277
      %v1650 = vsel %vm1639, %v1633, %v1278
      %v1654 = vsel %vm1639, %v1634, %v1279
      %v1658 = vsel %vm1639, %v1635, %v1280
      %v1662 = vsel %vm1639, %v1636, %v1281
      %v1666 = vsel %vm1639, %v1637, %v1282
      %v1670 = vsel %vm1639, %v1638, %v1283
      %vm1672 = vcmask 1044480
      %vm1673 = vsmask.f32 4352
      %vm1674 = vmand %vm1672, %vm1673
      %v1675 = vsel %vm1674, %v1642, %v1311
      %v1676 = vsel %vm1674, %v1646, %v1319
      %v1677 = vsel %vm1674, %v1650, %v1327
      %v1678 = vsel %vm1674, %v1654, %v1335
      %v1679 = vsel %vm1674, %v1658, %v1343
      %v1680 = vsel %vm1674, %v1662, %v1351
      %v1681 = vsel %vm1674, %v1666, %v1359
      %v1682 = vsel %vm1674, %v1670, %v1367
      %vm1683 = vcmask 1045504
      %v1686 = vsel %vm1683, %v1675, %v1396
      %v1690 = vsel %vm1683, %v1676, %v1397
      %v1694 = vsel %vm1683, %v1677, %v1398
      %v1698 = vsel %vm1683, %v1678, %v1399
      %v1702 = vsel %vm1683, %v1679, %v1400
      %v1706 = vsel %vm1683, %v1680, %v1401
      %v1710 = vsel %vm1683, %v1681, %v1402
      %v1714 = vsel %vm1683, %v1682, %v1403
      %vm1716 = vcmask 1047552
      %vm1717 = vsmask.f32 7424
      %vm1718 = vmand %vm1716, %vm1717
      %v1719 = vsel %vm1718, %v1686, %v1427
      %v1720 = vsel %vm1718, %v1690, %v1431
      %v1721 = vsel %vm1718, %v1694, %v1435
      %v1722 = vsel %vm1718, %v1698, %v1439
      %v1723 = vsel %vm1718, %v1702, %v1443
      %v1724 = vsel %vm1718, %v1706, %v1447
      %v1725 = vsel %vm1718, %v1710, %v1451
      %v1726 = vsel %vm1718, %v1714, %v1455
      %vm1727 = vcmask 1040384
      %v1730 = vsel %vm1727, %v1458, %v1508
      %v1734 = vsel %vm1727, %v1461, %v1509
      %v1738 = vsel %vm1727, %v1464, %v1510
      %v1742 = vsel %vm1727, %v1467, %v1511
      %v1746 = vsel %vm1727, %v1470, %v1512
      %v1750 = vsel %vm1727, %v1473, %v1513
      %v1754 = vsel %vm1727, %v1476, %v1514
      %v1758 = vsel %vm1727, %v1479, %v1515
      %vm1760 = vcmask 1042432
      %vm1761 = vsmask.f32 2304
      %vm1762 = vmand %vm1760, %vm1761
      %v1763 = vsel %vm1762, %v1730, %v1543
      %v1764 = vsel %vm1762, %v1734, %v1551
      %v1765 = vsel %vm1762, %v1738, %v1559
      %v1766 = vsel %vm1762, %v1742, %v1567
      %v1767 = vsel %vm1762, %v1746, %v1575
      %v1768 = vsel %vm1762, %v1750, %v1583
      %v1769 = vsel %vm1762, %v1754, %v1591
      %v1770 = vsel %vm1762, %v1758, %v1599
      %vm1771 = vcmask 1043456
      %v1774 = vsel %vm1771, %v1763, %v1620
      %v1777 = vsel %vm1771, %v1764, %v1621
      %v1780 = vsel %vm1771, %v1765, %v1622
      %v1783 = vsel %vm1771, %v1766, %v1623
      %v1786 = vsel %vm1771, %v1767, %v1624
      %v1789 = vsel %vm1771, %v1768, %v1625
      %v1792 = vsel %vm1771, %v1769, %v1626
      %v1795 = vsel %vm1771, %v1770, %v1627
      %v1796 = vld [vmem:[%s4] sm:$0xf]
      %v1797 = vld [vmem:[%s4 + $0x4] sm:$0xf]
      %v1798 = vld [vmem:[%s4 + $0x8] sm:$0xf]
      %v1799 = vld [vmem:[%s4 + $0xc] sm:$0xf]
      %v1800 = vld [vmem:[%s4 + $0x10] sm:$0xf]
      %v1801 = vld [vmem:[%s4 + $0x14] sm:$0xf]
      %v1802 = vld [vmem:[%s4 + $0x18] sm:$0xf]
      %v1803 = vld [vmem:[%s4 + $0x1c] sm:$0xf]
      %v1804 = vld [vmem:[%s4 + $0x20] sm:$0xf]
      %v1805 = vld [vmem:[%s4 + $0x24] sm:$0xf]
      %v1806 = vld [vmem:[%s4 + $0x28] sm:$0xf]
      %v1807 = vld [vmem:[%s4 + $0x2c] sm:$0xf]
      %v1808 = vld [vmem:[%s4 + $0x30] sm:$0xf]
      %v1809 = vld [vmem:[%s4 + $0x34] sm:$0xf]
      %v1810 = vld [vmem:[%s4 + $0x38] sm:$0xf]
      %v1811 = vld [vmem:[%s4 + $0x3c] sm:$0xf]
      %v1812 = vld [vmem:[%s4 + $0x40] sm:$0xf]
      %v1813 = vld [vmem:[%s4 + $0x44] sm:$0xf]
      %v1814 = vld [vmem:[%s4 + $0x48] sm:$0xf]
      %v1815 = vld [vmem:[%s4 + $0x4c] sm:$0xf]
      %v1816 = vld [vmem:[%s4 + $0x50] sm:$0xf]
      %v1817 = vld [vmem:[%s4 + $0x54] sm:$0xf]
      %v1818 = vld [vmem:[%s4 + $0x58] sm:$0xf]
      %v1819 = vld [vmem:[%s4 + $0x5c] sm:$0xf]
      %v1820 = vld [vmem:[%s4 + $0x60] sm:$0xf]
      %v1821 = vld [vmem:[%s4 + $0x64] sm:$0xf]
      %v1822 = vld [vmem:[%s4 + $0x68] sm:$0xf]
      %v1823 = vld [vmem:[%s4 + $0x6c] sm:$0xf]
      %v1824 = vld [vmem:[%s4 + $0x70] sm:$0xf]
      %v1825 = vld [vmem:[%s4 + $0x74] sm:$0xf]
      %v1826 = vld [vmem:[%s4 + $0x78] sm:$0xf]
      %v1827 = vld [vmem:[%s4 + $0x7c] sm:$0xf]
      %v1828 = vld [vmem:[%s5] sm:$0xff]
      %v1829 = vld [vmem:[%s5 + $0x8] sm:$0xff]
      %v1830 = vld [vmem:[%s5 + $0x10] sm:$0xff]
      %v1831 = vld [vmem:[%s5 + $0x18] sm:$0xff]
      %v1832 = vld [vmem:[%s5 + $0x20] sm:$0xff]
      %v1833 = vld [vmem:[%s5 + $0x28] sm:$0xff]
      %v1834 = vld [vmem:[%s5 + $0x30] sm:$0xff]
      %v1835 = vld [vmem:[%s5 + $0x38] sm:$0xff]
      %v1836 = vld [vmem:[%s5 + $0x40] sm:$0xff]
      %v1837 = vld [vmem:[%s5 + $0x48] sm:$0xff]
      %v1838 = vld [vmem:[%s5 + $0x50] sm:$0xff]
      %v1839 = vld [vmem:[%s5 + $0x58] sm:$0xff]
      %v1840 = vld [vmem:[%s5 + $0x60] sm:$0xff]
      %v1841 = vld [vmem:[%s5 + $0x68] sm:$0xff]
      %v1842 = vld [vmem:[%s5 + $0x70] sm:$0xff]
      %v1843 = vld [vmem:[%s5 + $0x78] sm:$0xff]
      %v1844 = vld [vmem:[%s5 + $0x80] sm:$0xff]
      %v1845 = vld [vmem:[%s5 + $0x88] sm:$0xff]
      %v1846 = vld [vmem:[%s5 + $0x90] sm:$0xff]
      %v1847 = vld [vmem:[%s5 + $0x98] sm:$0xff]
      %v1848 = vld [vmem:[%s5 + $0xa0] sm:$0xff]
      %v1849 = vld [vmem:[%s5 + $0xa8] sm:$0xff]
      %v1850 = vld [vmem:[%s5 + $0xb0] sm:$0xff]
      %v1851 = vld [vmem:[%s5 + $0xb8] sm:$0xff]
      %v1852 = vld [vmem:[%s5 + $0xc0] sm:$0xff]
      %v1853 = vld [vmem:[%s5 + $0xc8] sm:$0xff]
      %v1854 = vld [vmem:[%s5 + $0xd0] sm:$0xff]
      %v1855 = vld [vmem:[%s5 + $0xd8] sm:$0xff]
      %v1856 = vld [vmem:[%s5 + $0xe0] sm:$0xff]
      %v1857 = vld [vmem:[%s5 + $0xe8] sm:$0xff]
      %v1858 = vld [vmem:[%s5 + $0xf0] sm:$0xff]
      %v1859 = vld [vmem:[%s5 + $0xf8] sm:$0xff]
      %1861 = vset.pattern.permute.xlu0 0
      %1862 = vperm.xlu0 %1861, %v1828
      %v1863 = vpop.permute.xlu0 %1862
      %1866 = vset.pattern.permute.xlu0 0
      %1867 = vperm.xlu0 %1866, %v1829
      %v1868 = vpop.permute.xlu0 %1867
      %1871 = vset.pattern.permute.xlu0 0
      %1872 = vperm.xlu0 %1871, %v1830
      %v1873 = vpop.permute.xlu0 %1872
      %1876 = vset.pattern.permute.xlu0 0
      %1877 = vperm.xlu0 %1876, %v1831
      %v1878 = vpop.permute.xlu0 %1877
      %1881 = vset.pattern.permute.xlu0 0
      %1882 = vperm.xlu0 %1881, %v1832
      %v1883 = vpop.permute.xlu0 %1882
      %1886 = vset.pattern.permute.xlu0 0
      %1887 = vperm.xlu0 %1886, %v1833
      %v1888 = vpop.permute.xlu0 %1887
      %1891 = vset.pattern.permute.xlu0 0
      %1892 = vperm.xlu0 %1891, %v1834
      %v1893 = vpop.permute.xlu0 %1892
      %1896 = vset.pattern.permute.xlu0 0
      %1897 = vperm.xlu0 %1896, %v1835
      %v1898 = vpop.permute.xlu0 %1897
      %1901 = vset.pattern.permute.xlu0 0
      %1902 = vperm.xlu0 %1901, %v1836
      %v1903 = vpop.permute.xlu0 %1902
      %1906 = vset.pattern.permute.xlu0 0
      %1907 = vperm.xlu0 %1906, %v1837
      %v1908 = vpop.permute.xlu0 %1907
      %1911 = vset.pattern.permute.xlu0 0
      %1912 = vperm.xlu0 %1911, %v1838
      %v1913 = vpop.permute.xlu0 %1912
      %1916 = vset.pattern.permute.xlu0 0
      %1917 = vperm.xlu0 %1916, %v1839
      %v1918 = vpop.permute.xlu0 %1917
      %1921 = vset.pattern.permute.xlu0 0
      %1922 = vperm.xlu0 %1921, %v1840
      %v1923 = vpop.permute.xlu0 %1922
      %1926 = vset.pattern.permute.xlu0 0
      %1927 = vperm.xlu0 %1926, %v1841
      %v1928 = vpop.permute.xlu0 %1927
      %1931 = vset.pattern.permute.xlu0 0
      %1932 = vperm.xlu0 %1931, %v1842
      %v1933 = vpop.permute.xlu0 %1932
      %1936 = vset.pattern.permute.xlu0 0
      %1937 = vperm.xlu0 %1936, %v1843
      %v1938 = vpop.permute.xlu0 %1937
      %1941 = vset.pattern.permute.xlu0 0
      %1942 = vperm.xlu0 %1941, %v1844
      %v1943 = vpop.permute.xlu0 %1942
      %1946 = vset.pattern.permute.xlu0 0
      %1947 = vperm.xlu0 %1946, %v1845
      %v1948 = vpop.permute.xlu0 %1947
      %1951 = vset.pattern.permute.xlu0 0
      %1952 = vperm.xlu0 %1951, %v1846
      %v1953 = vpop.permute.xlu0 %1952
      %1956 = vset.pattern.permute.xlu0 0
      %1957 = vperm.xlu0 %1956, %v1847
      %v1958 = vpop.permute.xlu0 %1957
      %1961 = vset.pattern.permute.xlu0 0
      %1962 = vperm.xlu0 %1961, %v1848
      %v1963 = vpop.permute.xlu0 %1962
      %1966 = vset.pattern.permute.xlu0 0
      %1967 = vperm.xlu0 %1966, %v1849
      %v1968 = vpop.permute.xlu0 %1967
      %1971 = vset.pattern.permute.xlu0 0
      %1972 = vperm.xlu0 %1971, %v1850
      %v1973 = vpop.permute.xlu0 %1972
      %1976 = vset.pattern.permute.xlu0 0
      %1977 = vperm.xlu0 %1976, %v1851
      %v1978 = vpop.permute.xlu0 %1977
      %1981 = vset.pattern.permute.xlu0 0
      %1982 = vperm.xlu0 %1981, %v1852
      %v1983 = vpop.permute.xlu0 %1982
      %1986 = vset.pattern.permute.xlu0 0
      %1987 = vperm.xlu0 %1986, %v1853
      %v1988 = vpop.permute.xlu0 %1987
      %1991 = vset.pattern.permute.xlu0 0
      %1992 = vperm.xlu0 %1991, %v1854
      %v1993 = vpop.permute.xlu0 %1992
      %1996 = vset.pattern.permute.xlu0 0
      %1997 = vperm.xlu0 %1996, %v1855
      %v1998 = vpop.permute.xlu0 %1997
      %2001 = vset.pattern.permute.xlu0 0
      %2002 = vperm.xlu0 %2001, %v1856
      %v2003 = vpop.permute.xlu0 %2002
      %2006 = vset.pattern.permute.xlu0 0
      %2007 = vperm.xlu0 %2006, %v1857
      %v2008 = vpop.permute.xlu0 %2007
      %2011 = vset.pattern.permute.xlu0 0
      %2012 = vperm.xlu0 %2011, %v1858
      %v2013 = vpop.permute.xlu0 %2012
      %2016 = vset.pattern.permute.xlu0 0
      %2017 = vperm.xlu0 %2016, %v1859
      %v2018 = vpop.permute.xlu0 %2017
      %v2052 = vunpack.c.l.b16 %v1796
      %v2053 = vunpack.c.l.b16 %v1797
      %v2054 = vunpack.c.l.b16 %v1798
      %v2055 = vunpack.c.l.b16 %v1799
      %v2056 = vunpack.c.l.b16 %v1800
      %v2057 = vunpack.c.l.b16 %v1801
      %v2058 = vunpack.c.l.b16 %v1802
      %v2059 = vunpack.c.l.b16 %v1803
      %v2060 = vunpack.c.l.b16 %v1804
      %v2061 = vunpack.c.l.b16 %v1805
      %v2062 = vunpack.c.l.b16 %v1806
      %v2063 = vunpack.c.l.b16 %v1807
      %v2064 = vunpack.c.l.b16 %v1808
      %v2065 = vunpack.c.l.b16 %v1809
      %v2066 = vunpack.c.l.b16 %v1810
      %v2067 = vunpack.c.l.b16 %v1811
      %v2068 = vunpack.c.l.b16 %v1812
      %v2069 = vunpack.c.l.b16 %v1813
      %v2070 = vunpack.c.l.b16 %v1814
      %v2071 = vunpack.c.l.b16 %v1815
      %v2072 = vunpack.c.l.b16 %v1816
      %v2073 = vunpack.c.l.b16 %v1817
      %v2074 = vunpack.c.l.b16 %v1818
      %v2075 = vunpack.c.l.b16 %v1819
      %v2076 = vunpack.c.l.b16 %v1820
      %v2077 = vunpack.c.l.b16 %v1821
      %v2078 = vunpack.c.l.b16 %v1822
      %v2079 = vunpack.c.l.b16 %v1823
      %v2080 = vunpack.c.l.b16 %v1824
      %v2081 = vunpack.c.l.b16 %v1825
      %v2082 = vunpack.c.l.b16 %v1826
      %v2083 = vunpack.c.l.b16 %v1827
      %v2084 = vpack.c.b16 %v2053, %v2052
      %v2085 = vpack.c.b16 %v2055, %v2054
      %v2086 = vpack.c.b16 %v2057, %v2056
      %v2087 = vpack.c.b16 %v2059, %v2058
      %v2088 = vpack.c.b16 %v2061, %v2060
      %v2089 = vpack.c.b16 %v2063, %v2062
      %v2090 = vpack.c.b16 %v2065, %v2064
      %v2091 = vpack.c.b16 %v2067, %v2066
      %v2092 = vpack.c.b16 %v2069, %v2068
      %v2093 = vpack.c.b16 %v2071, %v2070
      %v2094 = vpack.c.b16 %v2073, %v2072
      %v2095 = vpack.c.b16 %v2075, %v2074
      %v2096 = vpack.c.b16 %v2077, %v2076
      %v2097 = vpack.c.b16 %v2079, %v2078
      %v2098 = vpack.c.b16 %v2081, %v2080
      %v2099 = vpack.c.b16 %v2083, %v2082
      %vm2100 = vcmask 220160
      %v2102 = vsel %vm2100, %v2084, 0
      %v2105 = vsel %vm2100, %v2085, 0
      %v2108 = vsel %vm2100, %v2086, 0
      %v2111 = vsel %vm2100, %v2087, 0
      %v2114 = vsel %vm2100, %v2088, 0
      %v2117 = vsel %vm2100, %v2089, 0
      %v2120 = vsel %vm2100, %v2090, 0
      %v2123 = vsel %vm2100, %v2091, 0
      %v2126 = vsel %vm2100, %v2092, 0
      %v2129 = vsel %vm2100, %v2093, 0
      %v2132 = vsel %vm2100, %v2094, 0
      %v2135 = vsel %vm2100, %v2095, 0
      %v2138 = vsel %vm2100, %v2096, 0
      %v2141 = vsel %vm2100, %v2097, 0
      %v2144 = vsel %vm2100, %v2098, 0
      %v2147 = vsel %vm2100, %v2099, 0
      %vm2149 = vcmask 1044480
      %v2150 = vsel %vm2149, 4294967295, 65535
      %v2151 = vsel %vm1683, %v2150, 0
      %v2152 = vand.u32 %v1774, %v2151
      %v2154 = vand.u32 %v1777, %v2151
      %v2156 = vand.u32 %v1780, %v2151
      %v2158 = vand.u32 %v1783, %v2151
      %v2160 = vand.u32 %v1786, %v2151
      %v2162 = vand.u32 %v1789, %v2151
      %v2164 = vand.u32 %v1792, %v2151
      %v2166 = vand.u32 %v1795, %v2151
      %2168 = vmatpush.bf16.msra.mxu0 0
      %2169 = vmatpush.bf16.msra.mxu0 0
      %2170 = vmatpush.bf16.msra.mxu0 0
      %2171 = vmatpush.bf16.msra.mxu0 0
      %2172 = vmatpush.bf16.msra.mxu0 0
      %2173 = vmatpush.bf16.msra.mxu0 0
      %2174 = vmatpush.bf16.msra.mxu0 %v2152
      %2175 = vmatpush.bf16.msra.mxu0 %v1719
      %2176 = vmatmul.bf16.gmra.mxu0 %v2102
      %v2177 = vpop.f32.mrf.mxu0
      %v2178 = vadd.f32 %v1863, %v2177
      %v2179 = vpop.f32.mrf.mxu0
      %v2180 = vadd.f32 %v1868, %v2179
      %2181 = vmatmul.bf16.gmra.mxu0 %v2105
      %v2182 = vpop.f32.mrf.mxu0
      %v2183 = vadd.f32 %v1873, %v2182
      %v2184 = vpop.f32.mrf.mxu0
      %v2185 = vadd.f32 %v1878, %v2184
      %2186 = vmatmul.bf16.gmra.mxu0 %v2108
      %v2187 = vpop.f32.mrf.mxu0
      %v2188 = vadd.f32 %v1883, %v2187
      %v2189 = vpop.f32.mrf.mxu0
      %v2190 = vadd.f32 %v1888, %v2189
      %2191 = vmatmul.bf16.gmra.mxu0 %v2111
      %v2192 = vpop.f32.mrf.mxu0
      %v2193 = vadd.f32 %v1893, %v2192
      %v2194 = vpop.f32.mrf.mxu0
      %v2195 = vadd.f32 %v1898, %v2194
      %2196 = vmatmul.bf16.gmra.mxu0 %v2114
      %v2197 = vpop.f32.mrf.mxu0
      %v2198 = vadd.f32 %v1903, %v2197
      %v2199 = vpop.f32.mrf.mxu0
      %v2200 = vadd.f32 %v1908, %v2199
      %2201 = vmatmul.bf16.gmra.mxu0 %v2117
      %v2202 = vpop.f32.mrf.mxu0
      %v2203 = vadd.f32 %v1913, %v2202
      %v2204 = vpop.f32.mrf.mxu0
      %v2205 = vadd.f32 %v1918, %v2204
      %2206 = vmatmul.bf16.gmra.mxu0 %v2120
      %v2207 = vpop.f32.mrf.mxu0
      %v2208 = vadd.f32 %v1923, %v2207
      %v2209 = vpop.f32.mrf.mxu0
      %v2210 = vadd.f32 %v1928, %v2209
      %2211 = vmatmul.bf16.gmra.mxu0 %v2123
      %v2212 = vpop.f32.mrf.mxu0
      %v2213 = vadd.f32 %v1933, %v2212
      %v2214 = vpop.f32.mrf.mxu0
      %v2215 = vadd.f32 %v1938, %v2214
      %2216 = vmatmul.bf16.gmra.mxu0 %v2126
      %v2217 = vpop.f32.mrf.mxu0
      %v2218 = vadd.f32 %v1943, %v2217
      %v2219 = vpop.f32.mrf.mxu0
      %v2220 = vadd.f32 %v1948, %v2219
      %2221 = vmatmul.bf16.gmra.mxu0 %v2129
      %v2222 = vpop.f32.mrf.mxu0
      %v2223 = vadd.f32 %v1953, %v2222
      %v2224 = vpop.f32.mrf.mxu0
      %v2225 = vadd.f32 %v1958, %v2224
      %2226 = vmatmul.bf16.gmra.mxu0 %v2132
      %v2227 = vpop.f32.mrf.mxu0
      %v2228 = vadd.f32 %v1963, %v2227
      %v2229 = vpop.f32.mrf.mxu0
      %v2230 = vadd.f32 %v1968, %v2229
      %2231 = vmatmul.bf16.gmra.mxu0 %v2135
      %v2232 = vpop.f32.mrf.mxu0
      %v2233 = vadd.f32 %v1973, %v2232
      %v2234 = vpop.f32.mrf.mxu0
      %v2235 = vadd.f32 %v1978, %v2234
      %2236 = vmatmul.bf16.gmra.mxu0 %v2138
      %v2237 = vpop.f32.mrf.mxu0
      %v2238 = vadd.f32 %v1983, %v2237
      %v2239 = vpop.f32.mrf.mxu0
      %v2240 = vadd.f32 %v1988, %v2239
      %2241 = vmatmul.bf16.gmra.mxu0 %v2141
      %v2242 = vpop.f32.mrf.mxu0
      %v2243 = vadd.f32 %v1993, %v2242
      %v2244 = vpop.f32.mrf.mxu0
      %v2245 = vadd.f32 %v1998, %v2244
      %2246 = vmatmul.bf16.gmra.mxu0 %v2144
      %v2247 = vpop.f32.mrf.mxu0
      %v2248 = vadd.f32 %v2003, %v2247
      %v2249 = vpop.f32.mrf.mxu0
      %v2250 = vadd.f32 %v2008, %v2249
      %2251 = vmatmul.bf16.gmra.mxu0 %v2147
      %v2252 = vpop.f32.mrf.mxu0
      %v2253 = vadd.f32 %v2013, %v2252
      %v2254 = vpop.f32.mrf.mxu0
      %v2255 = vadd.f32 %v2018, %v2254
      %2256 = vdwg.mxu0
      %2257 = vmatpush.bf16.msra.mxu0 0
      %2258 = vmatpush.bf16.msra.mxu0 0
      %2259 = vmatpush.bf16.msra.mxu0 0
      %2260 = vmatpush.bf16.msra.mxu0 0
      %2261 = vmatpush.bf16.msra.mxu0 0
      %2262 = vmatpush.bf16.msra.mxu0 0
      %2263 = vmatpush.bf16.msra.mxu0 %v2154
      %2264 = vmatpush.bf16.msra.mxu0 %v1720
      %2265 = vmatmul.bf16.gmra.mxu0 %v2102
      %v2266 = vpop.f32.mrf.mxu0
      %v2267 = vadd.f32 %v1863, %v2266
      %v2268 = vpop.f32.mrf.mxu0
      %v2269 = vadd.f32 %v1868, %v2268
      %2270 = vmatmul.bf16.gmra.mxu0 %v2105
      %v2271 = vpop.f32.mrf.mxu0
      %v2272 = vadd.f32 %v1873, %v2271
      %v2273 = vpop.f32.mrf.mxu0
      %v2274 = vadd.f32 %v1878, %v2273
      %2275 = vmatmul.bf16.gmra.mxu0 %v2108
      %v2276 = vpop.f32.mrf.mxu0
      %v2277 = vadd.f32 %v1883, %v2276
      %v2278 = vpop.f32.mrf.mxu0
      %v2279 = vadd.f32 %v1888, %v2278
      %2280 = vmatmul.bf16.gmra.mxu0 %v2111
      %v2281 = vpop.f32.mrf.mxu0
      %v2282 = vadd.f32 %v1893, %v2281
      %v2283 = vpop.f32.mrf.mxu0
      %v2284 = vadd.f32 %v1898, %v2283
      %2285 = vmatmul.bf16.gmra.mxu0 %v2114
      %v2286 = vpop.f32.mrf.mxu0
      %v2287 = vadd.f32 %v1903, %v2286
      %v2288 = vpop.f32.mrf.mxu0
      %v2289 = vadd.f32 %v1908, %v2288
      %2290 = vmatmul.bf16.gmra.mxu0 %v2117
      %v2291 = vpop.f32.mrf.mxu0
      %v2292 = vadd.f32 %v1913, %v2291
      %v2293 = vpop.f32.mrf.mxu0
      %v2294 = vadd.f32 %v1918, %v2293
      %2295 = vmatmul.bf16.gmra.mxu0 %v2120
      %v2296 = vpop.f32.mrf.mxu0
      %v2297 = vadd.f32 %v1923, %v2296
      %v2298 = vpop.f32.mrf.mxu0
      %v2299 = vadd.f32 %v1928, %v2298
      %2300 = vmatmul.bf16.gmra.mxu0 %v2123
      %v2301 = vpop.f32.mrf.mxu0
      %v2302 = vadd.f32 %v1933, %v2301
      %v2303 = vpop.f32.mrf.mxu0
      %v2304 = vadd.f32 %v1938, %v2303
      %2305 = vmatmul.bf16.gmra.mxu0 %v2126
      %v2306 = vpop.f32.mrf.mxu0
      %v2307 = vadd.f32 %v1943, %v2306
      %v2308 = vpop.f32.mrf.mxu0
      %v2309 = vadd.f32 %v1948, %v2308
      %2310 = vmatmul.bf16.gmra.mxu0 %v2129
      %v2311 = vpop.f32.mrf.mxu0
      %v2312 = vadd.f32 %v1953, %v2311
      %v2313 = vpop.f32.mrf.mxu0
      %v2314 = vadd.f32 %v1958, %v2313
      %2315 = vmatmul.bf16.gmra.mxu0 %v2132
      %v2316 = vpop.f32.mrf.mxu0
      %v2317 = vadd.f32 %v1963, %v2316
      %v2318 = vpop.f32.mrf.mxu0
      %v2319 = vadd.f32 %v1968, %v2318
      %2320 = vmatmul.bf16.gmra.mxu0 %v2135
      %v2321 = vpop.f32.mrf.mxu0
      %v2322 = vadd.f32 %v1973, %v2321
      %v2323 = vpop.f32.mrf.mxu0
      %v2324 = vadd.f32 %v1978, %v2323
      %2325 = vmatmul.bf16.gmra.mxu0 %v2138
      %v2326 = vpop.f32.mrf.mxu0
      %v2327 = vadd.f32 %v1983, %v2326
      %v2328 = vpop.f32.mrf.mxu0
      %v2329 = vadd.f32 %v1988, %v2328
      %2330 = vmatmul.bf16.gmra.mxu0 %v2141
      %v2331 = vpop.f32.mrf.mxu0
      %v2332 = vadd.f32 %v1993, %v2331
      %v2333 = vpop.f32.mrf.mxu0
      %v2334 = vadd.f32 %v1998, %v2333
      %2335 = vmatmul.bf16.gmra.mxu0 %v2144
      %v2336 = vpop.f32.mrf.mxu0
      %v2337 = vadd.f32 %v2003, %v2336
      %v2338 = vpop.f32.mrf.mxu0
      %v2339 = vadd.f32 %v2008, %v2338
      %2340 = vmatmul.bf16.gmra.mxu0 %v2147
      %v2341 = vpop.f32.mrf.mxu0
      %v2342 = vadd.f32 %v2013, %v2341
      %v2343 = vpop.f32.mrf.mxu0
      %v2344 = vadd.f32 %v2018, %v2343
      %2345 = vdwg.mxu0
      %2346 = vmatpush.bf16.msra.mxu0 0
      %2347 = vmatpush.bf16.msra.mxu0 0
      %2348 = vmatpush.bf16.msra.mxu0 0
      %2349 = vmatpush.bf16.msra.mxu0 0
      %2350 = vmatpush.bf16.msra.mxu0 0
      %2351 = vmatpush.bf16.msra.mxu0 0
      %2352 = vmatpush.bf16.msra.mxu0 %v2156
      %2353 = vmatpush.bf16.msra.mxu0 %v1721
      %2354 = vmatmul.bf16.gmra.mxu0 %v2102
      %v2355 = vpop.f32.mrf.mxu0
      %v2356 = vadd.f32 %v1863, %v2355
      %v2357 = vpop.f32.mrf.mxu0
      %v2358 = vadd.f32 %v1868, %v2357
      %2359 = vmatmul.bf16.gmra.mxu0 %v2105
      %v2360 = vpop.f32.mrf.mxu0
      %v2361 = vadd.f32 %v1873, %v2360
      %v2362 = vpop.f32.mrf.mxu0
      %v2363 = vadd.f32 %v1878, %v2362
      %2364 = vmatmul.bf16.gmra.mxu0 %v2108
      %v2365 = vpop.f32.mrf.mxu0
      %v2366 = vadd.f32 %v1883, %v2365
      %v2367 = vpop.f32.mrf.mxu0
      %v2368 = vadd.f32 %v1888, %v2367
      %2369 = vmatmul.bf16.gmra.mxu0 %v2111
      %v2370 = vpop.f32.mrf.mxu0
      %v2371 = vadd.f32 %v1893, %v2370
      %v2372 = vpop.f32.mrf.mxu0
      %v2373 = vadd.f32 %v1898, %v2372
      %2374 = vmatmul.bf16.gmra.mxu0 %v2114
      %v2375 = vpop.f32.mrf.mxu0
      %v2376 = vadd.f32 %v1903, %v2375
      %v2377 = vpop.f32.mrf.mxu0
      %v2378 = vadd.f32 %v1908, %v2377
      %2379 = vmatmul.bf16.gmra.mxu0 %v2117
      %v2380 = vpop.f32.mrf.mxu0
      %v2381 = vadd.f32 %v1913, %v2380
      %v2382 = vpop.f32.mrf.mxu0
      %v2383 = vadd.f32 %v1918, %v2382
      %2384 = vmatmul.bf16.gmra.mxu0 %v2120
      %v2385 = vpop.f32.mrf.mxu0
      %v2386 = vadd.f32 %v1923, %v2385
      %v2387 = vpop.f32.mrf.mxu0
      %v2388 = vadd.f32 %v1928, %v2387
      %2389 = vmatmul.bf16.gmra.mxu0 %v2123
      %v2390 = vpop.f32.mrf.mxu0
      %v2391 = vadd.f32 %v1933, %v2390
      %v2392 = vpop.f32.mrf.mxu0
      %v2393 = vadd.f32 %v1938, %v2392
      %2394 = vmatmul.bf16.gmra.mxu0 %v2126
      %v2395 = vpop.f32.mrf.mxu0
      %v2396 = vadd.f32 %v1943, %v2395
      %v2397 = vpop.f32.mrf.mxu0
      %v2398 = vadd.f32 %v1948, %v2397
      %2399 = vmatmul.bf16.gmra.mxu0 %v2129
      %v2400 = vpop.f32.mrf.mxu0
      %v2401 = vadd.f32 %v1953, %v2400
      %v2402 = vpop.f32.mrf.mxu0
      %v2403 = vadd.f32 %v1958, %v2402
      %2404 = vmatmul.bf16.gmra.mxu0 %v2132
      %v2405 = vpop.f32.mrf.mxu0
      %v2406 = vadd.f32 %v1963, %v2405
      %v2407 = vpop.f32.mrf.mxu0
      %v2408 = vadd.f32 %v1968, %v2407
      %2409 = vmatmul.bf16.gmra.mxu0 %v2135
      %v2410 = vpop.f32.mrf.mxu0
      %v2411 = vadd.f32 %v1973, %v2410
      %v2412 = vpop.f32.mrf.mxu0
      %v2413 = vadd.f32 %v1978, %v2412
      %2414 = vmatmul.bf16.gmra.mxu0 %v2138
      %v2415 = vpop.f32.mrf.mxu0
      %v2416 = vadd.f32 %v1983, %v2415
      %v2417 = vpop.f32.mrf.mxu0
      %v2418 = vadd.f32 %v1988, %v2417
      %2419 = vmatmul.bf16.gmra.mxu0 %v2141
      %v2420 = vpop.f32.mrf.mxu0
      %v2421 = vadd.f32 %v1993, %v2420
      %v2422 = vpop.f32.mrf.mxu0
      %v2423 = vadd.f32 %v1998, %v2422
      %2424 = vmatmul.bf16.gmra.mxu0 %v2144
      %v2425 = vpop.f32.mrf.mxu0
      %v2426 = vadd.f32 %v2003, %v2425
      %v2427 = vpop.f32.mrf.mxu0
      %v2428 = vadd.f32 %v2008, %v2427
      %2429 = vmatmul.bf16.gmra.mxu0 %v2147
      %v2430 = vpop.f32.mrf.mxu0
      %v2431 = vadd.f32 %v2013, %v2430
      %v2432 = vpop.f32.mrf.mxu0
      %v2433 = vadd.f32 %v2018, %v2432
      %2434 = vdwg.mxu0
      %2435 = vmatpush.bf16.msra.mxu0 0
      %2436 = vmatpush.bf16.msra.mxu0 0
      %2437 = vmatpush.bf16.msra.mxu0 0
      %2438 = vmatpush.bf16.msra.mxu0 0
      %2439 = vmatpush.bf16.msra.mxu0 0
      %2440 = vmatpush.bf16.msra.mxu0 0
      %2441 = vmatpush.bf16.msra.mxu0 %v2158
      %2442 = vmatpush.bf16.msra.mxu0 %v1722
      %2443 = vmatmul.bf16.gmra.mxu0 %v2102
      %v2444 = vpop.f32.mrf.mxu0
      %v2445 = vadd.f32 %v1863, %v2444
      %v2446 = vpop.f32.mrf.mxu0
      %v2447 = vadd.f32 %v1868, %v2446
      %2448 = vmatmul.bf16.gmra.mxu0 %v2105
      %v2449 = vpop.f32.mrf.mxu0
      %v2450 = vadd.f32 %v1873, %v2449
      %v2451 = vpop.f32.mrf.mxu0
      %v2452 = vadd.f32 %v1878, %v2451
      %2453 = vmatmul.bf16.gmra.mxu0 %v2108
      %v2454 = vpop.f32.mrf.mxu0
      %v2455 = vadd.f32 %v1883, %v2454
      %v2456 = vpop.f32.mrf.mxu0
      %v2457 = vadd.f32 %v1888, %v2456
      %2458 = vmatmul.bf16.gmra.mxu0 %v2111
      %v2459 = vpop.f32.mrf.mxu0
      %v2460 = vadd.f32 %v1893, %v2459
      %v2461 = vpop.f32.mrf.mxu0
      %v2462 = vadd.f32 %v1898, %v2461
      %2463 = vmatmul.bf16.gmra.mxu0 %v2114
      %v2464 = vpop.f32.mrf.mxu0
      %v2465 = vadd.f32 %v1903, %v2464
      %v2466 = vpop.f32.mrf.mxu0
      %v2467 = vadd.f32 %v1908, %v2466
      %2468 = vmatmul.bf16.gmra.mxu0 %v2117
      %v2469 = vpop.f32.mrf.mxu0
      %v2470 = vadd.f32 %v1913, %v2469
      %v2471 = vpop.f32.mrf.mxu0
      %v2472 = vadd.f32 %v1918, %v2471
      %2473 = vmatmul.bf16.gmra.mxu0 %v2120
      %v2474 = vpop.f32.mrf.mxu0
      %v2475 = vadd.f32 %v1923, %v2474
      %v2476 = vpop.f32.mrf.mxu0
      %v2477 = vadd.f32 %v1928, %v2476
      %2478 = vmatmul.bf16.gmra.mxu0 %v2123
      %v2479 = vpop.f32.mrf.mxu0
      %v2480 = vadd.f32 %v1933, %v2479
      %v2481 = vpop.f32.mrf.mxu0
      %v2482 = vadd.f32 %v1938, %v2481
      %2483 = vmatmul.bf16.gmra.mxu0 %v2126
      %v2484 = vpop.f32.mrf.mxu0
      %v2485 = vadd.f32 %v1943, %v2484
      %v2486 = vpop.f32.mrf.mxu0
      %v2487 = vadd.f32 %v1948, %v2486
      %2488 = vmatmul.bf16.gmra.mxu0 %v2129
      %v2489 = vpop.f32.mrf.mxu0
      %v2490 = vadd.f32 %v1953, %v2489
      %v2491 = vpop.f32.mrf.mxu0
      %v2492 = vadd.f32 %v1958, %v2491
      %2493 = vmatmul.bf16.gmra.mxu0 %v2132
      %v2494 = vpop.f32.mrf.mxu0
      %v2495 = vadd.f32 %v1963, %v2494
      %v2496 = vpop.f32.mrf.mxu0
      %v2497 = vadd.f32 %v1968, %v2496
      %2498 = vmatmul.bf16.gmra.mxu0 %v2135
      %v2499 = vpop.f32.mrf.mxu0
      %v2500 = vadd.f32 %v1973, %v2499
      %v2501 = vpop.f32.mrf.mxu0
      %v2502 = vadd.f32 %v1978, %v2501
      %2503 = vmatmul.bf16.gmra.mxu0 %v2138
      %v2504 = vpop.f32.mrf.mxu0
      %v2505 = vadd.f32 %v1983, %v2504
      %v2506 = vpop.f32.mrf.mxu0
      %v2507 = vadd.f32 %v1988, %v2506
      %2508 = vmatmul.bf16.gmra.mxu0 %v2141
      %v2509 = vpop.f32.mrf.mxu0
      %v2510 = vadd.f32 %v1993, %v2509
      %v2511 = vpop.f32.mrf.mxu0
      %v2512 = vadd.f32 %v1998, %v2511
      %2513 = vmatmul.bf16.gmra.mxu0 %v2144
      %v2514 = vpop.f32.mrf.mxu0
      %v2515 = vadd.f32 %v2003, %v2514
      %v2516 = vpop.f32.mrf.mxu0
      %v2517 = vadd.f32 %v2008, %v2516
      %2518 = vmatmul.bf16.gmra.mxu0 %v2147
      %v2519 = vpop.f32.mrf.mxu0
      %v2520 = vadd.f32 %v2013, %v2519
      %v2521 = vpop.f32.mrf.mxu0
      %v2522 = vadd.f32 %v2018, %v2521
      %2523 = vdwg.mxu0
      %2524 = vmatpush.bf16.msra.mxu0 0
      %2525 = vmatpush.bf16.msra.mxu0 0
      %2526 = vmatpush.bf16.msra.mxu0 0
      %2527 = vmatpush.bf16.msra.mxu0 0
      %2528 = vmatpush.bf16.msra.mxu0 0
      %2529 = vmatpush.bf16.msra.mxu0 0
      %2530 = vmatpush.bf16.msra.mxu0 %v2160
      %2531 = vmatpush.bf16.msra.mxu0 %v1723
      %2532 = vmatmul.bf16.gmra.mxu0 %v2102
      %v2533 = vpop.f32.mrf.mxu0
      %v2534 = vadd.f32 %v1863, %v2533
      %v2535 = vpop.f32.mrf.mxu0
      %v2536 = vadd.f32 %v1868, %v2535
      %2537 = vmatmul.bf16.gmra.mxu0 %v2105
      %v2538 = vpop.f32.mrf.mxu0
      %v2539 = vadd.f32 %v1873, %v2538
      %v2540 = vpop.f32.mrf.mxu0
      %v2541 = vadd.f32 %v1878, %v2540
      %2542 = vmatmul.bf16.gmra.mxu0 %v2108
      %v2543 = vpop.f32.mrf.mxu0
      %v2544 = vadd.f32 %v1883, %v2543
      %v2545 = vpop.f32.mrf.mxu0
      %v2546 = vadd.f32 %v1888, %v2545
      %2547 = vmatmul.bf16.gmra.mxu0 %v2111
      %v2548 = vpop.f32.mrf.mxu0
      %v2549 = vadd.f32 %v1893, %v2548
      %v2550 = vpop.f32.mrf.mxu0
      %v2551 = vadd.f32 %v1898, %v2550
      %2552 = vmatmul.bf16.gmra.mxu0 %v2114
      %v2553 = vpop.f32.mrf.mxu0
      %v2554 = vadd.f32 %v1903, %v2553
      %v2555 = vpop.f32.mrf.mxu0
      %v2556 = vadd.f32 %v1908, %v2555
      %2557 = vmatmul.bf16.gmra.mxu0 %v2117
      %v2558 = vpop.f32.mrf.mxu0
      %v2559 = vadd.f32 %v1913, %v2558
      %v2560 = vpop.f32.mrf.mxu0
      %v2561 = vadd.f32 %v1918, %v2560
      %2562 = vmatmul.bf16.gmra.mxu0 %v2120
      %v2563 = vpop.f32.mrf.mxu0
      %v2564 = vadd.f32 %v1923, %v2563
      %v2565 = vpop.f32.mrf.mxu0
      %v2566 = vadd.f32 %v1928, %v2565
      %2567 = vmatmul.bf16.gmra.mxu0 %v2123
      %v2568 = vpop.f32.mrf.mxu0
      %v2569 = vadd.f32 %v1933, %v2568
      %v2570 = vpop.f32.mrf.mxu0
      %v2571 = vadd.f32 %v1938, %v2570
      %2572 = vmatmul.bf16.gmra.mxu0 %v2126
      %v2573 = vpop.f32.mrf.mxu0
      %v2574 = vadd.f32 %v1943, %v2573
      %v2575 = vpop.f32.mrf.mxu0
      %v2576 = vadd.f32 %v1948, %v2575
      %2577 = vmatmul.bf16.gmra.mxu0 %v2129
      %v2578 = vpop.f32.mrf.mxu0
      %v2579 = vadd.f32 %v1953, %v2578
      %v2580 = vpop.f32.mrf.mxu0
      %v2581 = vadd.f32 %v1958, %v2580
      %2582 = vmatmul.bf16.gmra.mxu0 %v2132
      %v2583 = vpop.f32.mrf.mxu0
      %v2584 = vadd.f32 %v1963, %v2583
      %v2585 = vpop.f32.mrf.mxu0
      %v2586 = vadd.f32 %v1968, %v2585
      %2587 = vmatmul.bf16.gmra.mxu0 %v2135
      %v2588 = vpop.f32.mrf.mxu0
      %v2589 = vadd.f32 %v1973, %v2588
      %v2590 = vpop.f32.mrf.mxu0
      %v2591 = vadd.f32 %v1978, %v2590
      %2592 = vmatmul.bf16.gmra.mxu0 %v2138
      %v2593 = vpop.f32.mrf.mxu0
      %v2594 = vadd.f32 %v1983, %v2593
      %v2595 = vpop.f32.mrf.mxu0
      %v2596 = vadd.f32 %v1988, %v2595
      %2597 = vmatmul.bf16.gmra.mxu0 %v2141
      %v2598 = vpop.f32.mrf.mxu0
      %v2599 = vadd.f32 %v1993, %v2598
      %v2600 = vpop.f32.mrf.mxu0
      %v2601 = vadd.f32 %v1998, %v2600
      %2602 = vmatmul.bf16.gmra.mxu0 %v2144
      %v2603 = vpop.f32.mrf.mxu0
      %v2604 = vadd.f32 %v2003, %v2603
      %v2605 = vpop.f32.mrf.mxu0
      %v2606 = vadd.f32 %v2008, %v2605
      %2607 = vmatmul.bf16.gmra.mxu0 %v2147
      %v2608 = vpop.f32.mrf.mxu0
      %v2609 = vadd.f32 %v2013, %v2608
      %v2610 = vpop.f32.mrf.mxu0
      %v2611 = vadd.f32 %v2018, %v2610
      %2612 = vdwg.mxu0
      %2613 = vmatpush.bf16.msra.mxu0 0
      %2614 = vmatpush.bf16.msra.mxu0 0
      %2615 = vmatpush.bf16.msra.mxu0 0
      %2616 = vmatpush.bf16.msra.mxu0 0
      %2617 = vmatpush.bf16.msra.mxu0 0
      %2618 = vmatpush.bf16.msra.mxu0 0
      %2619 = vmatpush.bf16.msra.mxu0 %v2162
      %2620 = vmatpush.bf16.msra.mxu0 %v1724
      %2621 = vmatmul.bf16.gmra.mxu0 %v2102
      %v2622 = vpop.f32.mrf.mxu0
      %v2623 = vadd.f32 %v1863, %v2622
      %v2624 = vpop.f32.mrf.mxu0
      %v2625 = vadd.f32 %v1868, %v2624
      %2626 = vmatmul.bf16.gmra.mxu0 %v2105
      %v2627 = vpop.f32.mrf.mxu0
      %v2628 = vadd.f32 %v1873, %v2627
      %v2629 = vpop.f32.mrf.mxu0
      %v2630 = vadd.f32 %v1878, %v2629
      %2631 = vmatmul.bf16.gmra.mxu0 %v2108
      %v2632 = vpop.f32.mrf.mxu0
      %v2633 = vadd.f32 %v1883, %v2632
      %v2634 = vpop.f32.mrf.mxu0
      %v2635 = vadd.f32 %v1888, %v2634
      %2636 = vmatmul.bf16.gmra.mxu0 %v2111
      %v2637 = vpop.f32.mrf.mxu0
      %v2638 = vadd.f32 %v1893, %v2637
      %v2639 = vpop.f32.mrf.mxu0
      %v2640 = vadd.f32 %v1898, %v2639
      %2641 = vmatmul.bf16.gmra.mxu0 %v2114
      %v2642 = vpop.f32.mrf.mxu0
      %v2643 = vadd.f32 %v1903, %v2642
      %v2644 = vpop.f32.mrf.mxu0
      %v2645 = vadd.f32 %v1908, %v2644
      %2646 = vmatmul.bf16.gmra.mxu0 %v2117
      %v2647 = vpop.f32.mrf.mxu0
      %v2648 = vadd.f32 %v1913, %v2647
      %v2649 = vpop.f32.mrf.mxu0
      %v2650 = vadd.f32 %v1918, %v2649
      %2651 = vmatmul.bf16.gmra.mxu0 %v2120
      %v2652 = vpop.f32.mrf.mxu0
      %v2653 = vadd.f32 %v1923, %v2652
      %v2654 = vpop.f32.mrf.mxu0
      %v2655 = vadd.f32 %v1928, %v2654
      %2656 = vmatmul.bf16.gmra.mxu0 %v2123
      %v2657 = vpop.f32.mrf.mxu0
      %v2658 = vadd.f32 %v1933, %v2657
      %v2659 = vpop.f32.mrf.mxu0
      %v2660 = vadd.f32 %v1938, %v2659
      %2661 = vmatmul.bf16.gmra.mxu0 %v2126
      %v2662 = vpop.f32.mrf.mxu0
      %v2663 = vadd.f32 %v1943, %v2662
      %v2664 = vpop.f32.mrf.mxu0
      %v2665 = vadd.f32 %v1948, %v2664
      %2666 = vmatmul.bf16.gmra.mxu0 %v2129
      %v2667 = vpop.f32.mrf.mxu0
      %v2668 = vadd.f32 %v1953, %v2667
      %v2669 = vpop.f32.mrf.mxu0
      %v2670 = vadd.f32 %v1958, %v2669
      %2671 = vmatmul.bf16.gmra.mxu0 %v2132
      %v2672 = vpop.f32.mrf.mxu0
      %v2673 = vadd.f32 %v1963, %v2672
      %v2674 = vpop.f32.mrf.mxu0
      %v2675 = vadd.f32 %v1968, %v2674
      %2676 = vmatmul.bf16.gmra.mxu0 %v2135
      %v2677 = vpop.f32.mrf.mxu0
      %v2678 = vadd.f32 %v1973, %v2677
      %v2679 = vpop.f32.mrf.mxu0
      %v2680 = vadd.f32 %v1978, %v2679
      %2681 = vmatmul.bf16.gmra.mxu0 %v2138
      %v2682 = vpop.f32.mrf.mxu0
      %v2683 = vadd.f32 %v1983, %v2682
      %v2684 = vpop.f32.mrf.mxu0
      %v2685 = vadd.f32 %v1988, %v2684
      %2686 = vmatmul.bf16.gmra.mxu0 %v2141
      %v2687 = vpop.f32.mrf.mxu0
      %v2688 = vadd.f32 %v1993, %v2687
      %v2689 = vpop.f32.mrf.mxu0
      %v2690 = vadd.f32 %v1998, %v2689
      %2691 = vmatmul.bf16.gmra.mxu0 %v2144
      %v2692 = vpop.f32.mrf.mxu0
      %v2693 = vadd.f32 %v2003, %v2692
      %v2694 = vpop.f32.mrf.mxu0
      %v2695 = vadd.f32 %v2008, %v2694
      %2696 = vmatmul.bf16.gmra.mxu0 %v2147
      %v2697 = vpop.f32.mrf.mxu0
      %v2698 = vadd.f32 %v2013, %v2697
      %v2699 = vpop.f32.mrf.mxu0
      %v2700 = vadd.f32 %v2018, %v2699
      %2701 = vdwg.mxu0
      %2702 = vmatpush.bf16.msra.mxu0 0
      %2703 = vmatpush.bf16.msra.mxu0 0
      %2704 = vmatpush.bf16.msra.mxu0 0
      %2705 = vmatpush.bf16.msra.mxu0 0
      %2706 = vmatpush.bf16.msra.mxu0 0
      %2707 = vmatpush.bf16.msra.mxu0 0
      %2708 = vmatpush.bf16.msra.mxu0 %v2164
      %2709 = vmatpush.bf16.msra.mxu0 %v1725
      %2710 = vmatmul.bf16.gmra.mxu0 %v2102
      %v2711 = vpop.f32.mrf.mxu0
      %v2712 = vadd.f32 %v1863, %v2711
      %v2713 = vpop.f32.mrf.mxu0
      %v2714 = vadd.f32 %v1868, %v2713
      %2715 = vmatmul.bf16.gmra.mxu0 %v2105
      %v2716 = vpop.f32.mrf.mxu0
      %v2717 = vadd.f32 %v1873, %v2716
      %v2718 = vpop.f32.mrf.mxu0
      %v2719 = vadd.f32 %v1878, %v2718
      %2720 = vmatmul.bf16.gmra.mxu0 %v2108
      %v2721 = vpop.f32.mrf.mxu0
      %v2722 = vadd.f32 %v1883, %v2721
      %v2723 = vpop.f32.mrf.mxu0
      %v2724 = vadd.f32 %v1888, %v2723
      %2725 = vmatmul.bf16.gmra.mxu0 %v2111
      %v2726 = vpop.f32.mrf.mxu0
      %v2727 = vadd.f32 %v1893, %v2726
      %v2728 = vpop.f32.mrf.mxu0
      %v2729 = vadd.f32 %v1898, %v2728
      %2730 = vmatmul.bf16.gmra.mxu0 %v2114
      %v2731 = vpop.f32.mrf.mxu0
      %v2732 = vadd.f32 %v1903, %v2731
      %v2733 = vpop.f32.mrf.mxu0
      %v2734 = vadd.f32 %v1908, %v2733
      %2735 = vmatmul.bf16.gmra.mxu0 %v2117
      %v2736 = vpop.f32.mrf.mxu0
      %v2737 = vadd.f32 %v1913, %v2736
      %v2738 = vpop.f32.mrf.mxu0
      %v2739 = vadd.f32 %v1918, %v2738
      %2740 = vmatmul.bf16.gmra.mxu0 %v2120
      %v2741 = vpop.f32.mrf.mxu0
      %v2742 = vadd.f32 %v1923, %v2741
      %v2743 = vpop.f32.mrf.mxu0
      %v2744 = vadd.f32 %v1928, %v2743
      %2745 = vmatmul.bf16.gmra.mxu0 %v2123
      %v2746 = vpop.f32.mrf.mxu0
      %v2747 = vadd.f32 %v1933, %v2746
      %v2748 = vpop.f32.mrf.mxu0
      %v2749 = vadd.f32 %v1938, %v2748
      %2750 = vmatmul.bf16.gmra.mxu0 %v2126
      %v2751 = vpop.f32.mrf.mxu0
      %v2752 = vadd.f32 %v1943, %v2751
      %v2753 = vpop.f32.mrf.mxu0
      %v2754 = vadd.f32 %v1948, %v2753
      %2755 = vmatmul.bf16.gmra.mxu0 %v2129
      %v2756 = vpop.f32.mrf.mxu0
      %v2757 = vadd.f32 %v1953, %v2756
      %v2758 = vpop.f32.mrf.mxu0
      %v2759 = vadd.f32 %v1958, %v2758
      %2760 = vmatmul.bf16.gmra.mxu0 %v2132
      %v2761 = vpop.f32.mrf.mxu0
      %v2762 = vadd.f32 %v1963, %v2761
      %v2763 = vpop.f32.mrf.mxu0
      %v2764 = vadd.f32 %v1968, %v2763
      %2765 = vmatmul.bf16.gmra.mxu0 %v2135
      %v2766 = vpop.f32.mrf.mxu0
      %v2767 = vadd.f32 %v1973, %v2766
      %v2768 = vpop.f32.mrf.mxu0
      %v2769 = vadd.f32 %v1978, %v2768
      %2770 = vmatmul.bf16.gmra.mxu0 %v2138
      %v2771 = vpop.f32.mrf.mxu0
      %v2772 = vadd.f32 %v1983, %v2771
      %v2773 = vpop.f32.mrf.mxu0
      %v2774 = vadd.f32 %v1988, %v2773
      %2775 = vmatmul.bf16.gmra.mxu0 %v2141
      %v2776 = vpop.f32.mrf.mxu0
      %v2777 = vadd.f32 %v1993, %v2776
      %v2778 = vpop.f32.mrf.mxu0
      %v2779 = vadd.f32 %v1998, %v2778
      %2780 = vmatmul.bf16.gmra.mxu0 %v2144
      %v2781 = vpop.f32.mrf.mxu0
      %v2782 = vadd.f32 %v2003, %v2781
      %v2783 = vpop.f32.mrf.mxu0
      %v2784 = vadd.f32 %v2008, %v2783
      %2785 = vmatmul.bf16.gmra.mxu0 %v2147
      %v2786 = vpop.f32.mrf.mxu0
      %v2787 = vadd.f32 %v2013, %v2786
      %v2788 = vpop.f32.mrf.mxu0
      %v2789 = vadd.f32 %v2018, %v2788
      %2790 = vdwg.mxu0
      %2791 = vmatpush.bf16.msra.mxu0 0
      %2792 = vmatpush.bf16.msra.mxu0 0
      %2793 = vmatpush.bf16.msra.mxu0 0
      %2794 = vmatpush.bf16.msra.mxu0 0
      %2795 = vmatpush.bf16.msra.mxu0 0
      %2796 = vmatpush.bf16.msra.mxu0 0
      %2797 = vmatpush.bf16.msra.mxu0 %v2166
      %2798 = vmatpush.bf16.msra.mxu0 %v1726
      %2799 = vmatmul.bf16.gmra.mxu0 %v2102
      %v2800 = vpop.f32.mrf.mxu0
      %v2801 = vadd.f32 %v1863, %v2800
      %v2802 = vpop.f32.mrf.mxu0
      %v2803 = vadd.f32 %v1868, %v2802
      %2804 = vmatmul.bf16.gmra.mxu0 %v2105
      %v2805 = vpop.f32.mrf.mxu0
      %v2806 = vadd.f32 %v1873, %v2805
      %v2807 = vpop.f32.mrf.mxu0
      %v2808 = vadd.f32 %v1878, %v2807
      %2809 = vmatmul.bf16.gmra.mxu0 %v2108
      %v2810 = vpop.f32.mrf.mxu0
      %v2811 = vadd.f32 %v1883, %v2810
      %v2812 = vpop.f32.mrf.mxu0
      %v2813 = vadd.f32 %v1888, %v2812
      %2814 = vmatmul.bf16.gmra.mxu0 %v2111
      %v2815 = vpop.f32.mrf.mxu0
      %v2816 = vadd.f32 %v1893, %v2815
      %v2817 = vpop.f32.mrf.mxu0
      %v2818 = vadd.f32 %v1898, %v2817
      %2819 = vmatmul.bf16.gmra.mxu0 %v2114
      %v2820 = vpop.f32.mrf.mxu0
      %v2821 = vadd.f32 %v1903, %v2820
      %v2822 = vpop.f32.mrf.mxu0
      %v2823 = vadd.f32 %v1908, %v2822
      %2824 = vmatmul.bf16.gmra.mxu0 %v2117
      %v2825 = vpop.f32.mrf.mxu0
      %v2826 = vadd.f32 %v1913, %v2825
      %v2827 = vpop.f32.mrf.mxu0
      %v2828 = vadd.f32 %v1918, %v2827
      %2829 = vmatmul.bf16.gmra.mxu0 %v2120
      %v2830 = vpop.f32.mrf.mxu0
      %v2831 = vadd.f32 %v1923, %v2830
      %v2832 = vpop.f32.mrf.mxu0
      %v2833 = vadd.f32 %v1928, %v2832
      %2834 = vmatmul.bf16.gmra.mxu0 %v2123
      %v2835 = vpop.f32.mrf.mxu0
      %v2836 = vadd.f32 %v1933, %v2835
      %v2837 = vpop.f32.mrf.mxu0
      %v2838 = vadd.f32 %v1938, %v2837
      %2839 = vmatmul.bf16.gmra.mxu0 %v2126
      %v2840 = vpop.f32.mrf.mxu0
      %v2841 = vadd.f32 %v1943, %v2840
      %v2842 = vpop.f32.mrf.mxu0
      %v2843 = vadd.f32 %v1948, %v2842
      %2844 = vmatmul.bf16.gmra.mxu0 %v2129
      %v2845 = vpop.f32.mrf.mxu0
      %v2846 = vadd.f32 %v1953, %v2845
      %v2847 = vpop.f32.mrf.mxu0
      %v2848 = vadd.f32 %v1958, %v2847
      %2849 = vmatmul.bf16.gmra.mxu0 %v2132
      %v2850 = vpop.f32.mrf.mxu0
      %v2851 = vadd.f32 %v1963, %v2850
      %v2852 = vpop.f32.mrf.mxu0
      %v2853 = vadd.f32 %v1968, %v2852
      %2854 = vmatmul.bf16.gmra.mxu0 %v2135
      %v2855 = vpop.f32.mrf.mxu0
      %v2856 = vadd.f32 %v1973, %v2855
      %v2857 = vpop.f32.mrf.mxu0
      %v2858 = vadd.f32 %v1978, %v2857
      %2859 = vmatmul.bf16.gmra.mxu0 %v2138
      %v2860 = vpop.f32.mrf.mxu0
      %v2861 = vadd.f32 %v1983, %v2860
      %v2862 = vpop.f32.mrf.mxu0
      %v2863 = vadd.f32 %v1988, %v2862
      %2864 = vmatmul.bf16.gmra.mxu0 %v2141
      %v2865 = vpop.f32.mrf.mxu0
      %v2866 = vadd.f32 %v1993, %v2865
      %v2867 = vpop.f32.mrf.mxu0
      %v2868 = vadd.f32 %v1998, %v2867
      %2869 = vmatmul.bf16.gmra.mxu0 %v2144
      %v2870 = vpop.f32.mrf.mxu0
      %v2871 = vadd.f32 %v2003, %v2870
      %v2872 = vpop.f32.mrf.mxu0
      %v2873 = vadd.f32 %v2008, %v2872
      %2874 = vmatmul.bf16.gmra.mxu0 %v2147
      %v2875 = vpop.f32.mrf.mxu0
      %v2876 = vadd.f32 %v2013, %v2875
      %v2877 = vpop.f32.mrf.mxu0
      %v2878 = vadd.f32 %v2018, %v2877
      %2879 = vdwg.mxu0
      %v2880 = vmax.f32 %v2178, 0.0
      %v2881 = vmax.f32 %v2267, 0.0
      %v2882 = vmax.f32 %v2356, 0.0
      %v2883 = vmax.f32 %v2445, 0.0
      %v2884 = vmax.f32 %v2534, 0.0
      %v2885 = vmax.f32 %v2623, 0.0
      %v2886 = vmax.f32 %v2712, 0.0
      %v2887 = vmax.f32 %v2801, 0.0
      %v2888 = vmax.f32 %v2180, 0.0
      %v2889 = vmax.f32 %v2269, 0.0
      %v2890 = vmax.f32 %v2358, 0.0
      %v2891 = vmax.f32 %v2447, 0.0
      %v2892 = vmax.f32 %v2536, 0.0
      %v2893 = vmax.f32 %v2625, 0.0
      %v2894 = vmax.f32 %v2714, 0.0
      %v2895 = vmax.f32 %v2803, 0.0
      %v2896 = vmax.f32 %v2183, 0.0
      %v2897 = vmax.f32 %v2272, 0.0
      %v2898 = vmax.f32 %v2361, 0.0
      %v2899 = vmax.f32 %v2450, 0.0
      %v2900 = vmax.f32 %v2539, 0.0
      %v2901 = vmax.f32 %v2628, 0.0
      %v2902 = vmax.f32 %v2717, 0.0
      %v2903 = vmax.f32 %v2806, 0.0
      %v2904 = vmax.f32 %v2185, 0.0
      %v2905 = vmax.f32 %v2274, 0.0
      %v2906 = vmax.f32 %v2363, 0.0
      %v2907 = vmax.f32 %v2452, 0.0
      %v2908 = vmax.f32 %v2541, 0.0
      %v2909 = vmax.f32 %v2630, 0.0
      %v2910 = vmax.f32 %v2719, 0.0
      %v2911 = vmax.f32 %v2808, 0.0
      %v2912 = vmax.f32 %v2188, 0.0
      %v2913 = vmax.f32 %v2277, 0.0
      %v2914 = vmax.f32 %v2366, 0.0
      %v2915 = vmax.f32 %v2455, 0.0
      %v2916 = vmax.f32 %v2544, 0.0
      %v2917 = vmax.f32 %v2633, 0.0
      %v2918 = vmax.f32 %v2722, 0.0
      %v2919 = vmax.f32 %v2811, 0.0
      %v2920 = vmax.f32 %v2190, 0.0
      %v2921 = vmax.f32 %v2279, 0.0
      %v2922 = vmax.f32 %v2368, 0.0
      %v2923 = vmax.f32 %v2457, 0.0
      %v2924 = vmax.f32 %v2546, 0.0
      %v2925 = vmax.f32 %v2635, 0.0
      %v2926 = vmax.f32 %v2724, 0.0
      %v2927 = vmax.f32 %v2813, 0.0
      %v2928 = vmax.f32 %v2193, 0.0
      %v2929 = vmax.f32 %v2282, 0.0
      %v2930 = vmax.f32 %v2371, 0.0
      %v2931 = vmax.f32 %v2460, 0.0
      %v2932 = vmax.f32 %v2549, 0.0
      %v2933 = vmax.f32 %v2638, 0.0
      %v2934 = vmax.f32 %v2727, 0.0
      %v2935 = vmax.f32 %v2816, 0.0
      %v2936 = vmax.f32 %v2195, 0.0
      %v2937 = vmax.f32 %v2284, 0.0
      %v2938 = vmax.f32 %v2373, 0.0
      %v2939 = vmax.f32 %v2462, 0.0
      %v2940 = vmax.f32 %v2551, 0.0
      %v2941 = vmax.f32 %v2640, 0.0
      %v2942 = vmax.f32 %v2729, 0.0
      %v2943 = vmax.f32 %v2818, 0.0
      %v2944 = vmax.f32 %v2198, 0.0
      %v2945 = vmax.f32 %v2287, 0.0
      %v2946 = vmax.f32 %v2376, 0.0
      %v2947 = vmax.f32 %v2465, 0.0
      %v2948 = vmax.f32 %v2554, 0.0
      %v2949 = vmax.f32 %v2643, 0.0
      %v2950 = vmax.f32 %v2732, 0.0
      %v2951 = vmax.f32 %v2821, 0.0
      %v2952 = vmax.f32 %v2200, 0.0
      %v2953 = vmax.f32 %v2289, 0.0
      %v2954 = vmax.f32 %v2378, 0.0
      %v2955 = vmax.f32 %v2467, 0.0
      %v2956 = vmax.f32 %v2556, 0.0
      %v2957 = vmax.f32 %v2645, 0.0
      %v2958 = vmax.f32 %v2734, 0.0
      %v2959 = vmax.f32 %v2823, 0.0
      %v2960 = vmax.f32 %v2203, 0.0
      %v2961 = vmax.f32 %v2292, 0.0
      %v2962 = vmax.f32 %v2381, 0.0
      %v2963 = vmax.f32 %v2470, 0.0
      %v2964 = vmax.f32 %v2559, 0.0
      %v2965 = vmax.f32 %v2648, 0.0
      %v2966 = vmax.f32 %v2737, 0.0
      %v2967 = vmax.f32 %v2826, 0.0
      %v2968 = vmax.f32 %v2205, 0.0
      %v2969 = vmax.f32 %v2294, 0.0
      %v2970 = vmax.f32 %v2383, 0.0
      %v2971 = vmax.f32 %v2472, 0.0
      %v2972 = vmax.f32 %v2561, 0.0
      %v2973 = vmax.f32 %v2650, 0.0
      %v2974 = vmax.f32 %v2739, 0.0
      %v2975 = vmax.f32 %v2828, 0.0
      %v2976 = vmax.f32 %v2208, 0.0
      %v2977 = vmax.f32 %v2297, 0.0
      %v2978 = vmax.f32 %v2386, 0.0
      %v2979 = vmax.f32 %v2475, 0.0
      %v2980 = vmax.f32 %v2564, 0.0
      %v2981 = vmax.f32 %v2653, 0.0
      %v2982 = vmax.f32 %v2742, 0.0
      %v2983 = vmax.f32 %v2831, 0.0
      %v2984 = vmax.f32 %v2210, 0.0
      %v2985 = vmax.f32 %v2299, 0.0
      %v2986 = vmax.f32 %v2388, 0.0
      %v2987 = vmax.f32 %v2477, 0.0
      %v2988 = vmax.f32 %v2566, 0.0
      %v2989 = vmax.f32 %v2655, 0.0
      %v2990 = vmax.f32 %v2744, 0.0
      %v2991 = vmax.f32 %v2833, 0.0
      %v2992 = vmax.f32 %v2213, 0.0
      %v2993 = vmax.f32 %v2302, 0.0
      %v2994 = vmax.f32 %v2391, 0.0
      %v2995 = vmax.f32 %v2480, 0.0
      %v2996 = vmax.f32 %v2569, 0.0
      %v2997 = vmax.f32 %v2658, 0.0
      %v2998 = vmax.f32 %v2747, 0.0
      %v2999 = vmax.f32 %v2836, 0.0
      %v3000 = vmax.f32 %v2215, 0.0
      %v3001 = vmax.f32 %v2304, 0.0
      %v3002 = vmax.f32 %v2393, 0.0
      %v3003 = vmax.f32 %v2482, 0.0
      %v3004 = vmax.f32 %v2571, 0.0
      %v3005 = vmax.f32 %v2660, 0.0
      %v3006 = vmax.f32 %v2749, 0.0
      %v3007 = vmax.f32 %v2838, 0.0
      %v3008 = vmax.f32 %v2218, 0.0
      %v3009 = vmax.f32 %v2307, 0.0
      %v3010 = vmax.f32 %v2396, 0.0
      %v3011 = vmax.f32 %v2485, 0.0
      %v3012 = vmax.f32 %v2574, 0.0
      %v3013 = vmax.f32 %v2663, 0.0
      %v3014 = vmax.f32 %v2752, 0.0
      %v3015 = vmax.f32 %v2841, 0.0
      %v3016 = vmax.f32 %v2220, 0.0
      %v3017 = vmax.f32 %v2309, 0.0
      %v3018 = vmax.f32 %v2398, 0.0
      %v3019 = vmax.f32 %v2487, 0.0
      %v3020 = vmax.f32 %v2576, 0.0
      %v3021 = vmax.f32 %v2665, 0.0
      %v3022 = vmax.f32 %v2754, 0.0
      %v3023 = vmax.f32 %v2843, 0.0
      %v3024 = vmax.f32 %v2223, 0.0
      %v3025 = vmax.f32 %v2312, 0.0
      %v3026 = vmax.f32 %v2401, 0.0
      %v3027 = vmax.f32 %v2490, 0.0
      %v3028 = vmax.f32 %v2579, 0.0
      %v3029 = vmax.f32 %v2668, 0.0
      %v3030 = vmax.f32 %v2757, 0.0
      %v3031 = vmax.f32 %v2846, 0.0
      %v3032 = vmax.f32 %v2225, 0.0
      %v3033 = vmax.f32 %v2314, 0.0
      %v3034 = vmax.f32 %v2403, 0.0
      %v3035 = vmax.f32 %v2492, 0.0
      %v3036 = vmax.f32 %v2581, 0.0
      %v3037 = vmax.f32 %v2670, 0.0
      %v3038 = vmax.f32 %v2759, 0.0
      %v3039 = vmax.f32 %v2848, 0.0
      %v3040 = vmax.f32 %v2228, 0.0
      %v3041 = vmax.f32 %v2317, 0.0
      %v3042 = vmax.f32 %v2406, 0.0
      %v3043 = vmax.f32 %v2495, 0.0
      %v3044 = vmax.f32 %v2584, 0.0
      %v3045 = vmax.f32 %v2673, 0.0
      %v3046 = vmax.f32 %v2762, 0.0
      %v3047 = vmax.f32 %v2851, 0.0
      %v3048 = vmax.f32 %v2230, 0.0
      %v3049 = vmax.f32 %v2319, 0.0
      %v3050 = vmax.f32 %v2408, 0.0
      %v3051 = vmax.f32 %v2497, 0.0
      %v3052 = vmax.f32 %v2586, 0.0
      %v3053 = vmax.f32 %v2675, 0.0
      %v3054 = vmax.f32 %v2764, 0.0
      %v3055 = vmax.f32 %v2853, 0.0
      %v3056 = vmax.f32 %v2233, 0.0
      %v3057 = vmax.f32 %v2322, 0.0
      %v3058 = vmax.f32 %v2411, 0.0
      %v3059 = vmax.f32 %v2500, 0.0
      %v3060 = vmax.f32 %v2589, 0.0
      %v3061 = vmax.f32 %v2678, 0.0
      %v3062 = vmax.f32 %v2767, 0.0
      %v3063 = vmax.f32 %v2856, 0.0
      %v3064 = vmax.f32 %v2235, 0.0
      %v3065 = vmax.f32 %v2324, 0.0
      %v3066 = vmax.f32 %v2413, 0.0
      %v3067 = vmax.f32 %v2502, 0.0
      %v3068 = vmax.f32 %v2591, 0.0
      %v3069 = vmax.f32 %v2680, 0.0
      %v3070 = vmax.f32 %v2769, 0.0
      %v3071 = vmax.f32 %v2858, 0.0
      %v3072 = vmax.f32 %v2238, 0.0
      %v3073 = vmax.f32 %v2327, 0.0
      %v3074 = vmax.f32 %v2416, 0.0
      %v3075 = vmax.f32 %v2505, 0.0
      %v3076 = vmax.f32 %v2594, 0.0
      %v3077 = vmax.f32 %v2683, 0.0
      %v3078 = vmax.f32 %v2772, 0.0
      %v3079 = vmax.f32 %v2861, 0.0
      %v3080 = vmax.f32 %v2240, 0.0
      %v3081 = vmax.f32 %v2329, 0.0
      %v3082 = vmax.f32 %v2418, 0.0
      %v3083 = vmax.f32 %v2507, 0.0
      %v3084 = vmax.f32 %v2596, 0.0
      %v3085 = vmax.f32 %v2685, 0.0
      %v3086 = vmax.f32 %v2774, 0.0
      %v3087 = vmax.f32 %v2863, 0.0
      %v3088 = vmax.f32 %v2243, 0.0
      %v3089 = vmax.f32 %v2332, 0.0
      %v3090 = vmax.f32 %v2421, 0.0
      %v3091 = vmax.f32 %v2510, 0.0
      %v3092 = vmax.f32 %v2599, 0.0
      %v3093 = vmax.f32 %v2688, 0.0
      %v3094 = vmax.f32 %v2777, 0.0
      %v3095 = vmax.f32 %v2866, 0.0
      %v3096 = vmax.f32 %v2245, 0.0
      %v3097 = vmax.f32 %v2334, 0.0
      %v3098 = vmax.f32 %v2423, 0.0
      %v3099 = vmax.f32 %v2512, 0.0
      %v3100 = vmax.f32 %v2601, 0.0
      %v3101 = vmax.f32 %v2690, 0.0
      %v3102 = vmax.f32 %v2779, 0.0
      %v3103 = vmax.f32 %v2868, 0.0
      %v3104 = vmax.f32 %v2248, 0.0
      %v3105 = vmax.f32 %v2337, 0.0
      %v3106 = vmax.f32 %v2426, 0.0
      %v3107 = vmax.f32 %v2515, 0.0
      %v3108 = vmax.f32 %v2604, 0.0
      %v3109 = vmax.f32 %v2693, 0.0
      %v3110 = vmax.f32 %v2782, 0.0
      %v3111 = vmax.f32 %v2871, 0.0
      %v3112 = vmax.f32 %v2250, 0.0
      %v3113 = vmax.f32 %v2339, 0.0
      %v3114 = vmax.f32 %v2428, 0.0
      %v3115 = vmax.f32 %v2517, 0.0
      %v3116 = vmax.f32 %v2606, 0.0
      %v3117 = vmax.f32 %v2695, 0.0
      %v3118 = vmax.f32 %v2784, 0.0
      %v3119 = vmax.f32 %v2873, 0.0
      %v3120 = vmax.f32 %v2253, 0.0
      %v3121 = vmax.f32 %v2342, 0.0
      %v3122 = vmax.f32 %v2431, 0.0
      %v3123 = vmax.f32 %v2520, 0.0
      %v3124 = vmax.f32 %v2609, 0.0
      %v3125 = vmax.f32 %v2698, 0.0
      %v3126 = vmax.f32 %v2787, 0.0
      %v3127 = vmax.f32 %v2876, 0.0
      %v3128 = vmax.f32 %v2255, 0.0
      %v3129 = vmax.f32 %v2344, 0.0
      %v3130 = vmax.f32 %v2433, 0.0
      %v3131 = vmax.f32 %v2522, 0.0
      %v3132 = vmax.f32 %v2611, 0.0
      %v3133 = vmax.f32 %v2700, 0.0
      %v3134 = vmax.f32 %v2789, 0.0
      %v3135 = vmax.f32 %v2878, 0.0
      %v3136 = vpack.c.bf16 %v2881, %v2880
      %v3137 = vpack.c.bf16 %v2883, %v2882
      %v3138 = vpack.c.bf16 %v2885, %v2884
      %v3139 = vpack.c.bf16 %v2887, %v2886
      %v3140 = vpack.c.bf16 %v2889, %v2888
      %v3141 = vpack.c.bf16 %v2891, %v2890
      %v3142 = vpack.c.bf16 %v2893, %v2892
      %v3143 = vpack.c.bf16 %v2895, %v2894
      %v3144 = vpack.c.bf16 %v2897, %v2896
      %v3145 = vpack.c.bf16 %v2899, %v2898
      %v3146 = vpack.c.bf16 %v2901, %v2900
      %v3147 = vpack.c.bf16 %v2903, %v2902
      %v3148 = vpack.c.bf16 %v2905, %v2904
      %v3149 = vpack.c.bf16 %v2907, %v2906
      %v3150 = vpack.c.bf16 %v2909, %v2908
      %v3151 = vpack.c.bf16 %v2911, %v2910
      %v3152 = vpack.c.bf16 %v2913, %v2912
      %v3153 = vpack.c.bf16 %v2915, %v2914
      %v3154 = vpack.c.bf16 %v2917, %v2916
      %v3155 = vpack.c.bf16 %v2919, %v2918
      %v3156 = vpack.c.bf16 %v2921, %v2920
      %v3157 = vpack.c.bf16 %v2923, %v2922
      %v3158 = vpack.c.bf16 %v2925, %v2924
      %v3159 = vpack.c.bf16 %v2927, %v2926
      %v3160 = vpack.c.bf16 %v2929, %v2928
      %v3161 = vpack.c.bf16 %v2931, %v2930
      %v3162 = vpack.c.bf16 %v2933, %v2932
      %v3163 = vpack.c.bf16 %v2935, %v2934
      %v3164 = vpack.c.bf16 %v2937, %v2936
      %v3165 = vpack.c.bf16 %v2939, %v2938
      %v3166 = vpack.c.bf16 %v2941, %v2940
      %v3167 = vpack.c.bf16 %v2943, %v2942
      %v3168 = vpack.c.bf16 %v2945, %v2944
      %v3169 = vpack.c.bf16 %v2947, %v2946
      %v3170 = vpack.c.bf16 %v2949, %v2948
      %v3171 = vpack.c.bf16 %v2951, %v2950
      %v3172 = vpack.c.bf16 %v2953, %v2952
      %v3173 = vpack.c.bf16 %v2955, %v2954
      %v3174 = vpack.c.bf16 %v2957, %v2956
      %v3175 = vpack.c.bf16 %v2959, %v2958
      %v3176 = vpack.c.bf16 %v2961, %v2960
      %v3177 = vpack.c.bf16 %v2963, %v2962
      %v3178 = vpack.c.bf16 %v2965, %v2964
      %v3179 = vpack.c.bf16 %v2967, %v2966
      %v3180 = vpack.c.bf16 %v2969, %v2968
      %v3181 = vpack.c.bf16 %v2971, %v2970
      %v3182 = vpack.c.bf16 %v2973, %v2972
      %v3183 = vpack.c.bf16 %v2975, %v2974
      %v3184 = vpack.c.bf16 %v2977, %v2976
      %v3185 = vpack.c.bf16 %v2979, %v2978
      %v3186 = vpack.c.bf16 %v2981, %v2980
      %v3187 = vpack.c.bf16 %v2983, %v2982
      %v3188 = vpack.c.bf16 %v2985, %v2984
      %v3189 = vpack.c.bf16 %v2987, %v2986
      %v3190 = vpack.c.bf16 %v2989, %v2988
      %v3191 = vpack.c.bf16 %v2991, %v2990
      %v3192 = vpack.c.bf16 %v2993, %v2992
      %v3193 = vpack.c.bf16 %v2995, %v2994
      %v3194 = vpack.c.bf16 %v2997, %v2996
      %v3195 = vpack.c.bf16 %v2999, %v2998
      %v3196 = vpack.c.bf16 %v3001, %v3000
      %v3197 = vpack.c.bf16 %v3003, %v3002
      %v3198 = vpack.c.bf16 %v3005, %v3004
      %v3199 = vpack.c.bf16 %v3007, %v3006
      %v3200 = vpack.c.bf16 %v3009, %v3008
      %v3201 = vpack.c.bf16 %v3011, %v3010
      %v3202 = vpack.c.bf16 %v3013, %v3012
      %v3203 = vpack.c.bf16 %v3015, %v3014
      %v3204 = vpack.c.bf16 %v3017, %v3016
      %v3205 = vpack.c.bf16 %v3019, %v3018
      %v3206 = vpack.c.bf16 %v3021, %v3020
      %v3207 = vpack.c.bf16 %v3023, %v3022
      %v3208 = vpack.c.bf16 %v3025, %v3024
      %v3209 = vpack.c.bf16 %v3027, %v3026
      %v3210 = vpack.c.bf16 %v3029, %v3028
      %v3211 = vpack.c.bf16 %v3031, %v3030
      %v3212 = vpack.c.bf16 %v3033, %v3032
      %v3213 = vpack.c.bf16 %v3035, %v3034
      %v3214 = vpack.c.bf16 %v3037, %v3036
      %v3215 = vpack.c.bf16 %v3039, %v3038
      %v3216 = vpack.c.bf16 %v3041, %v3040
      %v3217 = vpack.c.bf16 %v3043, %v3042
      %v3218 = vpack.c.bf16 %v3045, %v3044
      %v3219 = vpack.c.bf16 %v3047, %v3046
      %v3220 = vpack.c.bf16 %v3049, %v3048
      %v3221 = vpack.c.bf16 %v3051, %v3050
      %v3222 = vpack.c.bf16 %v3053, %v3052
      %v3223 = vpack.c.bf16 %v3055, %v3054
      %v3224 = vpack.c.bf16 %v3057, %v3056
      %v3225 = vpack.c.bf16 %v3059, %v3058
      %v3226 = vpack.c.bf16 %v3061, %v3060
      %v3227 = vpack.c.bf16 %v3063, %v3062
      %v3228 = vpack.c.bf16 %v3065, %v3064
      %v3229 = vpack.c.bf16 %v3067, %v3066
      %v3230 = vpack.c.bf16 %v3069, %v3068
      %v3231 = vpack.c.bf16 %v3071, %v3070
      %v3232 = vpack.c.bf16 %v3073, %v3072
      %v3233 = vpack.c.bf16 %v3075, %v3074
      %v3234 = vpack.c.bf16 %v3077, %v3076
      %v3235 = vpack.c.bf16 %v3079, %v3078
      %v3236 = vpack.c.bf16 %v3081, %v3080
      %v3237 = vpack.c.bf16 %v3083, %v3082
      %v3238 = vpack.c.bf16 %v3085, %v3084
      %v3239 = vpack.c.bf16 %v3087, %v3086
      %v3240 = vpack.c.bf16 %v3089, %v3088
      %v3241 = vpack.c.bf16 %v3091, %v3090
      %v3242 = vpack.c.bf16 %v3093, %v3092
      %v3243 = vpack.c.bf16 %v3095, %v3094
      %v3244 = vpack.c.bf16 %v3097, %v3096
      %v3245 = vpack.c.bf16 %v3099, %v3098
      %v3246 = vpack.c.bf16 %v3101, %v3100
      %v3247 = vpack.c.bf16 %v3103, %v3102
      %v3248 = vpack.c.bf16 %v3105, %v3104
      %v3249 = vpack.c.bf16 %v3107, %v3106
      %v3250 = vpack.c.bf16 %v3109, %v3108
      %v3251 = vpack.c.bf16 %v3111, %v3110
      %v3252 = vpack.c.bf16 %v3113, %v3112
      %v3253 = vpack.c.bf16 %v3115, %v3114
      %v3254 = vpack.c.bf16 %v3117, %v3116
      %v3255 = vpack.c.bf16 %v3119, %v3118
      %v3256 = vpack.c.bf16 %v3121, %v3120
      %v3257 = vpack.c.bf16 %v3123, %v3122
      %v3258 = vpack.c.bf16 %v3125, %v3124
      %v3259 = vpack.c.bf16 %v3127, %v3126
      %v3260 = vpack.c.bf16 %v3129, %v3128
      %v3261 = vpack.c.bf16 %v3131, %v3130
      %v3262 = vpack.c.bf16 %v3133, %v3132
      %v3263 = vpack.c.bf16 %v3135, %v3134
      %v3265 = vperm.slane %v352, 0
      %v3266 = vperm.slane %v352, 1
      %v3267 = vperm.slane %v352, 2
      %v3268 = vperm.slane %v352, 3
      %v3269 = vperm.slane %v352, 4
      %v3270 = vperm.slane %v352, 5
      %v3271 = vperm.slane %v352, 6
      %v3272 = vperm.slane %v352, 7
      %v3273 = vrot.slane %v3266, 4
      %v3274 = vrot.slane %v3268, 4
      %v3275 = vrot.slane %v3270, 4
      %v3276 = vrot.slane %v3272, 4
      %v3277 = vsel %vm1771, %v3265, %v3273
      %v3278 = vsel %vm1771, %v3267, %v3274
      %v3279 = vsel %vm1771, %v3269, %v3275
      %v3280 = vsel %vm1771, %v3271, %v3276
      %v3285 = vmul.f32 %v348, %v3277
      %v3286 = vmul.f32 %v349, %v3278
      %v3287 = vmul.f32 %v350, %v3279
      %v3288 = vmul.f32 %v351, %v3280
      %3293 = vst [vmem:[#allocation1] ss:$2 sm:$0xff] %v3285
      %s3294 = scalar_lea.vmem [#allocation1], 16
      %3295 = vst [vmem:[%s3294] ss:$2 sm:$0xff] %v3286
      %s3296 = scalar_lea.vmem [#allocation1], 32
      %3297 = vst [vmem:[%s3296] ss:$2 sm:$0xff] %v3287
      %s3298 = scalar_lea.vmem [#allocation1], 48
      %3299 = vst [vmem:[%s3298] ss:$2 sm:$0xff] %v3288
      %v3300 = vld.sshfl [vmem:[#allocation1] sm:$0xff pattern:$0x75316420]
      %v3301 = vld.sshfl [vmem:[#allocation1 + $0x8] sm:$0xff pattern:$0x75316420]
      %v3302 = vld.sshfl [vmem:[#allocation1 + $0x10] sm:$0xff pattern:$0x75316420]
      %v3303 = vld.sshfl [vmem:[#allocation1 + $0x18] sm:$0xff pattern:$0x75316420]
      %v3304 = vld.sshfl [vmem:[#allocation1 + $0x20] sm:$0xff pattern:$0x75316420]
      %v3305 = vld.sshfl [vmem:[#allocation1 + $0x28] sm:$0xff pattern:$0x75316420]
      %v3306 = vld.sshfl [vmem:[#allocation1 + $0x30] sm:$0xff pattern:$0x75316420]
      %v3307 = vld.sshfl [vmem:[#allocation1 + $0x38] sm:$0xff pattern:$0x75316420]
      %v3316 = vpack.c.bf16 %v3301, %v3300
      %v3317 = vpack.c.bf16 %v3303, %v3302
      %v3318 = vpack.c.bf16 %v3305, %v3304
      %v3319 = vpack.c.bf16 %v3307, %v3306
      %v3328 = vpack.c.bf16 %v3266, %v3265
      %v3329 = vpack.c.bf16 %v3268, %v3267
      %v3330 = vpack.c.bf16 %v3270, %v3269
      %v3331 = vpack.c.bf16 %v3272, %v3271
      %v3460 = vunpack.c.l.b16 %v3136
      %v3461 = vunpack.c.h.b16 %v3136
      %v3462 = vunpack.c.l.b16 %v3137
      %v3463 = vunpack.c.h.b16 %v3137
      %v3464 = vunpack.c.l.b16 %v3138
      %v3465 = vunpack.c.h.b16 %v3138
      %v3466 = vunpack.c.l.b16 %v3139
      %v3467 = vunpack.c.h.b16 %v3139
      %v3468 = vunpack.c.l.b16 %v3140
      %v3469 = vunpack.c.h.b16 %v3140
      %v3470 = vunpack.c.l.b16 %v3141
      %v3471 = vunpack.c.h.b16 %v3141
      %v3472 = vunpack.c.l.b16 %v3142
      %v3473 = vunpack.c.h.b16 %v3142
      %v3474 = vunpack.c.l.b16 %v3143
      %v3475 = vunpack.c.h.b16 %v3143
      %v3476 = vunpack.c.l.b16 %v3144
      %v3477 = vunpack.c.h.b16 %v3144
      %v3478 = vunpack.c.l.b16 %v3145
      %v3479 = vunpack.c.h.b16 %v3145
      %v3480 = vunpack.c.l.b16 %v3146
      %v3481 = vunpack.c.h.b16 %v3146
      %v3482 = vunpack.c.l.b16 %v3147
      %v3483 = vunpack.c.h.b16 %v3147
      %v3484 = vunpack.c.l.b16 %v3148
      %v3485 = vunpack.c.h.b16 %v3148
      %v3486 = vunpack.c.l.b16 %v3149
      %v3487 = vunpack.c.h.b16 %v3149
      %v3488 = vunpack.c.l.b16 %v3150
      %v3489 = vunpack.c.h.b16 %v3150
      %v3490 = vunpack.c.l.b16 %v3151
      %v3491 = vunpack.c.h.b16 %v3151
      %v3492 = vunpack.c.l.b16 %v3152
      %v3493 = vunpack.c.h.b16 %v3152
      %v3494 = vunpack.c.l.b16 %v3153
      %v3495 = vunpack.c.h.b16 %v3153
      %v3496 = vunpack.c.l.b16 %v3154
      %v3497 = vunpack.c.h.b16 %v3154
      %v3498 = vunpack.c.l.b16 %v3155
      %v3499 = vunpack.c.h.b16 %v3155
      %v3500 = vunpack.c.l.b16 %v3156
      %v3501 = vunpack.c.h.b16 %v3156
      %v3502 = vunpack.c.l.b16 %v3157
      %v3503 = vunpack.c.h.b16 %v3157
      %v3504 = vunpack.c.l.b16 %v3158
      %v3505 = vunpack.c.h.b16 %v3158
      %v3506 = vunpack.c.l.b16 %v3159
      %v3507 = vunpack.c.h.b16 %v3159
      %v3508 = vunpack.c.l.b16 %v3160
      %v3509 = vunpack.c.h.b16 %v3160
      %v3510 = vunpack.c.l.b16 %v3161
      %v3511 = vunpack.c.h.b16 %v3161
      %v3512 = vunpack.c.l.b16 %v3162
      %v3513 = vunpack.c.h.b16 %v3162
      %v3514 = vunpack.c.l.b16 %v3163
      %v3515 = vunpack.c.h.b16 %v3163
      %v3516 = vunpack.c.l.b16 %v3164
      %v3517 = vunpack.c.h.b16 %v3164
      %v3518 = vunpack.c.l.b16 %v3165
      %v3519 = vunpack.c.h.b16 %v3165
      %v3520 = vunpack.c.l.b16 %v3166
      %v3521 = vunpack.c.h.b16 %v3166
      %v3522 = vunpack.c.l.b16 %v3167
      %v3523 = vunpack.c.h.b16 %v3167
      %v3524 = vunpack.c.l.b16 %v3168
      %v3525 = vunpack.c.h.b16 %v3168
      %v3526 = vunpack.c.l.b16 %v3169
      %v3527 = vunpack.c.h.b16 %v3169
      %v3528 = vunpack.c.l.b16 %v3170
      %v3529 = vunpack.c.h.b16 %v3170
      %v3530 = vunpack.c.l.b16 %v3171
      %v3531 = vunpack.c.h.b16 %v3171
      %v3532 = vunpack.c.l.b16 %v3172
      %v3533 = vunpack.c.h.b16 %v3172
      %v3534 = vunpack.c.l.b16 %v3173
      %v3535 = vunpack.c.h.b16 %v3173
      %v3536 = vunpack.c.l.b16 %v3174
      %v3537 = vunpack.c.h.b16 %v3174
      %v3538 = vunpack.c.l.b16 %v3175
      %v3539 = vunpack.c.h.b16 %v3175
      %v3540 = vunpack.c.l.b16 %v3176
      %v3541 = vunpack.c.h.b16 %v3176
      %v3542 = vunpack.c.l.b16 %v3177
      %v3543 = vunpack.c.h.b16 %v3177
      %v3544 = vunpack.c.l.b16 %v3178
      %v3545 = vunpack.c.h.b16 %v3178
      %v3546 = vunpack.c.l.b16 %v3179
      %v3547 = vunpack.c.h.b16 %v3179
      %v3548 = vunpack.c.l.b16 %v3180
      %v3549 = vunpack.c.h.b16 %v3180
      %v3550 = vunpack.c.l.b16 %v3181
      %v3551 = vunpack.c.h.b16 %v3181
      %v3552 = vunpack.c.l.b16 %v3182
      %v3553 = vunpack.c.h.b16 %v3182
      %v3554 = vunpack.c.l.b16 %v3183
      %v3555 = vunpack.c.h.b16 %v3183
      %v3556 = vunpack.c.l.b16 %v3184
      %v3557 = vunpack.c.h.b16 %v3184
      %v3558 = vunpack.c.l.b16 %v3185
      %v3559 = vunpack.c.h.b16 %v3185
      %v3560 = vunpack.c.l.b16 %v3186
      %v3561 = vunpack.c.h.b16 %v3186
      %v3562 = vunpack.c.l.b16 %v3187
      %v3563 = vunpack.c.h.b16 %v3187
      %v3564 = vunpack.c.l.b16 %v3188
      %v3565 = vunpack.c.h.b16 %v3188
      %v3566 = vunpack.c.l.b16 %v3189
      %v3567 = vunpack.c.h.b16 %v3189
      %v3568 = vunpack.c.l.b16 %v3190
      %v3569 = vunpack.c.h.b16 %v3190
      %v3570 = vunpack.c.l.b16 %v3191
      %v3571 = vunpack.c.h.b16 %v3191
      %v3572 = vunpack.c.l.b16 %v3192
      %v3573 = vunpack.c.h.b16 %v3192
      %v3574 = vunpack.c.l.b16 %v3193
      %v3575 = vunpack.c.h.b16 %v3193
      %v3576 = vunpack.c.l.b16 %v3194
      %v3577 = vunpack.c.h.b16 %v3194
      %v3578 = vunpack.c.l.b16 %v3195
      %v3579 = vunpack.c.h.b16 %v3195
      %v3580 = vunpack.c.l.b16 %v3196
      %v3581 = vunpack.c.h.b16 %v3196
      %v3582 = vunpack.c.l.b16 %v3197
      %v3583 = vunpack.c.h.b16 %v3197
      %v3584 = vunpack.c.l.b16 %v3198
      %v3585 = vunpack.c.h.b16 %v3198
      %v3586 = vunpack.c.l.b16 %v3199
      %v3587 = vunpack.c.h.b16 %v3199
      %v3588 = vunpack.c.l.b16 %v3200
      %v3589 = vunpack.c.h.b16 %v3200
      %v3590 = vunpack.c.l.b16 %v3201
      %v3591 = vunpack.c.h.b16 %v3201
      %v3592 = vunpack.c.l.b16 %v3202
      %v3593 = vunpack.c.h.b16 %v3202
      %v3594 = vunpack.c.l.b16 %v3203
      %v3595 = vunpack.c.h.b16 %v3203
      %v3596 = vunpack.c.l.b16 %v3204
      %v3597 = vunpack.c.h.b16 %v3204
      %v3598 = vunpack.c.l.b16 %v3205
      %v3599 = vunpack.c.h.b16 %v3205
      %v3600 = vunpack.c.l.b16 %v3206
      %v3601 = vunpack.c.h.b16 %v3206
      %v3602 = vunpack.c.l.b16 %v3207
      %v3603 = vunpack.c.h.b16 %v3207
      %v3604 = vunpack.c.l.b16 %v3208
      %v3605 = vunpack.c.h.b16 %v3208
      %v3606 = vunpack.c.l.b16 %v3209
      %v3607 = vunpack.c.h.b16 %v3209
      %v3608 = vunpack.c.l.b16 %v3210
      %v3609 = vunpack.c.h.b16 %v3210
      %v3610 = vunpack.c.l.b16 %v3211
      %v3611 = vunpack.c.h.b16 %v3211
      %v3612 = vunpack.c.l.b16 %v3212
      %v3613 = vunpack.c.h.b16 %v3212
      %v3614 = vunpack.c.l.b16 %v3213
      %v3615 = vunpack.c.h.b16 %v3213
      %v3616 = vunpack.c.l.b16 %v3214
      %v3617 = vunpack.c.h.b16 %v3214
      %v3618 = vunpack.c.l.b16 %v3215
      %v3619 = vunpack.c.h.b16 %v3215
      %v3620 = vunpack.c.l.b16 %v3216
      %v3621 = vunpack.c.h.b16 %v3216
      %v3622 = vunpack.c.l.b16 %v3217
      %v3623 = vunpack.c.h.b16 %v3217
      %v3624 = vunpack.c.l.b16 %v3218
      %v3625 = vunpack.c.h.b16 %v3218
      %v3626 = vunpack.c.l.b16 %v3219
      %v3627 = vunpack.c.h.b16 %v3219
      %v3628 = vunpack.c.l.b16 %v3220
      %v3629 = vunpack.c.h.b16 %v3220
      %v3630 = vunpack.c.l.b16 %v3221
      %v3631 = vunpack.c.h.b16 %v3221
      %v3632 = vunpack.c.l.b16 %v3222
      %v3633 = vunpack.c.h.b16 %v3222
      %v3634 = vunpack.c.l.b16 %v3223
      %v3635 = vunpack.c.h.b16 %v3223
      %v3636 = vunpack.c.l.b16 %v3224
      %v3637 = vunpack.c.h.b16 %v3224
      %v3638 = vunpack.c.l.b16 %v3225
      %v3639 = vunpack.c.h.b16 %v3225
      %v3640 = vunpack.c.l.b16 %v3226
      %v3641 = vunpack.c.h.b16 %v3226
      %v3642 = vunpack.c.l.b16 %v3227
      %v3643 = vunpack.c.h.b16 %v3227
      %v3644 = vunpack.c.l.b16 %v3228
      %v3645 = vunpack.c.h.b16 %v3228
      %v3646 = vunpack.c.l.b16 %v3229
      %v3647 = vunpack.c.h.b16 %v3229
      %v3648 = vunpack.c.l.b16 %v3230
      %v3649 = vunpack.c.h.b16 %v3230
      %v3650 = vunpack.c.l.b16 %v3231
      %v3651 = vunpack.c.h.b16 %v3231
      %v3652 = vunpack.c.l.b16 %v3232
      %v3653 = vunpack.c.h.b16 %v3232
      %v3654 = vunpack.c.l.b16 %v3233
      %v3655 = vunpack.c.h.b16 %v3233
      %v3656 = vunpack.c.l.b16 %v3234
      %v3657 = vunpack.c.h.b16 %v3234
      %v3658 = vunpack.c.l.b16 %v3235
      %v3659 = vunpack.c.h.b16 %v3235
      %v3660 = vunpack.c.l.b16 %v3236
      %v3661 = vunpack.c.h.b16 %v3236
      %v3662 = vunpack.c.l.b16 %v3237
      %v3663 = vunpack.c.h.b16 %v3237
      %v3664 = vunpack.c.l.b16 %v3238
      %v3665 = vunpack.c.h.b16 %v3238
      %v3666 = vunpack.c.l.b16 %v3239
      %v3667 = vunpack.c.h.b16 %v3239
      %v3668 = vunpack.c.l.b16 %v3240
      %v3669 = vunpack.c.h.b16 %v3240
      %v3670 = vunpack.c.l.b16 %v3241
      %v3671 = vunpack.c.h.b16 %v3241
      %v3672 = vunpack.c.l.b16 %v3242
      %v3673 = vunpack.c.h.b16 %v3242
      %v3674 = vunpack.c.l.b16 %v3243
      %v3675 = vunpack.c.h.b16 %v3243
      %v3676 = vunpack.c.l.b16 %v3244
      %v3677 = vunpack.c.h.b16 %v3244
      %v3678 = vunpack.c.l.b16 %v3245
      %v3679 = vunpack.c.h.b16 %v3245
      %v3680 = vunpack.c.l.b16 %v3246
      %v3681 = vunpack.c.h.b16 %v3246
      %v3682 = vunpack.c.l.b16 %v3247
      %v3683 = vunpack.c.h.b16 %v3247
      %v3684 = vunpack.c.l.b16 %v3248
      %v3685 = vunpack.c.h.b16 %v3248
      %v3686 = vunpack.c.l.b16 %v3249
      %v3687 = vunpack.c.h.b16 %v3249
      %v3688 = vunpack.c.l.b16 %v3250
      %v3689 = vunpack.c.h.b16 %v3250
      %v3690 = vunpack.c.l.b16 %v3251
      %v3691 = vunpack.c.h.b16 %v3251
      %v3692 = vunpack.c.l.b16 %v3252
      %v3693 = vunpack.c.h.b16 %v3252
      %v3694 = vunpack.c.l.b16 %v3253
      %v3695 = vunpack.c.h.b16 %v3253
      %v3696 = vunpack.c.l.b16 %v3254
      %v3697 = vunpack.c.h.b16 %v3254
      %v3698 = vunpack.c.l.b16 %v3255
      %v3699 = vunpack.c.h.b16 %v3255
      %v3700 = vunpack.c.l.b16 %v3256
      %v3701 = vunpack.c.h.b16 %v3256
      %v3702 = vunpack.c.l.b16 %v3257
      %v3703 = vunpack.c.h.b16 %v3257
      %v3704 = vunpack.c.l.b16 %v3258
      %v3705 = vunpack.c.h.b16 %v3258
      %v3706 = vunpack.c.l.b16 %v3259
      %v3707 = vunpack.c.h.b16 %v3259
      %v3708 = vunpack.c.l.b16 %v3260
      %v3709 = vunpack.c.h.b16 %v3260
      %v3710 = vunpack.c.l.b16 %v3261
      %v3711 = vunpack.c.h.b16 %v3261
      %v3712 = vunpack.c.l.b16 %v3262
      %v3713 = vunpack.c.h.b16 %v3262
      %v3714 = vunpack.c.l.b16 %v3263
      %v3715 = vunpack.c.h.b16 %v3263
      %v3716 = vpack.c.b16 %v3468, %v3460
      %v3717 = vpack.c.b16 %v3469, %v3461
      %v3718 = vpack.c.b16 %v3470, %v3462
      %v3719 = vpack.c.b16 %v3471, %v3463
      %v3720 = vpack.c.b16 %v3472, %v3464
      %v3721 = vpack.c.b16 %v3473, %v3465
      %v3722 = vpack.c.b16 %v3474, %v3466
      %v3723 = vpack.c.b16 %v3475, %v3467
      %v3724 = vpack.c.b16 %v3484, %v3476
      %v3725 = vpack.c.b16 %v3485, %v3477
      %v3726 = vpack.c.b16 %v3486, %v3478
      %v3727 = vpack.c.b16 %v3487, %v3479
      %v3728 = vpack.c.b16 %v3488, %v3480
      %v3729 = vpack.c.b16 %v3489, %v3481
      %v3730 = vpack.c.b16 %v3490, %v3482
      %v3731 = vpack.c.b16 %v3491, %v3483
      %v3732 = vpack.c.b16 %v3500, %v3492
      %v3733 = vpack.c.b16 %v3501, %v3493
      %v3734 = vpack.c.b16 %v3502, %v3494
      %v3735 = vpack.c.b16 %v3503, %v3495
      %v3736 = vpack.c.b16 %v3504, %v3496
      %v3737 = vpack.c.b16 %v3505, %v3497
      %v3738 = vpack.c.b16 %v3506, %v3498
      %v3739 = vpack.c.b16 %v3507, %v3499
      %v3740 = vpack.c.b16 %v3516, %v3508
      %v3741 = vpack.c.b16 %v3517, %v3509
      %v3742 = vpack.c.b16 %v3518, %v3510
      %v3743 = vpack.c.b16 %v3519, %v3511
      %v3744 = vpack.c.b16 %v3520, %v3512
      %v3745 = vpack.c.b16 %v3521, %v3513
      %v3746 = vpack.c.b16 %v3522, %v3514
      %v3747 = vpack.c.b16 %v3523, %v3515
      %v3748 = vpack.c.b16 %v3532, %v3524
      %v3749 = vpack.c.b16 %v3533, %v3525
      %v3750 = vpack.c.b16 %v3534, %v3526
      %v3751 = vpack.c.b16 %v3535, %v3527
      %v3752 = vpack.c.b16 %v3536, %v3528
      %v3753 = vpack.c.b16 %v3537, %v3529
      %v3754 = vpack.c.b16 %v3538, %v3530
      %v3755 = vpack.c.b16 %v3539, %v3531
      %v3756 = vpack.c.b16 %v3548, %v3540
      %v3757 = vpack.c.b16 %v3549, %v3541
      %v3758 = vpack.c.b16 %v3550, %v3542
      %v3759 = vpack.c.b16 %v3551, %v3543
      %v3760 = vpack.c.b16 %v3552, %v3544
      %v3761 = vpack.c.b16 %v3553, %v3545
      %v3762 = vpack.c.b16 %v3554, %v3546
      %v3763 = vpack.c.b16 %v3555, %v3547
      %v3764 = vpack.c.b16 %v3564, %v3556
      %v3765 = vpack.c.b16 %v3565, %v3557
      %v3766 = vpack.c.b16 %v3566, %v3558
      %v3767 = vpack.c.b16 %v3567, %v3559
      %v3768 = vpack.c.b16 %v3568, %v3560
      %v3769 = vpack.c.b16 %v3569, %v3561
      %v3770 = vpack.c.b16 %v3570, %v3562
      %v3771 = vpack.c.b16 %v3571, %v3563
      %v3772 = vpack.c.b16 %v3580, %v3572
      %v3773 = vpack.c.b16 %v3581, %v3573
      %v3774 = vpack.c.b16 %v3582, %v3574
      %v3775 = vpack.c.b16 %v3583, %v3575
      %v3776 = vpack.c.b16 %v3584, %v3576
      %v3777 = vpack.c.b16 %v3585, %v3577
      %v3778 = vpack.c.b16 %v3586, %v3578
      %v3779 = vpack.c.b16 %v3587, %v3579
      %v3780 = vpack.c.b16 %v3596, %v3588
      %v3781 = vpack.c.b16 %v3597, %v3589
      %v3782 = vpack.c.b16 %v3598, %v3590
      %v3783 = vpack.c.b16 %v3599, %v3591
      %v3784 = vpack.c.b16 %v3600, %v3592
      %v3785 = vpack.c.b16 %v3601, %v3593
      %v3786 = vpack.c.b16 %v3602, %v3594
      %v3787 = vpack.c.b16 %v3603, %v3595
      %v3788 = vpack.c.b16 %v3612, %v3604
      %v3789 = vpack.c.b16 %v3613, %v3605
      %v3790 = vpack.c.b16 %v3614, %v3606
      %v3791 = vpack.c.b16 %v3615, %v3607
      %v3792 = vpack.c.b16 %v3616, %v3608
      %v3793 = vpack.c.b16 %v3617, %v3609
      %v3794 = vpack.c.b16 %v3618, %v3610
      %v3795 = vpack.c.b16 %v3619, %v3611
      %v3796 = vpack.c.b16 %v3628, %v3620
      %v3797 = vpack.c.b16 %v3629, %v3621
      %v3798 = vpack.c.b16 %v3630, %v3622
      %v3799 = vpack.c.b16 %v3631, %v3623
      %v3800 = vpack.c.b16 %v3632, %v3624
      %v3801 = vpack.c.b16 %v3633, %v3625
      %v3802 = vpack.c.b16 %v3634, %v3626
      %v3803 = vpack.c.b16 %v3635, %v3627
      %v3804 = vpack.c.b16 %v3644, %v3636
      %v3805 = vpack.c.b16 %v3645, %v3637
      %v3806 = vpack.c.b16 %v3646, %v3638
      %v3807 = vpack.c.b16 %v3647, %v3639
      %v3808 = vpack.c.b16 %v3648, %v3640
      %v3809 = vpack.c.b16 %v3649, %v3641
      %v3810 = vpack.c.b16 %v3650, %v3642
      %v3811 = vpack.c.b16 %v3651, %v3643
      %v3812 = vpack.c.b16 %v3660, %v3652
      %v3813 = vpack.c.b16 %v3661, %v3653
      %v3814 = vpack.c.b16 %v3662, %v3654
      %v3815 = vpack.c.b16 %v3663, %v3655
      %v3816 = vpack.c.b16 %v3664, %v3656
      %v3817 = vpack.c.b16 %v3665, %v3657
      %v3818 = vpack.c.b16 %v3666, %v3658
      %v3819 = vpack.c.b16 %v3667, %v3659
      %v3820 = vpack.c.b16 %v3676, %v3668
      %v3821 = vpack.c.b16 %v3677, %v3669
      %v3822 = vpack.c.b16 %v3678, %v3670
      %v3823 = vpack.c.b16 %v3679, %v3671
      %v3824 = vpack.c.b16 %v3680, %v3672
      %v3825 = vpack.c.b16 %v3681, %v3673
      %v3826 = vpack.c.b16 %v3682, %v3674
      %v3827 = vpack.c.b16 %v3683, %v3675
      %v3828 = vpack.c.b16 %v3692, %v3684
      %v3829 = vpack.c.b16 %v3693, %v3685
      %v3830 = vpack.c.b16 %v3694, %v3686
      %v3831 = vpack.c.b16 %v3695, %v3687
      %v3832 = vpack.c.b16 %v3696, %v3688
      %v3833 = vpack.c.b16 %v3697, %v3689
      %v3834 = vpack.c.b16 %v3698, %v3690
      %v3835 = vpack.c.b16 %v3699, %v3691
      %v3836 = vpack.c.b16 %v3708, %v3700
      %v3837 = vpack.c.b16 %v3709, %v3701
      %v3838 = vpack.c.b16 %v3710, %v3702
      %v3839 = vpack.c.b16 %v3711, %v3703
      %v3840 = vpack.c.b16 %v3712, %v3704
      %v3841 = vpack.c.b16 %v3713, %v3705
      %v3842 = vpack.c.b16 %v3714, %v3706
      %v3843 = vpack.c.b16 %v3715, %v3707
      %v3976 = vunpack.c.l.b16 %v3316
      %v3977 = vunpack.c.h.b16 %v3316
      %v3978 = vunpack.c.l.b16 %v3317
      %v3979 = vunpack.c.h.b16 %v3317
      %v3980 = vunpack.c.l.b16 %v3318
      %v3981 = vunpack.c.h.b16 %v3318
      %v3982 = vunpack.c.l.b16 %v3319
      %v3983 = vunpack.c.h.b16 %v3319
      %v3984 = vpack.c.b16 %v3976, %v3976
      %v3985 = vpack.c.b16 %v3977, %v3977
      %v3986 = vpack.c.b16 %v3978, %v3978
      %v3987 = vpack.c.b16 %v3979, %v3979
      %v3988 = vpack.c.b16 %v3980, %v3980
      %v3989 = vpack.c.b16 %v3981, %v3981
      %v3990 = vpack.c.b16 %v3982, %v3982
      %v3991 = vpack.c.b16 %v3983, %v3983
      %v4004 = vunpack.c.l.b16 %v3328
      %v4005 = vunpack.c.h.b16 %v3328
      %v4006 = vunpack.c.l.b16 %v3329
      %v4007 = vunpack.c.h.b16 %v3329
      %v4008 = vunpack.c.l.b16 %v3330
      %v4009 = vunpack.c.h.b16 %v3330
      %v4010 = vunpack.c.l.b16 %v3331
      %v4011 = vunpack.c.h.b16 %v3331
      %v4012 = vpack.c.b16 %v4004, %v4004
      %v4013 = vpack.c.b16 %v4005, %v4005
      %v4014 = vpack.c.b16 %v4006, %v4006
      %v4015 = vpack.c.b16 %v4007, %v4007
      %v4016 = vpack.c.b16 %v4008, %v4008
      %v4017 = vpack.c.b16 %v4009, %v4009
      %v4018 = vpack.c.b16 %v4010, %v4010
      %v4019 = vpack.c.b16 %v4011, %v4011
      %v4021 = vshll.u32 %v4012, 16
      %v4023 = vrot.slane %v4021, 7
      %v4025 = vshll.u32 %v4013, 16
      %v4027 = vrot.slane %v4025, 7
      %v4029 = vshll.u32 %v4014, 16
      %v4031 = vrot.slane %v4029, 7
      %v4033 = vshll.u32 %v4015, 16
      %v4035 = vrot.slane %v4033, 7
      %v4037 = vshll.u32 %v4016, 16
      %v4039 = vrot.slane %v4037, 7
      %v4041 = vshll.u32 %v4017, 16
      %v4043 = vrot.slane %v4041, 7
      %v4045 = vshll.u32 %v4018, 16
      %v4047 = vrot.slane %v4045, 7
      %v4049 = vshll.u32 %v4019, 16
      %v4051 = vrot.slane %v4049, 7
      %v4060 = vsel %vm1630, %v3984, %v4023
      %v4061 = vsel %vm1630, %v3985, %v4027
      %v4062 = vsel %vm1630, %v3986, %v4031
      %v4063 = vsel %vm1630, %v3987, %v4035
      %v4064 = vsel %vm1630, %v3988, %v4039
      %v4065 = vsel %vm1630, %v3989, %v4043
      %v4066 = vsel %vm1630, %v3990, %v4047
      %v4067 = vsel %vm1630, %v3991, %v4051
      %v4068 = vld [vmem:[%s6] sm:$0xff]
      %v4069 = vld [vmem:[%s6 + $0x8] sm:$0xf]
      %v4070 = vld [vmem:[%s6 + $0xc] sm:$0xff]
      %v4071 = vld [vmem:[%s6 + $0x14] sm:$0xf]
      %v4072 = vld [vmem:[%s6 + $0x18] sm:$0xff]
      %v4073 = vld [vmem:[%s6 + $0x20] sm:$0xf]
      %v4074 = vld [vmem:[%s6 + $0x24] sm:$0x33]
      %v4075 = vld [vmem:[%s6 + $0x2c] sm:$0x3]
      %v4084 = vunpack.c.l.b16 %v4068
      %v4085 = vunpack.c.h.b16 %v4068
      %v4086 = vunpack.c.l.b16 %v4069
      %v4087 = vunpack.c.l.b16 %v4070
      %v4088 = vunpack.c.h.b16 %v4070
      %v4089 = vunpack.c.l.b16 %v4071
      %v4090 = vunpack.c.l.b16 %v4072
      %v4091 = vunpack.c.h.b16 %v4072
      %v4092 = vunpack.c.l.b16 %v4073
      %v4093 = vunpack.c.l.b16 %v4074
      %v4094 = vunpack.c.h.b16 %v4074
      %v4095 = vunpack.c.l.b16 %v4075
      %v4096 = vpack.c.b16 %v4087, %v4084
      %v4097 = vpack.c.b16 %v4088, %v4085
      %v4098 = vpack.c.b16 %v4089, %v4086
      %v4099 = vpack.c.b16 %v4093, %v4090
      %v4100 = vpack.c.b16 %v4094, %v4091
      %v4101 = vpack.c.b16 %v4095, %v4092
      %vm4106 = vcmask 31744
      %v4108 = vsel %vm4106, %v4098, 0
      %v4111 = vsel %vm4106, %v4101, 0
      %vm4113 = vcmask 1041408
      %v4115 = vsel %vm4113, %v4060, 0
      %v4118 = vsel %vm4113, %v4061, 0
      %v4121 = vsel %vm4113, %v4062, 0
      %v4124 = vsel %vm4113, %v4063, 0
      %v4127 = vsel %vm4113, %v4064, 0
      %v4130 = vsel %vm4113, %v4065, 0
      %v4133 = vsel %vm4113, %v4066, 0
      %v4136 = vsel %vm4113, %v4067, 0
      %4138 = vmatpush.bf16.msra.mxu0 %v3772
      %4139 = vmatpush.bf16.msra.mxu0 %v3764
      %4140 = vmatpush.bf16.msra.mxu0 %v3756
      %4141 = vmatpush.bf16.msra.mxu0 %v3748
      %4142 = vmatpush.bf16.msra.mxu0 %v3740
      %4143 = vmatpush.bf16.msra.mxu0 %v3732
      %4144 = vmatpush.bf16.msra.mxu0 %v3724
      %4145 = vmatpush.bf16.msra.mxu0 %v3716
      %4146 = vmatmul.bf16.gmra.mxu0 %v4096
      %v4147 = vpop.f32.mrf.mxu0
      %v4148 = vadd.f32 0.0, %v4147
      %v4149 = vpop.f32.mrf.mxu0
      %v4150 = vadd.f32 0.0, %v4149
      %4151 = vmatmul.bf16.gmra.mxu0 %v4099
      %v4152 = vpop.f32.mrf.mxu0
      %v4153 = vadd.f32 0.0, %v4152
      %v4154 = vpop.f32.mrf.mxu0
      %v4155 = vadd.f32 0.0, %v4154
      %4156 = vdwg.mxu0
      %4157 = vmatpush.bf16.msra.mxu0 %v3836
      %4158 = vmatpush.bf16.msra.mxu0 %v3828
      %4159 = vmatpush.bf16.msra.mxu0 %v3820
      %4160 = vmatpush.bf16.msra.mxu0 %v3812
      %4161 = vmatpush.bf16.msra.mxu0 %v3804
      %4162 = vmatpush.bf16.msra.mxu0 %v3796
      %4163 = vmatpush.bf16.msra.mxu0 %v3788
      %4164 = vmatpush.bf16.msra.mxu0 %v3780
      %4165 = vmatmul.bf16.gmra.mxu0 %v4097
      %v4166 = vpop.f32.mrf.mxu0
      %v4167 = vadd.f32 %v4148, %v4166
      %v4168 = vpop.f32.mrf.mxu0
      %v4169 = vadd.f32 %v4150, %v4168
      %4170 = vmatmul.bf16.gmra.mxu0 %v4100
      %v4171 = vpop.f32.mrf.mxu0
      %v4172 = vadd.f32 %v4153, %v4171
      %v4173 = vpop.f32.mrf.mxu0
      %v4174 = vadd.f32 %v4155, %v4173
      %4175 = vdwg.mxu0
      %4176 = vmatpush.bf16.msra.mxu0 0
      %4177 = vmatpush.bf16.msra.mxu0 0
      %4178 = vmatpush.bf16.msra.mxu0 0
      %4179 = vmatpush.bf16.msra.mxu0 0
      %4180 = vmatpush.bf16.msra.mxu0 0
      %4181 = vmatpush.bf16.msra.mxu0 0
      %4182 = vmatpush.bf16.msra.mxu0 0
      %4183 = vmatpush.bf16.msra.mxu0 %v4115
      %4184 = vmatmul.bf16.gmra.mxu0 %v4108
      %v4185 = vpop.f32.mrf.mxu0
      %v4186 = vadd.f32 %v4167, %v4185
      %v4187 = vpop.f32.mrf.mxu0
      %v4188 = vadd.f32 %v4169, %v4187
      %4189 = vmatmul.bf16.gmra.mxu0 %v4111
      %v4190 = vpop.f32.mrf.mxu0
      %v4191 = vadd.f32 %v4172, %v4190
      %v4192 = vpop.f32.mrf.mxu0
      %v4193 = vadd.f32 %v4174, %v4192
      %4194 = vdwg.mxu0
      %4195 = vmatpush.bf16.msra.mxu0 %v3773
      %4196 = vmatpush.bf16.msra.mxu0 %v3765
      %4197 = vmatpush.bf16.msra.mxu0 %v3757
      %4198 = vmatpush.bf16.msra.mxu0 %v3749
      %4199 = vmatpush.bf16.msra.mxu0 %v3741
      %4200 = vmatpush.bf16.msra.mxu0 %v3733
      %4201 = vmatpush.bf16.msra.mxu0 %v3725
      %4202 = vmatpush.bf16.msra.mxu0 %v3717
      %4203 = vmatmul.bf16.gmra.mxu0 %v4096
      %v4204 = vpop.f32.mrf.mxu0
      %v4205 = vadd.f32 0.0, %v4204
      %v4206 = vpop.f32.mrf.mxu0
      %v4207 = vadd.f32 0.0, %v4206
      %4208 = vmatmul.bf16.gmra.mxu0 %v4099
      %v4209 = vpop.f32.mrf.mxu0
      %v4210 = vadd.f32 0.0, %v4209
      %v4211 = vpop.f32.mrf.mxu0
      %v4212 = vadd.f32 0.0, %v4211
      %4213 = vdwg.mxu0
      %4214 = vmatpush.bf16.msra.mxu0 %v3837
      %4215 = vmatpush.bf16.msra.mxu0 %v3829
      %4216 = vmatpush.bf16.msra.mxu0 %v3821
      %4217 = vmatpush.bf16.msra.mxu0 %v3813
      %4218 = vmatpush.bf16.msra.mxu0 %v3805
      %4219 = vmatpush.bf16.msra.mxu0 %v3797
      %4220 = vmatpush.bf16.msra.mxu0 %v3789
      %4221 = vmatpush.bf16.msra.mxu0 %v3781
      %4222 = vmatmul.bf16.gmra.mxu0 %v4097
      %v4223 = vpop.f32.mrf.mxu0
      %v4224 = vadd.f32 %v4205, %v4223
      %v4225 = vpop.f32.mrf.mxu0
      %v4226 = vadd.f32 %v4207, %v4225
      %4227 = vmatmul.bf16.gmra.mxu0 %v4100
      %v4228 = vpop.f32.mrf.mxu0
      %v4229 = vadd.f32 %v4210, %v4228
      %v4230 = vpop.f32.mrf.mxu0
      %v4231 = vadd.f32 %v4212, %v4230
      %4232 = vdwg.mxu0
      %4233 = vmatpush.bf16.msra.mxu0 0
      %4234 = vmatpush.bf16.msra.mxu0 0
      %4235 = vmatpush.bf16.msra.mxu0 0
      %4236 = vmatpush.bf16.msra.mxu0 0
      %4237 = vmatpush.bf16.msra.mxu0 0
      %4238 = vmatpush.bf16.msra.mxu0 0
      %4239 = vmatpush.bf16.msra.mxu0 0
      %4240 = vmatpush.bf16.msra.mxu0 %v4118
      %4241 = vmatmul.bf16.gmra.mxu0 %v4108
      %v4242 = vpop.f32.mrf.mxu0
      %v4243 = vadd.f32 %v4224, %v4242
      %v4244 = vpop.f32.mrf.mxu0
      %v4245 = vadd.f32 %v4226, %v4244
      %4246 = vmatmul.bf16.gmra.mxu0 %v4111
      %v4247 = vpop.f32.mrf.mxu0
      %v4248 = vadd.f32 %v4229, %v4247
      %v4249 = vpop.f32.mrf.mxu0
      %v4250 = vadd.f32 %v4231, %v4249
      %4251 = vdwg.mxu0
      %4252 = vmatpush.bf16.msra.mxu0 %v3774
      %4253 = vmatpush.bf16.msra.mxu0 %v3766
      %4254 = vmatpush.bf16.msra.mxu0 %v3758
      %4255 = vmatpush.bf16.msra.mxu0 %v3750
      %4256 = vmatpush.bf16.msra.mxu0 %v3742
      %4257 = vmatpush.bf16.msra.mxu0 %v3734
      %4258 = vmatpush.bf16.msra.mxu0 %v3726
      %4259 = vmatpush.bf16.msra.mxu0 %v3718
      %4260 = vmatmul.bf16.gmra.mxu0 %v4096
      %v4261 = vpop.f32.mrf.mxu0
      %v4262 = vadd.f32 0.0, %v4261
      %v4263 = vpop.f32.mrf.mxu0
      %v4264 = vadd.f32 0.0, %v4263
      %4265 = vmatmul.bf16.gmra.mxu0 %v4099
      %v4266 = vpop.f32.mrf.mxu0
      %v4267 = vadd.f32 0.0, %v4266
      %v4268 = vpop.f32.mrf.mxu0
      %v4269 = vadd.f32 0.0, %v4268
      %4270 = vdwg.mxu0
      %4271 = vmatpush.bf16.msra.mxu0 %v3838
      %4272 = vmatpush.bf16.msra.mxu0 %v3830
      %4273 = vmatpush.bf16.msra.mxu0 %v3822
      %4274 = vmatpush.bf16.msra.mxu0 %v3814
      %4275 = vmatpush.bf16.msra.mxu0 %v3806
      %4276 = vmatpush.bf16.msra.mxu0 %v3798
      %4277 = vmatpush.bf16.msra.mxu0 %v3790
      %4278 = vmatpush.bf16.msra.mxu0 %v3782
      %4279 = vmatmul.bf16.gmra.mxu0 %v4097
      %v4280 = vpop.f32.mrf.mxu0
      %v4281 = vadd.f32 %v4262, %v4280
      %v4282 = vpop.f32.mrf.mxu0
      %v4283 = vadd.f32 %v4264, %v4282
      %4284 = vmatmul.bf16.gmra.mxu0 %v4100
      %v4285 = vpop.f32.mrf.mxu0
      %v4286 = vadd.f32 %v4267, %v4285
      %v4287 = vpop.f32.mrf.mxu0
      %v4288 = vadd.f32 %v4269, %v4287
      %4289 = vdwg.mxu0
      %4290 = vmatpush.bf16.msra.mxu0 0
      %4291 = vmatpush.bf16.msra.mxu0 0
      %4292 = vmatpush.bf16.msra.mxu0 0
      %4293 = vmatpush.bf16.msra.mxu0 0
      %4294 = vmatpush.bf16.msra.mxu0 0
      %4295 = vmatpush.bf16.msra.mxu0 0
      %4296 = vmatpush.bf16.msra.mxu0 0
      %4297 = vmatpush.bf16.msra.mxu0 %v4121
      %4298 = vmatmul.bf16.gmra.mxu0 %v4108
      %v4299 = vpop.f32.mrf.mxu0
      %v4300 = vadd.f32 %v4281, %v4299
      %v4301 = vpop.f32.mrf.mxu0
      %v4302 = vadd.f32 %v4283, %v4301
      %4303 = vmatmul.bf16.gmra.mxu0 %v4111
      %v4304 = vpop.f32.mrf.mxu0
      %v4305 = vadd.f32 %v4286, %v4304
      %v4306 = vpop.f32.mrf.mxu0
      %v4307 = vadd.f32 %v4288, %v4306
      %4308 = vdwg.mxu0
      %4309 = vmatpush.bf16.msra.mxu0 %v3775
      %4310 = vmatpush.bf16.msra.mxu0 %v3767
      %4311 = vmatpush.bf16.msra.mxu0 %v3759
      %4312 = vmatpush.bf16.msra.mxu0 %v3751
      %4313 = vmatpush.bf16.msra.mxu0 %v3743
      %4314 = vmatpush.bf16.msra.mxu0 %v3735
      %4315 = vmatpush.bf16.msra.mxu0 %v3727
      %4316 = vmatpush.bf16.msra.mxu0 %v3719
      %4317 = vmatmul.bf16.gmra.mxu0 %v4096
      %v4318 = vpop.f32.mrf.mxu0
      %v4319 = vadd.f32 0.0, %v4318
      %v4320 = vpop.f32.mrf.mxu0
      %v4321 = vadd.f32 0.0, %v4320
      %4322 = vmatmul.bf16.gmra.mxu0 %v4099
      %v4323 = vpop.f32.mrf.mxu0
      %v4324 = vadd.f32 0.0, %v4323
      %v4325 = vpop.f32.mrf.mxu0
      %v4326 = vadd.f32 0.0, %v4325
      %4327 = vdwg.mxu0
      %4328 = vmatpush.bf16.msra.mxu0 %v3839
      %4329 = vmatpush.bf16.msra.mxu0 %v3831
      %4330 = vmatpush.bf16.msra.mxu0 %v3823
      %4331 = vmatpush.bf16.msra.mxu0 %v3815
      %4332 = vmatpush.bf16.msra.mxu0 %v3807
      %4333 = vmatpush.bf16.msra.mxu0 %v3799
      %4334 = vmatpush.bf16.msra.mxu0 %v3791
      %4335 = vmatpush.bf16.msra.mxu0 %v3783
      %4336 = vmatmul.bf16.gmra.mxu0 %v4097
      %v4337 = vpop.f32.mrf.mxu0
      %v4338 = vadd.f32 %v4319, %v4337
      %v4339 = vpop.f32.mrf.mxu0
      %v4340 = vadd.f32 %v4321, %v4339
      %4341 = vmatmul.bf16.gmra.mxu0 %v4100
      %v4342 = vpop.f32.mrf.mxu0
      %v4343 = vadd.f32 %v4324, %v4342
      %v4344 = vpop.f32.mrf.mxu0
      %v4345 = vadd.f32 %v4326, %v4344
      %4346 = vdwg.mxu0
      %4347 = vmatpush.bf16.msra.mxu0 0
      %4348 = vmatpush.bf16.msra.mxu0 0
      %4349 = vmatpush.bf16.msra.mxu0 0
      %4350 = vmatpush.bf16.msra.mxu0 0
      %4351 = vmatpush.bf16.msra.mxu0 0
      %4352 = vmatpush.bf16.msra.mxu0 0
      %4353 = vmatpush.bf16.msra.mxu0 0
      %4354 = vmatpush.bf16.msra.mxu0 %v4124
      %4355 = vmatmul.bf16.gmra.mxu0 %v4108
      %v4356 = vpop.f32.mrf.mxu0
      %v4357 = vadd.f32 %v4338, %v4356
      %v4358 = vpop.f32.mrf.mxu0
      %v4359 = vadd.f32 %v4340, %v4358
      %4360 = vmatmul.bf16.gmra.mxu0 %v4111
      %v4361 = vpop.f32.mrf.mxu0
      %v4362 = vadd.f32 %v4343, %v4361
      %v4363 = vpop.f32.mrf.mxu0
      %v4364 = vadd.f32 %v4345, %v4363
      %4365 = vdwg.mxu0
      %4366 = vmatpush.bf16.msra.mxu0 %v3776
      %4367 = vmatpush.bf16.msra.mxu0 %v3768
      %4368 = vmatpush.bf16.msra.mxu0 %v3760
      %4369 = vmatpush.bf16.msra.mxu0 %v3752
      %4370 = vmatpush.bf16.msra.mxu0 %v3744
      %4371 = vmatpush.bf16.msra.mxu0 %v3736
      %4372 = vmatpush.bf16.msra.mxu0 %v3728
      %4373 = vmatpush.bf16.msra.mxu0 %v3720
      %4374 = vmatmul.bf16.gmra.mxu0 %v4096
      %v4375 = vpop.f32.mrf.mxu0
      %v4376 = vadd.f32 0.0, %v4375
      %v4377 = vpop.f32.mrf.mxu0
      %v4378 = vadd.f32 0.0, %v4377
      %4379 = vmatmul.bf16.gmra.mxu0 %v4099
      %v4380 = vpop.f32.mrf.mxu0
      %v4381 = vadd.f32 0.0, %v4380
      %v4382 = vpop.f32.mrf.mxu0
      %v4383 = vadd.f32 0.0, %v4382
      %4384 = vdwg.mxu0
      %4385 = vmatpush.bf16.msra.mxu0 %v3840
      %4386 = vmatpush.bf16.msra.mxu0 %v3832
      %4387 = vmatpush.bf16.msra.mxu0 %v3824
      %4388 = vmatpush.bf16.msra.mxu0 %v3816
      %4389 = vmatpush.bf16.msra.mxu0 %v3808
      %4390 = vmatpush.bf16.msra.mxu0 %v3800
      %4391 = vmatpush.bf16.msra.mxu0 %v3792
      %4392 = vmatpush.bf16.msra.mxu0 %v3784
      %4393 = vmatmul.bf16.gmra.mxu0 %v4097
      %v4394 = vpop.f32.mrf.mxu0
      %v4395 = vadd.f32 %v4376, %v4394
      %v4396 = vpop.f32.mrf.mxu0
      %v4397 = vadd.f32 %v4378, %v4396
      %4398 = vmatmul.bf16.gmra.mxu0 %v4100
      %v4399 = vpop.f32.mrf.mxu0
      %v4400 = vadd.f32 %v4381, %v4399
      %v4401 = vpop.f32.mrf.mxu0
      %v4402 = vadd.f32 %v4383, %v4401
      %4403 = vdwg.mxu0
      %4404 = vmatpush.bf16.msra.mxu0 0
      %4405 = vmatpush.bf16.msra.mxu0 0
      %4406 = vmatpush.bf16.msra.mxu0 0
      %4407 = vmatpush.bf16.msra.mxu0 0
      %4408 = vmatpush.bf16.msra.mxu0 0
      %4409 = vmatpush.bf16.msra.mxu0 0
      %4410 = vmatpush.bf16.msra.mxu0 0
      %4411 = vmatpush.bf16.msra.mxu0 %v4127
      %4412 = vmatmul.bf16.gmra.mxu0 %v4108
      %v4413 = vpop.f32.mrf.mxu0
      %v4414 = vadd.f32 %v4395, %v4413
      %v4415 = vpop.f32.mrf.mxu0
      %v4416 = vadd.f32 %v4397, %v4415
      %4417 = vmatmul.bf16.gmra.mxu0 %v4111
      %v4418 = vpop.f32.mrf.mxu0
      %v4419 = vadd.f32 %v4400, %v4418
      %v4420 = vpop.f32.mrf.mxu0
      %v4421 = vadd.f32 %v4402, %v4420
      %4422 = vdwg.mxu0
      %4423 = vmatpush.bf16.msra.mxu0 %v3777
      %4424 = vmatpush.bf16.msra.mxu0 %v3769
      %4425 = vmatpush.bf16.msra.mxu0 %v3761
      %4426 = vmatpush.bf16.msra.mxu0 %v3753
      %4427 = vmatpush.bf16.msra.mxu0 %v3745
      %4428 = vmatpush.bf16.msra.mxu0 %v3737
      %4429 = vmatpush.bf16.msra.mxu0 %v3729
      %4430 = vmatpush.bf16.msra.mxu0 %v3721
      %4431 = vmatmul.bf16.gmra.mxu0 %v4096
      %v4432 = vpop.f32.mrf.mxu0
      %v4433 = vadd.f32 0.0, %v4432
      %v4434 = vpop.f32.mrf.mxu0
      %v4435 = vadd.f32 0.0, %v4434
      %4436 = vmatmul.bf16.gmra.mxu0 %v4099
      %v4437 = vpop.f32.mrf.mxu0
      %v4438 = vadd.f32 0.0, %v4437
      %v4439 = vpop.f32.mrf.mxu0
      %v4440 = vadd.f32 0.0, %v4439
      %4441 = vdwg.mxu0
      %4442 = vmatpush.bf16.msra.mxu0 %v3841
      %4443 = vmatpush.bf16.msra.mxu0 %v3833
      %4444 = vmatpush.bf16.msra.mxu0 %v3825
      %4445 = vmatpush.bf16.msra.mxu0 %v3817
      %4446 = vmatpush.bf16.msra.mxu0 %v3809
      %4447 = vmatpush.bf16.msra.mxu0 %v3801
      %4448 = vmatpush.bf16.msra.mxu0 %v3793
      %4449 = vmatpush.bf16.msra.mxu0 %v3785
      %4450 = vmatmul.bf16.gmra.mxu0 %v4097
      %v4451 = vpop.f32.mrf.mxu0
      %v4452 = vadd.f32 %v4433, %v4451
      %v4453 = vpop.f32.mrf.mxu0
      %v4454 = vadd.f32 %v4435, %v4453
      %4455 = vmatmul.bf16.gmra.mxu0 %v4100
      %v4456 = vpop.f32.mrf.mxu0
      %v4457 = vadd.f32 %v4438, %v4456
      %v4458 = vpop.f32.mrf.mxu0
      %v4459 = vadd.f32 %v4440, %v4458
      %4460 = vdwg.mxu0
      %4461 = vmatpush.bf16.msra.mxu0 0
      %4462 = vmatpush.bf16.msra.mxu0 0
      %4463 = vmatpush.bf16.msra.mxu0 0
      %4464 = vmatpush.bf16.msra.mxu0 0
      %4465 = vmatpush.bf16.msra.mxu0 0
      %4466 = vmatpush.bf16.msra.mxu0 0
      %4467 = vmatpush.bf16.msra.mxu0 0
      %4468 = vmatpush.bf16.msra.mxu0 %v4130
      %4469 = vmatmul.bf16.gmra.mxu0 %v4108
      %v4470 = vpop.f32.mrf.mxu0
      %v4471 = vadd.f32 %v4452, %v4470
      %v4472 = vpop.f32.mrf.mxu0
      %v4473 = vadd.f32 %v4454, %v4472
      %4474 = vmatmul.bf16.gmra.mxu0 %v4111
      %v4475 = vpop.f32.mrf.mxu0
      %v4476 = vadd.f32 %v4457, %v4475
      %v4477 = vpop.f32.mrf.mxu0
      %v4478 = vadd.f32 %v4459, %v4477
      %4479 = vdwg.mxu0
      %4480 = vmatpush.bf16.msra.mxu0 %v3778
      %4481 = vmatpush.bf16.msra.mxu0 %v3770
      %4482 = vmatpush.bf16.msra.mxu0 %v3762
      %4483 = vmatpush.bf16.msra.mxu0 %v3754
      %4484 = vmatpush.bf16.msra.mxu0 %v3746
      %4485 = vmatpush.bf16.msra.mxu0 %v3738
      %4486 = vmatpush.bf16.msra.mxu0 %v3730
      %4487 = vmatpush.bf16.msra.mxu0 %v3722
      %4488 = vmatmul.bf16.gmra.mxu0 %v4096
      %v4489 = vpop.f32.mrf.mxu0
      %v4490 = vadd.f32 0.0, %v4489
      %v4491 = vpop.f32.mrf.mxu0
      %v4492 = vadd.f32 0.0, %v4491
      %4493 = vmatmul.bf16.gmra.mxu0 %v4099
      %v4494 = vpop.f32.mrf.mxu0
      %v4495 = vadd.f32 0.0, %v4494
      %v4496 = vpop.f32.mrf.mxu0
      %v4497 = vadd.f32 0.0, %v4496
      %4498 = vdwg.mxu0
      %4499 = vmatpush.bf16.msra.mxu0 %v3842
      %4500 = vmatpush.bf16.msra.mxu0 %v3834
      %4501 = vmatpush.bf16.msra.mxu0 %v3826
      %4502 = vmatpush.bf16.msra.mxu0 %v3818
      %4503 = vmatpush.bf16.msra.mxu0 %v3810
      %4504 = vmatpush.bf16.msra.mxu0 %v3802
      %4505 = vmatpush.bf16.msra.mxu0 %v3794
      %4506 = vmatpush.bf16.msra.mxu0 %v3786
      %4507 = vmatmul.bf16.gmra.mxu0 %v4097
      %v4508 = vpop.f32.mrf.mxu0
      %v4509 = vadd.f32 %v4490, %v4508
      %v4510 = vpop.f32.mrf.mxu0
      %v4511 = vadd.f32 %v4492, %v4510
      %4512 = vmatmul.bf16.gmra.mxu0 %v4100
      %v4513 = vpop.f32.mrf.mxu0
      %v4514 = vadd.f32 %v4495, %v4513
      %v4515 = vpop.f32.mrf.mxu0
      %v4516 = vadd.f32 %v4497, %v4515
      %4517 = vdwg.mxu0
      %4518 = vmatpush.bf16.msra.mxu0 0
      %4519 = vmatpush.bf16.msra.mxu0 0
      %4520 = vmatpush.bf16.msra.mxu0 0
      %4521 = vmatpush.bf16.msra.mxu0 0
      %4522 = vmatpush.bf16.msra.mxu0 0
      %4523 = vmatpush.bf16.msra.mxu0 0
      %4524 = vmatpush.bf16.msra.mxu0 0
      %4525 = vmatpush.bf16.msra.mxu0 %v4133
      %4526 = vmatmul.bf16.gmra.mxu0 %v4108
      %v4527 = vpop.f32.mrf.mxu0
      %v4528 = vadd.f32 %v4509, %v4527
      %v4529 = vpop.f32.mrf.mxu0
      %v4530 = vadd.f32 %v4511, %v4529
      %4531 = vmatmul.bf16.gmra.mxu0 %v4111
      %v4532 = vpop.f32.mrf.mxu0
      %v4533 = vadd.f32 %v4514, %v4532
      %v4534 = vpop.f32.mrf.mxu0
      %v4535 = vadd.f32 %v4516, %v4534
      %4536 = vdwg.mxu0
      %4537 = vmatpush.bf16.msra.mxu0 %v3779
      %4538 = vmatpush.bf16.msra.mxu0 %v3771
      %4539 = vmatpush.bf16.msra.mxu0 %v3763
      %4540 = vmatpush.bf16.msra.mxu0 %v3755
      %4541 = vmatpush.bf16.msra.mxu0 %v3747
      %4542 = vmatpush.bf16.msra.mxu0 %v3739
      %4543 = vmatpush.bf16.msra.mxu0 %v3731
      %4544 = vmatpush.bf16.msra.mxu0 %v3723
      %4545 = vmatmul.bf16.gmra.mxu0 %v4096
      %v4546 = vpop.f32.mrf.mxu0
      %v4547 = vadd.f32 0.0, %v4546
      %v4548 = vpop.f32.mrf.mxu0
      %v4549 = vadd.f32 0.0, %v4548
      %4550 = vmatmul.bf16.gmra.mxu0 %v4099
      %v4551 = vpop.f32.mrf.mxu0
      %v4552 = vadd.f32 0.0, %v4551
      %v4553 = vpop.f32.mrf.mxu0
      %v4554 = vadd.f32 0.0, %v4553
      %4555 = vdwg.mxu0
      %4556 = vmatpush.bf16.msra.mxu0 %v3843
      %4557 = vmatpush.bf16.msra.mxu0 %v3835
      %4558 = vmatpush.bf16.msra.mxu0 %v3827
      %4559 = vmatpush.bf16.msra.mxu0 %v3819
      %4560 = vmatpush.bf16.msra.mxu0 %v3811
      %4561 = vmatpush.bf16.msra.mxu0 %v3803
      %4562 = vmatpush.bf16.msra.mxu0 %v3795
      %4563 = vmatpush.bf16.msra.mxu0 %v3787
      %4564 = vmatmul.bf16.gmra.mxu0 %v4097
      %v4565 = vpop.f32.mrf.mxu0
      %v4566 = vadd.f32 %v4547, %v4565
      %v4567 = vpop.f32.mrf.mxu0
      %v4568 = vadd.f32 %v4549, %v4567
      %4569 = vmatmul.bf16.gmra.mxu0 %v4100
      %v4570 = vpop.f32.mrf.mxu0
      %v4571 = vadd.f32 %v4552, %v4570
      %v4572 = vpop.f32.mrf.mxu0
      %v4573 = vadd.f32 %v4554, %v4572
      %4574 = vdwg.mxu0
      %4575 = vmatpush.bf16.msra.mxu0 0
      %4576 = vmatpush.bf16.msra.mxu0 0
      %4577 = vmatpush.bf16.msra.mxu0 0
      %4578 = vmatpush.bf16.msra.mxu0 0
      %4579 = vmatpush.bf16.msra.mxu0 0
      %4580 = vmatpush.bf16.msra.mxu0 0
      %4581 = vmatpush.bf16.msra.mxu0 0
      %4582 = vmatpush.bf16.msra.mxu0 %v4136
      %4583 = vmatmul.bf16.gmra.mxu0 %v4108
      %v4584 = vpop.f32.mrf.mxu0
      %v4585 = vadd.f32 %v4566, %v4584
      %v4586 = vpop.f32.mrf.mxu0
      %v4587 = vadd.f32 %v4568, %v4586
      %4588 = vmatmul.bf16.gmra.mxu0 %v4111
      %v4589 = vpop.f32.mrf.mxu0
      %v4590 = vadd.f32 %v4571, %v4589
      %v4591 = vpop.f32.mrf.mxu0
      %v4592 = vadd.f32 %v4573, %v4591
      %4593 = vdwg.mxu0
      %4595 = vrot.lane.b32.xlu0 %v4585, 17
      %v4596 = vpop.permute.xlu0 %4595
      %4605 = vrot.lane.b32.xlu0 %v4186, 17
      %v4606 = vpop.permute.xlu0 %4605
      %4607 = vrot.lane.b32.xlu0 %v4243, 17
      %v4608 = vpop.permute.xlu0 %4607
      %4609 = vrot.lane.b32.xlu0 %v4300, 17
      %v4610 = vpop.permute.xlu0 %4609
      %4611 = vrot.lane.b32.xlu0 %v4357, 17
      %v4612 = vpop.permute.xlu0 %4611
      %4613 = vrot.lane.b32.xlu0 %v4414, 17
      %v4614 = vpop.permute.xlu0 %4613
      %4615 = vrot.lane.b32.xlu0 %v4471, 17
      %v4616 = vpop.permute.xlu0 %4615
      %4617 = vrot.lane.b32.xlu0 %v4528, 17
      %v4618 = vpop.permute.xlu0 %4617
      %v4619 = vsel %vm443, %v4606, %v4608
      %v4620 = vsel %vm443, %v4608, %v4610
      %v4621 = vsel %vm443, %v4610, %v4612
      %v4622 = vsel %vm443, %v4612, %v4614
      %v4623 = vsel %vm443, %v4614, %v4616
      %v4624 = vsel %vm443, %v4616, %v4618
      %v4625 = vsel %vm443, %v4618, %v4596
      %v4634 = vsel %vm443, %v4596, %v4606
      %v4635 = vunpack.c.l.bf16 %v353
      %v4636 = vunpack.c.h.bf16 %v353
      %v4637 = vunpack.c.l.bf16 %v354
      %v4638 = vunpack.c.h.bf16 %v354
      %v4639 = vunpack.c.l.bf16 %v355
      %v4640 = vunpack.c.h.bf16 %v355
      %v4641 = vunpack.c.l.bf16 %v356
      %v4642 = vunpack.c.h.bf16 %v356
      %v4643 = vperm.slane %v4635, 0
      %v4644 = vperm.slane %v4636, 0
      %v4645 = vperm.slane %v4637, 0
      %v4646 = vperm.slane %v4638, 0
      %v4647 = vperm.slane %v4639, 0
      %v4648 = vperm.slane %v4640, 0
      %v4649 = vperm.slane %v4641, 0
      %v4650 = vperm.slane %v4642, 0
      %v4651 = vmul.f32 %v4634, %v4643
      %v4652 = vmul.f32 %v4619, %v4644
      %v4653 = vmul.f32 %v4620, %v4645
      %v4654 = vmul.f32 %v4621, %v4646
      %v4655 = vmul.f32 %v4622, %v4647
      %v4656 = vmul.f32 %v4623, %v4648
      %v4657 = vmul.f32 %v4624, %v4649
      %v4658 = vmul.f32 %v4625, %v4650
      %4659 = vrot.lane.b32.xlu0 %v4585, 16
      %v4660 = vpop.permute.xlu0 %4659
      %4662 = vrot.lane.b32.xlu0 %v4186, 16
      %v4663 = vpop.permute.xlu0 %4662
      %4664 = vrot.lane.b32.xlu0 %v4243, 16
      %v4665 = vpop.permute.xlu0 %4664
      %4666 = vrot.lane.b32.xlu0 %v4300, 16
      %v4667 = vpop.permute.xlu0 %4666
      %4668 = vrot.lane.b32.xlu0 %v4357, 16
      %v4669 = vpop.permute.xlu0 %4668
      %4670 = vrot.lane.b32.xlu0 %v4414, 16
      %v4671 = vpop.permute.xlu0 %4670
      %4672 = vrot.lane.b32.xlu0 %v4471, 16
      %v4673 = vpop.permute.xlu0 %4672
      %4674 = vrot.lane.b32.xlu0 %v4528, 16
      %v4675 = vpop.permute.xlu0 %4674
      %v4676 = vsel %vm559, %v4663, %v4665
      %v4677 = vsel %vm559, %v4665, %v4667
      %v4678 = vsel %vm559, %v4667, %v4669
      %v4679 = vsel %vm559, %v4669, %v4671
      %v4680 = vsel %vm559, %v4671, %v4673
      %v4681 = vsel %vm559, %v4673, %v4675
      %v4682 = vsel %vm559, %v4675, %v4660
      %v4691 = vsel %vm559, %v4660, %v4663
      %v4692 = vperm.slane %v4635, 1
      %v4693 = vperm.slane %v4636, 1
      %v4694 = vperm.slane %v4637, 1
      %v4695 = vperm.slane %v4638, 1
      %v4696 = vperm.slane %v4639, 1
      %v4697 = vperm.slane %v4640, 1
      %v4698 = vperm.slane %v4641, 1
      %v4699 = vperm.slane %v4642, 1
      %v4700 = vmul.f32 %v4691, %v4692
      %v4701 = vmul.f32 %v4676, %v4693
      %v4702 = vmul.f32 %v4677, %v4694
      %v4703 = vmul.f32 %v4678, %v4695
      %v4704 = vmul.f32 %v4679, %v4696
      %v4705 = vmul.f32 %v4680, %v4697
      %v4706 = vmul.f32 %v4681, %v4698
      %v4707 = vmul.f32 %v4682, %v4699
      %v4716 = vrot.slane %v4700, 3
      %v4717 = vrot.slane %v4701, 3
      %v4718 = vrot.slane %v4702, 3
      %v4719 = vrot.slane %v4703, 3
      %v4720 = vrot.slane %v4704, 3
      %v4721 = vrot.slane %v4705, 3
      %v4722 = vrot.slane %v4706, 3
      %v4723 = vrot.slane %v4707, 3
      %v4732 = vadd.f32 %v4651, %v4716
      %v4733 = vadd.f32 %v4652, %v4717
      %v4734 = vadd.f32 %v4653, %v4718
      %v4735 = vadd.f32 %v4654, %v4719
      %v4736 = vadd.f32 %v4655, %v4720
      %v4737 = vadd.f32 %v4656, %v4721
      %v4738 = vadd.f32 %v4657, %v4722
      %v4739 = vadd.f32 %v4658, %v4723
      %4741 = vrot.lane.b32.xlu0 %v4585, 15
      %v4742 = vpop.permute.xlu0 %4741
      %4743 = vrot.lane.b32.xlu0 %v4587, 15
      %v4744 = vpop.permute.xlu0 %4743
      %4754 = vrot.lane.b32.xlu0 %v4186, 15
      %v4755 = vpop.permute.xlu0 %4754
      %4756 = vrot.lane.b32.xlu0 %v4243, 15
      %v4757 = vpop.permute.xlu0 %4756
      %4758 = vrot.lane.b32.xlu0 %v4300, 15
      %v4759 = vpop.permute.xlu0 %4758
      %4760 = vrot.lane.b32.xlu0 %v4357, 15
      %v4761 = vpop.permute.xlu0 %4760
      %4762 = vrot.lane.b32.xlu0 %v4414, 15
      %v4763 = vpop.permute.xlu0 %4762
      %4764 = vrot.lane.b32.xlu0 %v4471, 15
      %v4765 = vpop.permute.xlu0 %4764
      %4766 = vrot.lane.b32.xlu0 %v4528, 15
      %v4767 = vpop.permute.xlu0 %4766
      %4768 = vrot.lane.b32.xlu0 %v4188, 15
      %v4769 = vpop.permute.xlu0 %4768
      %4770 = vrot.lane.b32.xlu0 %v4245, 15
      %v4771 = vpop.permute.xlu0 %4770
      %4772 = vrot.lane.b32.xlu0 %v4302, 15
      %v4773 = vpop.permute.xlu0 %4772
      %4774 = vrot.lane.b32.xlu0 %v4359, 15
      %v4775 = vpop.permute.xlu0 %4774
      %4776 = vrot.lane.b32.xlu0 %v4416, 15
      %v4777 = vpop.permute.xlu0 %4776
      %4778 = vrot.lane.b32.xlu0 %v4473, 15
      %v4779 = vpop.permute.xlu0 %4778
      %4780 = vrot.lane.b32.xlu0 %v4530, 15
      %v4781 = vpop.permute.xlu0 %4780
      %v4782 = vsel %vm655, %v4755, %v4757
      %v4783 = vsel %vm655, %v4757, %v4759
      %v4784 = vsel %vm655, %v4759, %v4761
      %v4785 = vsel %vm655, %v4761, %v4763
      %v4786 = vsel %vm655, %v4763, %v4765
      %v4787 = vsel %vm655, %v4765, %v4767
      %v4788 = vsel %vm655, %v4767, %v4742
      %v4789 = vsel %vm655, %v4769, %v4771
      %v4790 = vsel %vm655, %v4771, %v4773
      %v4791 = vsel %vm655, %v4773, %v4775
      %v4792 = vsel %vm655, %v4775, %v4777
      %v4793 = vsel %vm655, %v4777, %v4779
      %v4794 = vsel %vm655, %v4779, %v4781
      %v4795 = vsel %vm655, %v4781, %v4744
      %v4812 = vsel %vm655, %v4742, %v4755
      %v4813 = vsel %vm655, %v4744, %v4769
      %v4814 = vperm.slane %v4635, 2
      %v4815 = vperm.slane %v4636, 2
      %v4816 = vperm.slane %v4637, 2
      %v4817 = vperm.slane %v4638, 2
      %v4818 = vperm.slane %v4639, 2
      %v4819 = vperm.slane %v4640, 2
      %v4820 = vperm.slane %v4641, 2
      %v4821 = vperm.slane %v4642, 2
      %v4822 = vmul.f32 %v4812, %v4814
      %v4823 = vmul.f32 %v4782, %v4815
      %v4824 = vmul.f32 %v4783, %v4816
      %v4825 = vmul.f32 %v4784, %v4817
      %v4826 = vmul.f32 %v4785, %v4818
      %v4827 = vmul.f32 %v4786, %v4819
      %v4828 = vmul.f32 %v4787, %v4820
      %v4829 = vmul.f32 %v4788, %v4821
      %v4830 = vmul.f32 %v4813, %v4814
      %v4831 = vmul.f32 %v4789, %v4815
      %v4832 = vmul.f32 %v4790, %v4816
      %v4833 = vmul.f32 %v4791, %v4817
      %v4834 = vmul.f32 %v4792, %v4818
      %v4835 = vmul.f32 %v4793, %v4819
      %v4836 = vmul.f32 %v4794, %v4820
      %v4837 = vmul.f32 %v4795, %v4821
      %v4854 = vrot.slane %v4822, 6
      %v4855 = vrot.slane %v4830, 6
      %v4856 = vsel %vm4113, %v4854, %v4855
      %v4857 = vrot.slane %v4823, 6
      %v4858 = vrot.slane %v4831, 6
      %v4859 = vsel %vm4113, %v4857, %v4858
      %v4860 = vrot.slane %v4824, 6
      %v4861 = vrot.slane %v4832, 6
      %v4862 = vsel %vm4113, %v4860, %v4861
      %v4863 = vrot.slane %v4825, 6
      %v4864 = vrot.slane %v4833, 6
      %v4865 = vsel %vm4113, %v4863, %v4864
      %v4866 = vrot.slane %v4826, 6
      %v4867 = vrot.slane %v4834, 6
      %v4868 = vsel %vm4113, %v4866, %v4867
      %v4869 = vrot.slane %v4827, 6
      %v4870 = vrot.slane %v4835, 6
      %v4871 = vsel %vm4113, %v4869, %v4870
      %v4872 = vrot.slane %v4828, 6
      %v4873 = vrot.slane %v4836, 6
      %v4874 = vsel %vm4113, %v4872, %v4873
      %v4875 = vrot.slane %v4829, 6
      %v4876 = vrot.slane %v4837, 6
      %v4877 = vsel %vm4113, %v4875, %v4876
      %v4886 = vadd.f32 %v4732, %v4856
      %v4887 = vadd.f32 %v4733, %v4859
      %v4888 = vadd.f32 %v4734, %v4862
      %v4889 = vadd.f32 %v4735, %v4865
      %v4890 = vadd.f32 %v4736, %v4868
      %v4891 = vadd.f32 %v4737, %v4871
      %v4892 = vadd.f32 %v4738, %v4874
      %v4893 = vadd.f32 %v4739, %v4877
      %4894 = vrot.lane.b32.xlu0 %v4587, 1
      %v4895 = vpop.permute.xlu0 %4894
      %4897 = vrot.lane.b32.xlu0 %v4188, 1
      %v4898 = vpop.permute.xlu0 %4897
      %4899 = vrot.lane.b32.xlu0 %v4245, 1
      %v4900 = vpop.permute.xlu0 %4899
      %4901 = vrot.lane.b32.xlu0 %v4302, 1
      %v4902 = vpop.permute.xlu0 %4901
      %4903 = vrot.lane.b32.xlu0 %v4359, 1
      %v4904 = vpop.permute.xlu0 %4903
      %4905 = vrot.lane.b32.xlu0 %v4416, 1
      %v4906 = vpop.permute.xlu0 %4905
      %4907 = vrot.lane.b32.xlu0 %v4473, 1
      %v4908 = vpop.permute.xlu0 %4907
      %4909 = vrot.lane.b32.xlu0 %v4530, 1
      %v4910 = vpop.permute.xlu0 %4909
      %v4911 = vsel %vm727, %v4898, %v4900
      %v4912 = vsel %vm727, %v4900, %v4902
      %v4913 = vsel %vm727, %v4902, %v4904
      %v4914 = vsel %vm727, %v4904, %v4906
      %v4915 = vsel %vm727, %v4906, %v4908
      %v4916 = vsel %vm727, %v4908, %v4910
      %v4917 = vsel %vm727, %v4910, %v4895
      %v4926 = vsel %vm727, %v4895, %v4898
      %v4927 = vperm.slane %v4635, 3
      %v4928 = vperm.slane %v4636, 3
      %v4929 = vperm.slane %v4637, 3
      %v4930 = vperm.slane %v4638, 3
      %v4931 = vperm.slane %v4639, 3
      %v4932 = vperm.slane %v4640, 3
      %v4933 = vperm.slane %v4641, 3
      %v4934 = vperm.slane %v4642, 3
      %v4935 = vmul.f32 %v4926, %v4927
      %v4936 = vmul.f32 %v4911, %v4928
      %v4937 = vmul.f32 %v4912, %v4929
      %v4938 = vmul.f32 %v4913, %v4930
      %v4939 = vmul.f32 %v4914, %v4931
      %v4940 = vmul.f32 %v4915, %v4932
      %v4941 = vmul.f32 %v4916, %v4933
      %v4942 = vmul.f32 %v4917, %v4934
      %v4951 = vrot.slane %v4935, 1
      %v4952 = vrot.slane %v4936, 1
      %v4953 = vrot.slane %v4937, 1
      %v4954 = vrot.slane %v4938, 1
      %v4955 = vrot.slane %v4939, 1
      %v4956 = vrot.slane %v4940, 1
      %v4957 = vrot.slane %v4941, 1
      %v4958 = vrot.slane %v4942, 1
      %v4967 = vadd.f32 %v4886, %v4951
      %v4968 = vadd.f32 %v4887, %v4952
      %v4969 = vadd.f32 %v4888, %v4953
      %v4970 = vadd.f32 %v4889, %v4954
      %v4971 = vadd.f32 %v4890, %v4955
      %v4972 = vadd.f32 %v4891, %v4956
      %v4973 = vadd.f32 %v4892, %v4957
      %v4974 = vadd.f32 %v4893, %v4958
      %v4975 = vperm.slane %v4635, 4
      %v4976 = vperm.slane %v4636, 4
      %v4977 = vperm.slane %v4637, 4
      %v4978 = vperm.slane %v4638, 4
      %v4979 = vperm.slane %v4639, 4
      %v4980 = vperm.slane %v4640, 4
      %v4981 = vperm.slane %v4641, 4
      %v4982 = vperm.slane %v4642, 4
      %v4983 = vmul.f32 %v4188, %v4975
      %v4984 = vmul.f32 %v4245, %v4976
      %v4985 = vmul.f32 %v4302, %v4977
      %v4986 = vmul.f32 %v4359, %v4978
      %v4987 = vmul.f32 %v4416, %v4979
      %v4988 = vmul.f32 %v4473, %v4980
      %v4989 = vmul.f32 %v4530, %v4981
      %v4990 = vmul.f32 %v4587, %v4982
      %v4999 = vrot.slane %v4983, 4
      %v5000 = vrot.slane %v4984, 4
      %v5001 = vrot.slane %v4985, 4
      %v5002 = vrot.slane %v4986, 4
      %v5003 = vrot.slane %v4987, 4
      %v5004 = vrot.slane %v4988, 4
      %v5005 = vrot.slane %v4989, 4
      %v5006 = vrot.slane %v4990, 4
      %v5015 = vadd.f32 %v4967, %v4999
      %v5016 = vadd.f32 %v4968, %v5000
      %v5017 = vadd.f32 %v4969, %v5001
      %v5018 = vadd.f32 %v4970, %v5002
      %v5019 = vadd.f32 %v4971, %v5003
      %v5020 = vadd.f32 %v4972, %v5004
      %v5021 = vadd.f32 %v4973, %v5005
      %v5022 = vadd.f32 %v4974, %v5006
      %5031 = vrot.lane.b32.xlu0 %v4188, 127
      %v5032 = vpop.permute.xlu0 %5031
      %5033 = vrot.lane.b32.xlu0 %v4245, 127
      %v5034 = vpop.permute.xlu0 %5033
      %5035 = vrot.lane.b32.xlu0 %v4302, 127
      %v5036 = vpop.permute.xlu0 %5035
      %5037 = vrot.lane.b32.xlu0 %v4359, 127
      %v5038 = vpop.permute.xlu0 %5037
      %5039 = vrot.lane.b32.xlu0 %v4416, 127
      %v5040 = vpop.permute.xlu0 %5039
      %5041 = vrot.lane.b32.xlu0 %v4473, 127
      %v5042 = vpop.permute.xlu0 %5041
      %5043 = vrot.lane.b32.xlu0 %v4530, 127
      %v5044 = vpop.permute.xlu0 %5043
      %5045 = vrot.lane.b32.xlu0 %v4587, 127
      %v5046 = vpop.permute.xlu0 %5045
      %5047 = vrot.lane.b32.xlu0 %v4191, 127
      %v5048 = vpop.permute.xlu0 %5047
      %5049 = vrot.lane.b32.xlu0 %v4248, 127
      %v5050 = vpop.permute.xlu0 %5049
      %5051 = vrot.lane.b32.xlu0 %v4305, 127
      %v5052 = vpop.permute.xlu0 %5051
      %5053 = vrot.lane.b32.xlu0 %v4362, 127
      %v5054 = vpop.permute.xlu0 %5053
      %5055 = vrot.lane.b32.xlu0 %v4419, 127
      %v5056 = vpop.permute.xlu0 %5055
      %5057 = vrot.lane.b32.xlu0 %v4476, 127
      %v5058 = vpop.permute.xlu0 %5057
      %5059 = vrot.lane.b32.xlu0 %v4533, 127
      %v5060 = vpop.permute.xlu0 %5059
      %5061 = vrot.lane.b32.xlu0 %v4590, 127
      %v5062 = vpop.permute.xlu0 %5061
      %v5063 = vsel %vm835, %v5032, %v5034
      %v5064 = vsel %vm835, %v5034, %v5036
      %v5065 = vsel %vm835, %v5036, %v5038
      %v5066 = vsel %vm835, %v5038, %v5040
      %v5067 = vsel %vm835, %v5040, %v5042
      %v5068 = vsel %vm835, %v5042, %v5044
      %v5069 = vsel %vm835, %v5044, %v5046
      %v5070 = vsel %vm835, %v5048, %v5050
      %v5071 = vsel %vm835, %v5050, %v5052
      %v5072 = vsel %vm835, %v5052, %v5054
      %v5073 = vsel %vm835, %v5054, %v5056
      %v5074 = vsel %vm835, %v5056, %v5058
      %v5075 = vsel %vm835, %v5058, %v5060
      %v5076 = vsel %vm835, %v5060, %v5062
      %v5095 = vsel %vm835, %v5046, %v5032
      %v5096 = vsel %vm835, %v5062, %v5048
      %v5097 = vperm.slane %v4635, 5
      %v5098 = vperm.slane %v4636, 5
      %v5099 = vperm.slane %v4637, 5
      %v5100 = vperm.slane %v4638, 5
      %v5101 = vperm.slane %v4639, 5
      %v5102 = vperm.slane %v4640, 5
      %v5103 = vperm.slane %v4641, 5
      %v5104 = vperm.slane %v4642, 5
      %v5105 = vmul.f32 %v5063, %v5097
      %v5106 = vmul.f32 %v5064, %v5098
      %v5107 = vmul.f32 %v5065, %v5099
      %v5108 = vmul.f32 %v5066, %v5100
      %v5109 = vmul.f32 %v5067, %v5101
      %v5110 = vmul.f32 %v5068, %v5102
      %v5111 = vmul.f32 %v5069, %v5103
      %v5112 = vmul.f32 %v5095, %v5104
      %v5113 = vmul.f32 %v5070, %v5097
      %v5114 = vmul.f32 %v5071, %v5098
      %v5115 = vmul.f32 %v5072, %v5099
      %v5116 = vmul.f32 %v5073, %v5100
      %v5117 = vmul.f32 %v5074, %v5101
      %v5118 = vmul.f32 %v5075, %v5102
      %v5119 = vmul.f32 %v5076, %v5103
      %v5120 = vmul.f32 %v5096, %v5104
      %v5137 = vrot.slane %v5105, 7
      %v5138 = vrot.slane %v5113, 7
      %v5139 = vsel %vm1727, %v5137, %v5138
      %v5140 = vrot.slane %v5106, 7
      %v5141 = vrot.slane %v5114, 7
      %v5142 = vsel %vm1727, %v5140, %v5141
      %v5143 = vrot.slane %v5107, 7
      %v5144 = vrot.slane %v5115, 7
      %v5145 = vsel %vm1727, %v5143, %v5144
      %v5146 = vrot.slane %v5108, 7
      %v5147 = vrot.slane %v5116, 7
      %v5148 = vsel %vm1727, %v5146, %v5147
      %v5149 = vrot.slane %v5109, 7
      %v5150 = vrot.slane %v5117, 7
      %v5151 = vsel %vm1727, %v5149, %v5150
      %v5152 = vrot.slane %v5110, 7
      %v5153 = vrot.slane %v5118, 7
      %v5154 = vsel %vm1727, %v5152, %v5153
      %v5155 = vrot.slane %v5111, 7
      %v5156 = vrot.slane %v5119, 7
      %v5157 = vsel %vm1727, %v5155, %v5156
      %v5158 = vrot.slane %v5112, 7
      %v5159 = vrot.slane %v5120, 7
      %v5160 = vsel %vm1727, %v5158, %v5159
      %v5169 = vadd.f32 %v5015, %v5139
      %v5170 = vadd.f32 %v5016, %v5142
      %v5171 = vadd.f32 %v5017, %v5145
      %v5172 = vadd.f32 %v5018, %v5148
      %v5173 = vadd.f32 %v5019, %v5151
      %v5174 = vadd.f32 %v5020, %v5154
      %v5175 = vadd.f32 %v5021, %v5157
      %v5176 = vadd.f32 %v5022, %v5160
      %5177 = vrot.lane.b32.xlu0 %v4191, 113
      %v5178 = vpop.permute.xlu0 %5177
      %5179 = vrot.lane.b32.xlu0 %v4248, 113
      %v5180 = vpop.permute.xlu0 %5179
      %5181 = vrot.lane.b32.xlu0 %v4305, 113
      %v5182 = vpop.permute.xlu0 %5181
      %5183 = vrot.lane.b32.xlu0 %v4362, 113
      %v5184 = vpop.permute.xlu0 %5183
      %5185 = vrot.lane.b32.xlu0 %v4419, 113
      %v5186 = vpop.permute.xlu0 %5185
      %5187 = vrot.lane.b32.xlu0 %v4476, 113
      %v5188 = vpop.permute.xlu0 %5187
      %5189 = vrot.lane.b32.xlu0 %v4533, 113
      %v5190 = vpop.permute.xlu0 %5189
      %5191 = vrot.lane.b32.xlu0 %v4590, 113
      %v5192 = vpop.permute.xlu0 %5191
      %v5193 = vsel %vm907, %v5178, %v5180
      %v5194 = vsel %vm907, %v5180, %v5182
      %v5195 = vsel %vm907, %v5182, %v5184
      %v5196 = vsel %vm907, %v5184, %v5186
      %v5197 = vsel %vm907, %v5186, %v5188
      %v5198 = vsel %vm907, %v5188, %v5190
      %v5199 = vsel %vm907, %v5190, %v5192
      %v5209 = vsel %vm907, %v5192, %v5178
      %v5210 = vperm.slane %v4635, 6
      %v5211 = vperm.slane %v4636, 6
      %v5212 = vperm.slane %v4637, 6
      %v5213 = vperm.slane %v4638, 6
      %v5214 = vperm.slane %v4639, 6
      %v5215 = vperm.slane %v4640, 6
      %v5216 = vperm.slane %v4641, 6
      %v5217 = vperm.slane %v4642, 6
      %v5218 = vmul.f32 %v5193, %v5210
      %v5219 = vmul.f32 %v5194, %v5211
      %v5220 = vmul.f32 %v5195, %v5212
      %v5221 = vmul.f32 %v5196, %v5213
      %v5222 = vmul.f32 %v5197, %v5214
      %v5223 = vmul.f32 %v5198, %v5215
      %v5224 = vmul.f32 %v5199, %v5216
      %v5225 = vmul.f32 %v5209, %v5217
      %v5234 = vrot.slane %v5218, 2
      %v5235 = vrot.slane %v5219, 2
      %v5236 = vrot.slane %v5220, 2
      %v5237 = vrot.slane %v5221, 2
      %v5238 = vrot.slane %v5222, 2
      %v5239 = vrot.slane %v5223, 2
      %v5240 = vrot.slane %v5224, 2
      %v5241 = vrot.slane %v5225, 2
      %v5250 = vadd.f32 %v5169, %v5234
      %v5251 = vadd.f32 %v5170, %v5235
      %v5252 = vadd.f32 %v5171, %v5236
      %v5253 = vadd.f32 %v5172, %v5237
      %v5254 = vadd.f32 %v5173, %v5238
      %v5255 = vadd.f32 %v5174, %v5239
      %v5256 = vadd.f32 %v5175, %v5240
      %v5257 = vadd.f32 %v5176, %v5241
      %5258 = vrot.lane.b32.xlu0 %v4191, 112
      %v5259 = vpop.permute.xlu0 %5258
      %5260 = vrot.lane.b32.xlu0 %v4248, 112
      %v5261 = vpop.permute.xlu0 %5260
      %5262 = vrot.lane.b32.xlu0 %v4305, 112
      %v5263 = vpop.permute.xlu0 %5262
      %5264 = vrot.lane.b32.xlu0 %v4362, 112
      %v5265 = vpop.permute.xlu0 %5264
      %5266 = vrot.lane.b32.xlu0 %v4419, 112
      %v5267 = vpop.permute.xlu0 %5266
      %5268 = vrot.lane.b32.xlu0 %v4476, 112
      %v5269 = vpop.permute.xlu0 %5268
      %5270 = vrot.lane.b32.xlu0 %v4533, 112
      %v5271 = vpop.permute.xlu0 %5270
      %5272 = vrot.lane.b32.xlu0 %v4590, 112
      %v5273 = vpop.permute.xlu0 %5272
      %v5274 = vsel %vm979, %v5259, %v5261
      %v5275 = vsel %vm979, %v5261, %v5263
      %v5276 = vsel %vm979, %v5263, %v5265
      %v5277 = vsel %vm979, %v5265, %v5267
      %v5278 = vsel %vm979, %v5267, %v5269
      %v5279 = vsel %vm979, %v5269, %v5271
      %v5280 = vsel %vm979, %v5271, %v5273
      %v5290 = vsel %vm979, %v5273, %v5259
      %v5291 = vperm.slane %v4635, 7
      %v5292 = vperm.slane %v4636, 7
      %v5293 = vperm.slane %v4637, 7
      %v5294 = vperm.slane %v4638, 7
      %v5295 = vperm.slane %v4639, 7
      %v5296 = vperm.slane %v4640, 7
      %v5297 = vperm.slane %v4641, 7
      %v5298 = vperm.slane %v4642, 7
      %v5299 = vmul.f32 %v5274, %v5291
      %v5300 = vmul.f32 %v5275, %v5292
      %v5301 = vmul.f32 %v5276, %v5293
      %v5302 = vmul.f32 %v5277, %v5294
      %v5303 = vmul.f32 %v5278, %v5295
      %v5304 = vmul.f32 %v5279, %v5296
      %v5305 = vmul.f32 %v5280, %v5297
      %v5306 = vmul.f32 %v5290, %v5298
      %v5315 = vrot.slane %v5299, 5
      %v5316 = vrot.slane %v5300, 5
      %v5317 = vrot.slane %v5301, 5
      %v5318 = vrot.slane %v5302, 5
      %v5319 = vrot.slane %v5303, 5
      %v5320 = vrot.slane %v5304, 5
      %v5321 = vrot.slane %v5305, 5
      %v5322 = vrot.slane %v5306, 5
      %v5331 = vadd.f32 %v5250, %v5315
      %v5332 = vadd.f32 %v5251, %v5316
      %v5333 = vadd.f32 %v5252, %v5317
      %v5334 = vadd.f32 %v5253, %v5318
      %v5335 = vadd.f32 %v5254, %v5319
      %v5336 = vadd.f32 %v5255, %v5320
      %v5337 = vadd.f32 %v5256, %v5321
      %v5338 = vadd.f32 %v5257, %v5322
      %5347 = vrot.lane.b32.xlu0 %v4193, 111
      %v5348 = vpop.permute.xlu0 %5347
      %5349 = vrot.lane.b32.xlu0 %v4250, 111
      %v5350 = vpop.permute.xlu0 %5349
      %5351 = vrot.lane.b32.xlu0 %v4307, 111
      %v5352 = vpop.permute.xlu0 %5351
      %5353 = vrot.lane.b32.xlu0 %v4364, 111
      %v5354 = vpop.permute.xlu0 %5353
      %5355 = vrot.lane.b32.xlu0 %v4421, 111
      %v5356 = vpop.permute.xlu0 %5355
      %5357 = vrot.lane.b32.xlu0 %v4478, 111
      %v5358 = vpop.permute.xlu0 %5357
      %5359 = vrot.lane.b32.xlu0 %v4535, 111
      %v5360 = vpop.permute.xlu0 %5359
      %5361 = vrot.lane.b32.xlu0 %v4592, 111
      %v5362 = vpop.permute.xlu0 %5361
      %v5363 = vsel %vm1051, %v5348, %v5350
      %v5364 = vsel %vm1051, %v5350, %v5352
      %v5365 = vsel %vm1051, %v5352, %v5354
      %v5366 = vsel %vm1051, %v5354, %v5356
      %v5367 = vsel %vm1051, %v5356, %v5358
      %v5368 = vsel %vm1051, %v5358, %v5360
      %v5369 = vsel %vm1051, %v5360, %v5362
      %v5379 = vsel %vm1051, %v5362, %v5348
      %v5380 = vunpack.c.l.bf16 %v357
      %v5381 = vunpack.c.h.bf16 %v357
      %v5382 = vunpack.c.l.bf16 %v358
      %v5383 = vunpack.c.h.bf16 %v358
      %v5384 = vunpack.c.l.bf16 %v359
      %v5385 = vunpack.c.h.bf16 %v359
      %v5386 = vunpack.c.l.bf16 %v360
      %v5387 = vunpack.c.h.bf16 %v360
      %v5388 = vperm.slane %v5380, 0
      %v5389 = vperm.slane %v5381, 0
      %v5390 = vperm.slane %v5382, 0
      %v5391 = vperm.slane %v5383, 0
      %v5392 = vperm.slane %v5384, 0
      %v5393 = vperm.slane %v5385, 0
      %v5394 = vperm.slane %v5386, 0
      %v5395 = vperm.slane %v5387, 0
      %v5396 = vmul.f32 %v5363, %v5388
      %v5397 = vmul.f32 %v5364, %v5389
      %v5398 = vmul.f32 %v5365, %v5390
      %v5399 = vmul.f32 %v5366, %v5391
      %v5400 = vmul.f32 %v5367, %v5392
      %v5401 = vmul.f32 %v5368, %v5393
      %v5402 = vmul.f32 %v5369, %v5394
      %v5403 = vmul.f32 %v5379, %v5395
      %v5404 = vadd.f32 %v5331, %v5396
      %v5405 = vadd.f32 %v5332, %v5397
      %v5406 = vadd.f32 %v5333, %v5398
      %v5407 = vadd.f32 %v5334, %v5399
      %v5408 = vadd.f32 %v5335, %v5400
      %v5409 = vadd.f32 %v5336, %v5401
      %v5410 = vadd.f32 %v5337, %v5402
      %v5411 = vadd.f32 %v5338, %v5403
      %v5412 = vld [vmem:[%s7] sm:$0x7]
      %5414 = vset.pattern.permute.xlu0 0
      %5415 = vperm.xlu0 %5414, %v5412
      %v5416 = vpop.permute.xlu0 %5415
      %v5418 = vadd.f32 %v5404, %v5416
      %v5419 = vadd.f32 %v5405, %v5416
      %v5420 = vadd.f32 %v5406, %v5416
      %v5421 = vadd.f32 %v5407, %v5416
      %v5422 = vadd.f32 %v5408, %v5416
      %v5423 = vadd.f32 %v5409, %v5416
      %v5424 = vadd.f32 %v5410, %v5416
      %v5425 = vadd.f32 %v5411, %v5416
      %v5426 = vtanh.pop %v5418
      %v5427 = vtanh.pop %v5419
      %v5428 = vtanh.pop %v5420
      %v5429 = vtanh.pop %v5421
      %v5430 = vtanh.pop %v5422
      %v5431 = vtanh.pop %v5423
      %v5432 = vtanh.pop %v5424
      %v5433 = vtanh.pop %v5425
      %v5442 = vrot.slane %v5427, 4
      %v5443 = vrot.slane %v5429, 4
      %v5444 = vrot.slane %v5431, 4
      %v5445 = vrot.slane %v5433, 4
      %v5446 = vsel %vm1771, %v5426, %v5442
      %v5447 = vsel %vm1771, %v5428, %v5443
      %v5448 = vsel %vm1771, %v5430, %v5444
      %v5449 = vsel %vm1771, %v5432, %v5445
      %5454 = vst [vmem:[%s342] sm:$0x77] %v5446
      %5455 = vst [vmem:[%s342 + $0x8] sm:$0x77] %v5447
      %5456 = vst [vmem:[%s342 + $0x10] sm:$0x77] %v5448
      %5457 = vst [vmem:[%s342 + $0x18] sm:$0x77] %v5449
      %p5458 = scmp.lt.s32.totalorder %s19, 1
      %s5459 = scalar_select %p5458, %s19, 1
      %s5460 = smul.addr %s5459, 8
      %s5461 = smul.addr %s5460, 4
      %s5462 = scalar_lea.vmem %s8, %s5461
      // Predicated region
      $region53: #{inpainting_model_forward.1} parent=51 // pred_check
        %p5463 = pneg %p220
      $region54: #{inpainting_model_forward.1} parent=51 // pred_check_branch
        %5465 = sbr.rel (%p5463) target = $region56
      $region55: #{inpainting_model_forward.1} parent=51 // pred_region
        _
      $region56: #{inpainting_model_forward.1} parent=51 // pred_fallthru
        _
    $region52: #{inpainting_model_forward.1} parent=5 // pred_fallthru
      _
    %p5466 = scmp.le.s32.totalorder 2, %s14
    // Predicated region
    $region57: #{inpainting_model_forward.1} parent=5 // pred_check
      %p5467 = pneg %p5466
    $region58: #{inpainting_model_forward.1} parent=5 // pred_check_branch
      %5469 = sbr.rel (%p5467) target = $region60
    $region59: #{inpainting_model_forward.1} parent=5 // pred_region
      %s5470 = ssub.s32 %s14, 2
      // Predicated region
      $region61: #{inpainting_model_forward.1} parent=59 // pred_check
        %p5471 = pneg %p226
      $region62: #{inpainting_model_forward.1} parent=59 // pred_check_branch
        %5473 = sbr.rel (%p5471) target = $region64
      $region63: #{inpainting_model_forward.1} parent=59 // pred_region
        %p5474 = scmp.lt.s32.totalorder %s20, 1
        %s5475 = scalar_select %p5474, %s20, 1
        %s5476 = smul.addr %s5475, 8
        %s5477 = smul.addr %s5476, 4
        %s5478 = scalar_lea.vmem %s8, %s5477
      $region64: #{inpainting_model_forward.1} parent=59 // pred_fallthru
        _
    $region60: #{inpainting_model_forward.1} parent=5 // pred_fallthru
      _
  $region6: #{inpainting_model_forward.1} parent=0 // loop_footer
    %s18 = sadd.s32 1, %s14
  $region7: #{inpainting_model_forward.1} parent=0 // loop_footer_branch
    %13 = sbr.rel target = $region3
  $region8: #{inpainting_model_forward.1} parent=0 // loop_exit
    _

</llo_original>
